<compile_context>
chip_gen: v5e
topology: v5e:2x2
jax: 0.10.0
libtpu: 0.0.40
codegen_flags: <defaults>
</compile_context>

<pallas_src>
import functools
import math

import jax
import jax.numpy as jnp
from jax.experimental import pallas as pl
from jax.experimental.pallas import tpu as pltpu


# -----------------------------------------------------------------------------
# Fused kernel: GRU (1 layer, unidirectional) + n_layers post-norm encoder layers.
# Processes Bt batch rows per grid step; everything stays in VMEM/registers.
# -----------------------------------------------------------------------------
def _feature_extractor_kernel(
    x_ref,                                   # (Bt, T, Din)   mxu dtype (pre-cast)
    wih_t_ref, whh_t_ref,                    # (Din, 3Hp), (Hp, 3Hp)   mxu dtype
    bih_ref, bhh_ref,                        # (1, 3Hp)                f32
    wqkv_t_ref, bqkv_ref,                    # (L, H, 3H) mxu, (L, 1, 3H) f32 (Q pre-scaled)
    wo_t_ref, bo_ref,                        # (L, H, H)  mxu, (L, 1, H)  f32
    ln1w_ref, ln1b_ref,                      # (L, 1, H)               f32
    w1_t_ref, b1_ref,                        # (L, H, F)  mxu, (L, 1, F)  f32
    w2_t_ref, b2_ref,                        # (L, F, H)  mxu, (L, 1, H)  f32
    ln2w_ref, ln2b_ref,                      # (L, 1, H)               f32
    o_ref,                                   # (Bt, T, H)              f32
    *, nhead, n_layers, eps, mxu_dtype, hidden):
  Bt, T, Din = x_ref.shape
  H = hidden
  Hp = whh_t_ref.shape[0]                    # per-gate width padded to 128-lane multiple
  dh = H // nhead
  BT = Bt * T

  # ---------------- GRU: input projection hoisted out of the serial scan ------
  x2 = x_ref[...].reshape(BT, Din)                                       # leading-dim merge
  gi_all = (jnp.dot(x2, wih_t_ref[...], preferred_element_type=jnp.float32)
            + bih_ref[...])                                              # (BT, 3Hp) f32
  if Bt == 1:
    gi_at = lambda t: gi_all[t:t + 1, :]                                 # contiguous row
  else:
    gi3 = gi_all.reshape(Bt, T, 3 * Hp)
    gi_at = lambda t: gi3[:, t, :]
  whh_t = whh_t_ref[...]
  bhh = bhh_ref[...]

  h = jnp.zeros((Bt, Hp), jnp.float32)
  hs = []
  for t in range(T):                                                     # static unroll, T small
    gh = jnp.dot(h.astype(mxu_dtype), whh_t,
                 preferred_element_type=jnp.float32) + bhh               # (Bt, 3Hp)
    gi = gi_at(t)
    # Gate slices are 128-lane aligned thanks to wrapper-side gate padding.
    r = jax.nn.sigmoid(gi[:, 0:Hp] + gh[:, 0:Hp])
    z = jax.nn.sigmoid(gi[:, Hp:2 * Hp] + gh[:, Hp:2 * Hp])
    n = jnp.tanh(gi[:, 2 * Hp:3 * Hp] + r * gh[:, 2 * Hp:3 * Hp])
    h = (1.0 - z) * n + z * h
    hs.append(h)

  # Coalesced GRU writeback: one in-register assembly instead of T masked row stores.
  if Bt == 1:
    seq = jnp.concatenate(hs, axis=0)                                    # (T, Hp)
  else:
    seq = jnp.stack(hs, axis=1).reshape(BT, Hp)                          # batch-major (BT, Hp)
  seq = seq[:, :H]                                                       # drop gate padding (offset-0 view)

  def layer_norm(y, w, b):
    mu = jnp.mean(y, axis=-1, keepdims=True)
    var = jnp.mean((y - mu) ** 2, axis=-1, keepdims=True)
    return (y - mu) * jax.lax.rsqrt(var + eps) * w + b

  # ------------- n_layers post-norm TransformerEncoderLayers, VMEM-resident ---
  for l in range(n_layers):                                              # static unroll
    qkv = (jnp.dot(seq.astype(mxu_dtype), wqkv_t_ref[l],
                   preferred_element_type=jnp.float32) + bqkv_ref[l])    # (BT, 3H)

    # Build (nhead*Bt, T, dh) head-major operands purely in registers (no VMEM
    # scratch scatter/gather); a single (b*h)-batched einsum pair does attention.
    def to_heads(m2):                                                    # (BT, H) -> (nh*Bt, T, dh)
      return jnp.concatenate(
          [m2[:, i * dh:(i + 1) * dh].reshape(Bt, T, dh) for i in range(nhead)],
          axis=0)

    qh = to_heads(qkv[:, 0:H]).astype(mxu_dtype)                         # Q pre-scaled by 1/sqrt(dh)
    kh = to_heads(qkv[:, H:2 * H]).astype(mxu_dtype)
    vh = to_heads(qkv[:, 2 * H:3 * H]).astype(mxu_dtype)

    s = jnp.einsum('hqd,hkd->hqk', qh, kh,
                   preferred_element_type=jnp.float32)                   # (nh*Bt, T, T)
    s = s - jnp.max(s, axis=-1, keepdims=True)
    p = jnp.exp(s)
    p = p * pl.reciprocal(jnp.sum(p, axis=-1, keepdims=True))            # exact reciprocal
    ctx = jnp.einsum('hqk,hkd->hqd', p.astype(mxu_dtype), vh,
                     preferred_element_type=jnp.float32)                 # (nh*Bt, T, dh)

    # Reassemble (BT, H) by lane-axis concatenation of the per-head blocks.
    attn = jnp.concatenate(
        [ctx[i * Bt:(i + 1) * Bt].reshape(BT, dh) for i in range(nhead)], axis=1)
    attn = (jnp.dot(attn.astype(mxu_dtype), wo_t_ref[l],
                    preferred_element_type=jnp.float32) + bo_ref[l])

    y = layer_norm(seq + attn, ln1w_ref[l], ln1b_ref[l])
    ff = jnp.maximum(
        jnp.dot(y.astype(mxu_dtype), w1_t_ref[l],
                preferred_element_type=jnp.float32) + b1_ref[l], 0.0)
    ff = (jnp.dot(ff.astype(mxu_dtype), w2_t_ref[l],
                  preferred_element_type=jnp.float32) + b2_ref[l])
    seq = layer_norm(y + ff, ln2w_ref[l], ln2b_ref[l])

  o_ref[...] = seq.reshape(Bt, T, H)


def feature_extractor_forward(x, gru_params, tf_params, nhead,
                              mxu_dtype=jnp.bfloat16):
  """x: (B, T, Din) f32 -> (B, T, H) f32.  mxu_dtype: MXU operand dtype."""
  B, T, Din = x.shape
  wih, whh, bih, bhh = gru_params
  H = whh.shape[1]
  n_layers = len(tf_params)
  dh = H // nhead
  dff = tf_params[0][6].shape[0]
  scale = 1.0 / math.sqrt(dh)

  # --- GRU weights: transpose and pad each gate block to a 128-lane multiple so the
  #     r/z/n slices on the serial recurrence chain are vreg-aligned views.
  Hp = ((H + 127) // 128) * 128

  def pad_gate_cols(w_t):                               # (K, 3H) -> (K, 3Hp)
    blks = [w_t[:, g * H:(g + 1) * H] for g in range(3)]
    if Hp != H:
      blks = [jnp.pad(b_, ((0, 0), (0, Hp - H))) for b_ in blks]
    return jnp.concatenate(blks, axis=1)

  def pad_gate_vec(v):                                  # (3H,) -> (1, 3Hp)
    blks = [v[g * H:(g + 1) * H] for g in range(3)]
    if Hp != H:
      blks = [jnp.pad(b_, (0, Hp - H)) for b_ in blks]
    return jnp.concatenate(blks).reshape(1, -1)

  wih_t = pad_gate_cols(wih.T).astype(mxu_dtype)        # (Din, 3Hp)
  whh_t = pad_gate_cols(whh.T)                          # (H, 3Hp)
  if Hp != H:
    whh_t = jnp.pad(whh_t, ((0, Hp - H), (0, 0)))       # zero rows for padded h lanes
  whh_t = whh_t.astype(mxu_dtype)                       # (Hp, 3Hp)
  bih2 = pad_gate_vec(bih)
  bhh2 = pad_gate_vec(bhh)

  def prep_layer(p):
    wqkv, bqkv, wo, bo, l1w, l1b, w1, b1, w2, b2, l2w, l2b = p
    # Fold the 1/sqrt(dh) attention scale into the Q rows of the in-projection
    # (exact for power-of-two dh).
    wqkv = jnp.concatenate([wqkv[:H] * scale, wqkv[H:]], axis=0)
    bqkv = jnp.concatenate([bqkv[:H] * scale, bqkv[H:]], axis=0)
    return (wqkv.T.astype(mxu_dtype), bqkv.reshape(1, -1),
            wo.T.astype(mxu_dtype), bo.reshape(1, -1),
            l1w.reshape(1, -1), l1b.reshape(1, -1),
            w1.T.astype(mxu_dtype), b1.reshape(1, -1),
            w2.T.astype(mxu_dtype), b2.reshape(1, -1),
            l2w.reshape(1, -1), l2b.reshape(1, -1))

  per_layer = [prep_layer(p) for p in tf_params]
  stacked = [jnp.stack([layer[i] for layer in per_layer], axis=0) for i in range(12)]
  consts = [wih_t, whh_t, bih2, bhh2] + stacked

  # --- Batch-row blocking: Bt rows per grid step (real M for the MXU, amortizes the
  #     ~0.35us/step pipeline overhead); keep grid >= 2 so v7x uses both TensorCores.
  def pick_bt(b):
    for bt in (8, 4, 2):
      if b % bt == 0 and b // bt >= 2:
        return bt
    return 1 if b >= 2 else b

  Bt = pick_bt(B)
  nb = B // Bt

  x_mxu = x.astype(mxu_dtype)                           # halve activation DMA bytes

  def full_spec(a):
    if a.ndim == 2:
      return pl.BlockSpec(a.shape, lambda b: (0, 0))
    return pl.BlockSpec(a.shape, lambda b: (0, 0, 0))

  # TODO(synk): single-buffer the constant-weight BlockSpecs (pl.Buffered(1)) once the
  # stacked weights approach v7x's 64 MiB VMEM budget; irrelevant at these sizes.
  grid_spec = pltpu.PrefetchScalarGridSpec(
      num_scalar_prefetch=0,
      grid=(nb,),
      in_specs=[pl.BlockSpec((Bt, T, Din), lambda b: (b, 0, 0))]
               + [full_spec(a) for a in consts],
      out_specs=pl.BlockSpec((Bt, T, H), lambda b: (b, 0, 0)),
  )

  # Advisory cost hint for the XLA scheduler around the custom call.
  flops = 2 * B * T * (Din * 3 * Hp + Hp * 3 * Hp)
  flops += n_layers * 2 * B * T * (3 * H * H + H * H + 2 * H * dff)
  flops += n_layers * 2 * B * nhead * T * T * 2 * dh
  transcendentals = 3 * B * T * Hp + n_layers * B * nhead * T * T
  bytes_accessed = (x_mxu.size * x_mxu.dtype.itemsize + B * T * H * 4
                    + sum(int(a.size) * a.dtype.itemsize for a in consts))

  kernel = functools.partial(_feature_extractor_kernel, nhead=nhead,
                             n_layers=n_layers, eps=1e-5, mxu_dtype=mxu_dtype,
                             hidden=H)
  return pl.pallas_call(
      kernel,
      out_shape=jax.ShapeDtypeStruct((B, T, H), jnp.float32),
      grid_spec=grid_spec,
      compiler_params=pltpu.CompilerParams(
          dimension_semantics=("parallel",),
          vmem_limit_bytes=32 * 1024 * 1024),
      cost_estimate=pl.CostEstimate(flops=int(flops),
                                    transcendentals=int(transcendentals),
                                    bytes_accessed=int(bytes_accessed)),
  )(x_mxu, *consts)


# -----------------------------------------------------------------------------
# Pure-JAX reference (PyTorch semantics).  mxu_dtype=bf16 mirrors the kernel's
# bf16-operand / f32-accumulate matmul precision for a tight comparison.
# -----------------------------------------------------------------------------
def _ref_forward(x, gru_params, tf_params, nhead, mxu_dtype=jnp.float32):
  f32 = jnp.float32
  c = lambda a: a.astype(mxu_dtype)
  wih, whh, bih, bhh = gru_params
  B, T, _ = x.shape
  H = whh.shape[1]
  h = jnp.zeros((B, H), f32)
  outs = []
  for t in range(T):
    gi = jnp.dot(c(x[:, t, :]), c(wih.T), preferred_element_type=f32) + bih
    gh = jnp.dot(c(h), c(whh.T), preferred_element_type=f32) + bhh
    r = jax.nn.sigmoid(gi[:, :H] + gh[:, :H])
    z = jax.nn.sigmoid(gi[:, H:2 * H] + gh[:, H:2 * H])
    n = jnp.tanh(gi[:, 2 * H:] + r * gh[:, 2 * H:])
    h = (1.0 - z) * n + z * h
    outs.append(h)
  o = jnp.stack(outs, axis=1)

  def ln(y, w, b):
    mu = y.mean(-1, keepdims=True)
    var = ((y - mu) ** 2).mean(-1, keepdims=True)
    return (y - mu) / jnp.sqrt(var + 1e-5) * w + b

  for p in tf_params:
    wqkv, bqkv, wo, bo, ln1w, ln1b, w1, b1, w2, b2, ln2w, ln2b = p
    dh = H // nhead
    qkv = jnp.dot(c(o), c(wqkv.T), preferred_element_type=f32) + bqkv
    q, k, v = qkv[..., :H], qkv[..., H:2 * H], qkv[..., 2 * H:]
    split = lambda a: a.reshape(B, T, nhead, dh).transpose(0, 2, 1, 3)
    q, k, v = split(q), split(k), split(v)
    s = jnp.einsum('bhqd,bhkd->bhqk', c(q), c(k),
                   preferred_element_type=f32) / math.sqrt(dh)
    p_ = jax.nn.softmax(s, -1)
    a = jnp.einsum('bhqk,bhkd->bhqd', c(p_), c(v), preferred_element_type=f32)
    a = jnp.dot(c(a.transpose(0, 2, 1, 3).reshape(B, T, H)), c(wo.T),
                preferred_element_type=f32) + bo
    y = ln(o + a, ln1w, ln1b)
    f = jnp.maximum(jnp.dot(c(y), c(w1.T), preferred_element_type=f32) + b1, 0.0)
    f = jnp.dot(c(f), c(w2.T), preferred_element_type=f32) + b2
    o = ln(y + f, ln2w, ln2b)
  return o


# -----------------------------------------------------------------------------
# Deterministic parameter construction (synthetic; no checkpoint load)
# -----------------------------------------------------------------------------
def make_params(key, input_dim, hidden, dff, nhead, n_layers):
  ks = jax.random.split(key, 4 + 6 * n_layers)
  bound = 1.0 / math.sqrt(hidden)
  gru = (
      jax.random.uniform(ks[0], (3 * hidden, input_dim), jnp.float32, -bound, bound),
      jax.random.uniform(ks[1], (3 * hidden, hidden), jnp.float32, -bound, bound),
      jax.random.uniform(ks[2], (3 * hidden,), jnp.float32, -bound, bound),
      jax.random.uniform(ks[3], (3 * hidden,), jnp.float32, -bound, bound),
  )
  tf_layers = []
  for l in range(n_layers):
    kk = jax.random.split(ks[4 + l], 6)
    tf_layers.append((
        0.1 * jax.random.normal(kk[0], (3 * hidden, hidden), jnp.float32),  # in_proj_weight
        jnp.zeros((3 * hidden,), jnp.float32),                              # in_proj_bias
        0.1 * jax.random.normal(kk[1], (hidden, hidden), jnp.float32),      # out_proj.weight
        0.02 * jax.random.normal(kk[2], (hidden,), jnp.float32),            # out_proj.bias
        jnp.ones((hidden,), jnp.float32),                                   # norm1.weight
        jnp.zeros((hidden,), jnp.float32),                                  # norm1.bias
        0.1 * jax.random.normal(kk[3], (dff, hidden), jnp.float32),         # linear1.weight
        0.02 * jax.random.normal(kk[4], (dff,), jnp.float32),               # linear1.bias
        0.1 * jax.random.normal(kk[5], (hidden, dff), jnp.float32),         # linear2.weight
        jnp.zeros((hidden,), jnp.float32),                                  # linear2.bias
        jnp.ones((hidden,), jnp.float32),                                   # norm2.weight
        jnp.zeros((hidden,), jnp.float32),                                  # norm2.bias
    ))
  return gru, tuple(tf_layers)


if __name__ == "__main__":
  B, T = 2, 8
  INPUT_DIM, HIDDEN, DFF, NHEAD, N_LAYERS = 32, 64, 64, 4, 2

  key = jax.random.PRNGKey(0)
  kx, kp = jax.random.split(key)
  x = jax.random.normal(kx, (B, T, INPUT_DIM), jnp.float32)
  gru_params, tf_params = make_params(kp, INPUT_DIM, HIDDEN, DFF, NHEAD, N_LAYERS)

  out = jax.block_until_ready(feature_extractor_forward(x, gru_params, tf_params, NHEAD))
  assert out.shape == (B, T, HIDDEN), out.shape

  # Tight check vs a reference that mirrors the kernel's bf16-MXU / f32-accumulate
  # numerics (operation-for-operation; scale folding is exact for power-of-two dh).
  ref_mxu = jax.block_until_ready(
      _ref_forward(x, gru_params, tf_params, NHEAD, mxu_dtype=jnp.bfloat16))
  assert jnp.allclose(out, ref_mxu, atol=2e-2, rtol=2e-2), \
      float(jnp.max(jnp.abs(out - ref_mxu)))

  # Loose sanity check vs the full-f32 PyTorch-semantics reference (differences come
  # only from bf16 weight/activation quantization, not kernel structure).
  ref_f32 = jax.block_until_ready(
      _ref_forward(x, gru_params, tf_params, NHEAD, mxu_dtype=jnp.float32))
  assert float(jnp.max(jnp.abs(out - ref_f32))) < 0.5
  assert float(jnp.mean(jnp.abs(out - ref_f32))) < 0.1

  print("KERNEL_OK")
</pallas_src>

<mosaic_0001>
module attributes {stable_mosaic.version = 11 : i64} {
  func.func @_feature_extractor_kernel(%arg0: i32, %arg1: memref<1x8x32xbf16, #tpu.memory_space<vmem>>, %arg2: memref<32x384xbf16, #tpu.memory_space<vmem>>, %arg3: memref<128x384xbf16, #tpu.memory_space<vmem>>, %arg4: memref<1x384xf32, #tpu.memory_space<vmem>>, %arg5: memref<1x384xf32, #tpu.memory_space<vmem>>, %arg6: memref<2x64x192xbf16, #tpu.memory_space<vmem>>, %arg7: memref<2x1x192xf32, #tpu.memory_space<vmem>>, %arg8: memref<2x64x64xbf16, #tpu.memory_space<vmem>>, %arg9: memref<2x1x64xf32, #tpu.memory_space<vmem>>, %arg10: memref<2x1x64xf32, #tpu.memory_space<vmem>>, %arg11: memref<2x1x64xf32, #tpu.memory_space<vmem>>, %arg12: memref<2x64x64xbf16, #tpu.memory_space<vmem>>, %arg13: memref<2x1x64xf32, #tpu.memory_space<vmem>>, %arg14: memref<2x64x64xbf16, #tpu.memory_space<vmem>>, %arg15: memref<2x1x64xf32, #tpu.memory_space<vmem>>, %arg16: memref<2x1x64xf32, #tpu.memory_space<vmem>>, %arg17: memref<2x1x64xf32, #tpu.memory_space<vmem>>, %arg18: memref<1x8x64xf32, #tpu.memory_space<vmem>>) attributes {dimension_semantics = [#tpu.dimension_semantics<parallel>], iteration_bounds = array<i64: 2>, scalar_prefetch = 0 : i64, scratch_operands = 0 : i64, tpu.core_type = #tpu.core_type<tc>, window_params = [{transform_indices = @transform_0, window_bounds = array<i64: 1, 8, 32>}, {pipeline_mode = #tpu.pipeline_mode<synchronous>, transform_indices = @transform_1, window_bounds = array<i64: 32, 384>}, {pipeline_mode = #tpu.pipeline_mode<synchronous>, transform_indices = @transform_2, window_bounds = array<i64: 128, 384>}, {pipeline_mode = #tpu.pipeline_mode<synchronous>, transform_indices = @transform_3, window_bounds = array<i64: 1, 384>}, {pipeline_mode = #tpu.pipeline_mode<synchronous>, transform_indices = @transform_4, window_bounds = array<i64: 1, 384>}, {pipeline_mode = #tpu.pipeline_mode<synchronous>, transform_indices = @transform_5, window_bounds = array<i64: 2, 64, 192>}, {pipeline_mode = #tpu.pipeline_mode<synchronous>, transform_indices = @transform_6, window_bounds = array<i64: 2, 1, 192>}, {pipeline_mode = #tpu.pipeline_mode<synchronous>, transform_indices = @transform_7, window_bounds = array<i64: 2, 64, 64>}, {pipeline_mode = #tpu.pipeline_mode<synchronous>, transform_indices = @transform_8, window_bounds = array<i64: 2, 1, 64>}, {pipeline_mode = #tpu.pipeline_mode<synchronous>, transform_indices = @transform_9, window_bounds = array<i64: 2, 1, 64>}, {pipeline_mode = #tpu.pipeline_mode<synchronous>, transform_indices = @transform_10, window_bounds = array<i64: 2, 1, 64>}, {pipeline_mode = #tpu.pipeline_mode<synchronous>, transform_indices = @transform_11, window_bounds = array<i64: 2, 64, 64>}, {pipeline_mode = #tpu.pipeline_mode<synchronous>, transform_indices = @transform_12, window_bounds = array<i64: 2, 1, 64>}, {pipeline_mode = #tpu.pipeline_mode<synchronous>, transform_indices = @transform_13, window_bounds = array<i64: 2, 64, 64>}, {pipeline_mode = #tpu.pipeline_mode<synchronous>, transform_indices = @transform_14, window_bounds = array<i64: 2, 1, 64>}, {pipeline_mode = #tpu.pipeline_mode<synchronous>, transform_indices = @transform_15, window_bounds = array<i64: 2, 1, 64>}, {pipeline_mode = #tpu.pipeline_mode<synchronous>, transform_indices = @transform_16, window_bounds = array<i64: 2, 1, 64>}, {transform_indices = @transform_17, window_bounds = array<i64: 1, 8, 64>}]} {
    %c0 = arith.constant 0 : index
    %c0_0 = arith.constant 0 : index
    %c0_1 = arith.constant 0 : index
    %0 = vector.load %arg1[%c0, %c0_0, %c0_1] : memref<1x8x32xbf16, #tpu.memory_space<vmem>>, vector<1x8x32xbf16>
    %1 = vector.shape_cast %0 : vector<1x8x32xbf16> to vector<8x32xbf16>
    %c0_2 = arith.constant 0 : index
    %c0_3 = arith.constant 0 : index
    %2 = vector.load %arg2[%c0_2, %c0_3] : memref<32x384xbf16, #tpu.memory_space<vmem>>, vector<32x384xbf16>
    %cst = arith.constant dense<0.000000e+00> : vector<8x384xf32>
    %3 = tpu.matmul %1, %2, %cst {dimension_numbers = #tpu.dot_dimension_numbers<[1], [0], [0], [1], [0, 0, 1, 1], [], []>} : vector<8x32xbf16>, vector<32x384xbf16>, vector<8x384xf32> -> vector<8x384xf32>
    %c0_4 = arith.constant 0 : index
    %c0_5 = arith.constant 0 : index
    %4 = vector.load %arg4[%c0_4, %c0_5] : memref<1x384xf32, #tpu.memory_space<vmem>>, vector<1x384xf32>
    %5 = vector.broadcast %4 : vector<1x384xf32> to vector<8x384xf32>
    %6 = arith.addf %3, %5 : vector<8x384xf32>
    %c0_6 = arith.constant 0 : index
    %c0_7 = arith.constant 0 : index
    %7 = vector.load %arg3[%c0_6, %c0_7] : memref<128x384xbf16, #tpu.memory_space<vmem>>, vector<128x384xbf16>
    %c0_8 = arith.constant 0 : index
    %c0_9 = arith.constant 0 : index
    %8 = vector.load %arg5[%c0_8, %c0_9] : memref<1x384xf32, #tpu.memory_space<vmem>>, vector<1x384xf32>
    %cst_10 = arith.constant 0.000000e+00 : f32
    %9 = vector.broadcast %cst_10 : f32 to vector<1x128xf32>
    %10 = arith.truncf %9 : vector<1x128xf32> to vector<1x128xbf16>
    %cst_11 = arith.constant dense<0.000000e+00> : vector<1x384xf32>
    %11 = tpu.matmul %10, %7, %cst_11 {dimension_numbers = #tpu.dot_dimension_numbers<[1], [0], [0], [1], [0, 0, 1, 1], [], []>} : vector<1x128xbf16>, vector<128x384xbf16>, vector<1x384xf32> -> vector<1x384xf32>
    %12 = arith.addf %11, %8 : vector<1x384xf32>
    %13 = vector.extract_strided_slice %6 {offsets = [0, 0], sizes = [1, 384], strides = [1, 1]} : vector<8x384xf32> to vector<1x384xf32>
    %14 = vector.extract_strided_slice %13 {offsets = [0, 0], sizes = [1, 128], strides = [1, 1]} : vector<1x384xf32> to vector<1x128xf32>
    %15 = vector.extract_strided_slice %12 {offsets = [0, 0], sizes = [1, 128], strides = [1, 1]} : vector<1x384xf32> to vector<1x128xf32>
    %16 = arith.addf %14, %15 : vector<1x128xf32>
    %17 = arith.negf %16 : vector<1x128xf32>
    %18 = math.exp %17 : vector<1x128xf32>
    %cst_12 = arith.constant 1.000000e+00 : f32
    %19 = vector.broadcast %cst_12 : f32 to vector<1x128xf32>
    %20 = arith.addf %19, %18 : vector<1x128xf32>
    %21 = arith.divf %19, %20 : vector<1x128xf32>
    %22 = vector.extract_strided_slice %13 {offsets = [0, 128], sizes = [1, 128], strides = [1, 1]} : vector<1x384xf32> to vector<1x128xf32>
    %23 = vector.extract_strided_slice %12 {offsets = [0, 128], sizes = [1, 128], strides = [1, 1]} : vector<1x384xf32> to vector<1x128xf32>
    %24 = arith.addf %22, %23 : vector<1x128xf32>
    %25 = arith.negf %24 : vector<1x128xf32>
    %26 = math.exp %25 : vector<1x128xf32>
    %cst_13 = arith.constant 1.000000e+00 : f32
    %27 = vector.broadcast %cst_13 : f32 to vector<1x128xf32>
    %28 = arith.addf %27, %26 : vector<1x128xf32>
    %29 = arith.divf %27, %28 : vector<1x128xf32>
    %30 = vector.extract_strided_slice %13 {offsets = [0, 256], sizes = [1, 128], strides = [1, 1]} : vector<1x384xf32> to vector<1x128xf32>
    %31 = vector.extract_strided_slice %12 {offsets = [0, 256], sizes = [1, 128], strides = [1, 1]} : vector<1x384xf32> to vector<1x128xf32>
    %32 = arith.mulf %21, %31 : vector<1x128xf32>
    %33 = arith.addf %30, %32 : vector<1x128xf32>
    %34 = math.tanh %33 : vector<1x128xf32>
    %cst_14 = arith.constant 1.000000e+00 : f32
    %35 = vector.broadcast %cst_14 : f32 to vector<1x128xf32>
    %36 = arith.subf %35, %29 : vector<1x128xf32>
    %37 = arith.mulf %36, %34 : vector<1x128xf32>
    %38 = arith.mulf %29, %9 : vector<1x128xf32>
    %39 = arith.addf %37, %38 : vector<1x128xf32>
    %40 = arith.truncf %39 : vector<1x128xf32> to vector<1x128xbf16>
    %cst_15 = arith.constant dense<0.000000e+00> : vector<1x384xf32>
    %41 = tpu.matmul %40, %7, %cst_15 {dimension_numbers = #tpu.dot_dimension_numbers<[1], [0], [0], [1], [0, 0, 1, 1], [], []>} : vector<1x128xbf16>, vector<128x384xbf16>, vector<1x384xf32> -> vector<1x384xf32>
    %42 = arith.addf %41, %8 : vector<1x384xf32>
    %43 = vector.extract_strided_slice %6 {offsets = [1, 0], sizes = [1, 384], strides = [1, 1]} : vector<8x384xf32> to vector<1x384xf32>
    %44 = vector.extract_strided_slice %43 {offsets = [0, 0], sizes = [1, 128], strides = [1, 1]} : vector<1x384xf32> to vector<1x128xf32>
    %45 = vector.extract_strided_slice %42 {offsets = [0, 0], sizes = [1, 128], strides = [1, 1]} : vector<1x384xf32> to vector<1x128xf32>
    %46 = arith.addf %44, %45 : vector<1x128xf32>
    %47 = arith.negf %46 : vector<1x128xf32>
    %48 = math.exp %47 : vector<1x128xf32>
    %cst_16 = arith.constant 1.000000e+00 : f32
    %49 = vector.broadcast %cst_16 : f32 to vector<1x128xf32>
    %50 = arith.addf %49, %48 : vector<1x128xf32>
    %51 = arith.divf %49, %50 : vector<1x128xf32>
    %52 = vector.extract_strided_slice %43 {offsets = [0, 128], sizes = [1, 128], strides = [1, 1]} : vector<1x384xf32> to vector<1x128xf32>
    %53 = vector.extract_strided_slice %42 {offsets = [0, 128], sizes = [1, 128], strides = [1, 1]} : vector<1x384xf32> to vector<1x128xf32>
    %54 = arith.addf %52, %53 : vector<1x128xf32>
    %55 = arith.negf %54 : vector<1x128xf32>
    %56 = math.exp %55 : vector<1x128xf32>
    %cst_17 = arith.constant 1.000000e+00 : f32
    %57 = vector.broadcast %cst_17 : f32 to vector<1x128xf32>
    %58 = arith.addf %57, %56 : vector<1x128xf32>
    %59 = arith.divf %57, %58 : vector<1x128xf32>
    %60 = vector.extract_strided_slice %43 {offsets = [0, 256], sizes = [1, 128], strides = [1, 1]} : vector<1x384xf32> to vector<1x128xf32>
    %61 = vector.extract_strided_slice %42 {offsets = [0, 256], sizes = [1, 128], strides = [1, 1]} : vector<1x384xf32> to vector<1x128xf32>
    %62 = arith.mulf %51, %61 : vector<1x128xf32>
    %63 = arith.addf %60, %62 : vector<1x128xf32>
    %64 = math.tanh %63 : vector<1x128xf32>
    %cst_18 = arith.constant 1.000000e+00 : f32
    %65 = vector.broadcast %cst_18 : f32 to vector<1x128xf32>
    %66 = arith.subf %65, %59 : vector<1x128xf32>
    %67 = arith.mulf %66, %64 : vector<1x128xf32>
    %68 = arith.mulf %59, %39 : vector<1x128xf32>
    %69 = arith.addf %67, %68 : vector<1x128xf32>
    %70 = arith.truncf %69 : vector<1x128xf32> to vector<1x128xbf16>
    %cst_19 = arith.constant dense<0.000000e+00> : vector<1x384xf32>
    %71 = tpu.matmul %70, %7, %cst_19 {dimension_numbers = #tpu.dot_dimension_numbers<[1], [0], [0], [1], [0, 0, 1, 1], [], []>} : vector<1x128xbf16>, vector<128x384xbf16>, vector<1x384xf32> -> vector<1x384xf32>
    %72 = arith.addf %71, %8 : vector<1x384xf32>
    %73 = vector.extract_strided_slice %6 {offsets = [2, 0], sizes = [1, 384], strides = [1, 1]} : vector<8x384xf32> to vector<1x384xf32>
    %74 = vector.extract_strided_slice %73 {offsets = [0, 0], sizes = [1, 128], strides = [1, 1]} : vector<1x384xf32> to vector<1x128xf32>
    %75 = vector.extract_strided_slice %72 {offsets = [0, 0], sizes = [1, 128], strides = [1, 1]} : vector<1x384xf32> to vector<1x128xf32>
    %76 = arith.addf %74, %75 : vector<1x128xf32>
    %77 = arith.negf %76 : vector<1x128xf32>
    %78 = math.exp %77 : vector<1x128xf32>
    %cst_20 = arith.constant 1.000000e+00 : f32
    %79 = vector.broadcast %cst_20 : f32 to vector<1x128xf32>
    %80 = arith.addf %79, %78 : vector<1x128xf32>
    %81 = arith.divf %79, %80 : vector<1x128xf32>
    %82 = vector.extract_strided_slice %73 {offsets = [0, 128], sizes = [1, 128], strides = [1, 1]} : vector<1x384xf32> to vector<1x128xf32>
    %83 = vector.extract_strided_slice %72 {offsets = [0, 128], sizes = [1, 128], strides = [1, 1]} : vector<1x384xf32> to vector<1x128xf32>
    %84 = arith.addf %82, %83 : vector<1x128xf32>
    %85 = arith.negf %84 : vector<1x128xf32>
    %86 = math.exp %85 : vector<1x128xf32>
    %cst_21 = arith.constant 1.000000e+00 : f32
    %87 = vector.broadcast %cst_21 : f32 to vector<1x128xf32>
    %88 = arith.addf %87, %86 : vector<1x128xf32>
    %89 = arith.divf %87, %88 : vector<1x128xf32>
    %90 = vector.extract_strided_slice %73 {offsets = [0, 256], sizes = [1, 128], strides = [1, 1]} : vector<1x384xf32> to vector<1x128xf32>
    %91 = vector.extract_strided_slice %72 {offsets = [0, 256], sizes = [1, 128], strides = [1, 1]} : vector<1x384xf32> to vector<1x128xf32>
    %92 = arith.mulf %81, %91 : vector<1x128xf32>
    %93 = arith.addf %90, %92 : vector<1x128xf32>
    %94 = math.tanh %93 : vector<1x128xf32>
    %cst_22 = arith.constant 1.000000e+00 : f32
    %95 = vector.broadcast %cst_22 : f32 to vector<1x128xf32>
    %96 = arith.subf %95, %89 : vector<1x128xf32>
    %97 = arith.mulf %96, %94 : vector<1x128xf32>
    %98 = arith.mulf %89, %69 : vector<1x128xf32>
    %99 = arith.addf %97, %98 : vector<1x128xf32>
    %100 = arith.truncf %99 : vector<1x128xf32> to vector<1x128xbf16>
    %cst_23 = arith.constant dense<0.000000e+00> : vector<1x384xf32>
    %101 = tpu.matmul %100, %7, %cst_23 {dimension_numbers = #tpu.dot_dimension_numbers<[1], [0], [0], [1], [0, 0, 1, 1], [], []>} : vector<1x128xbf16>, vector<128x384xbf16>, vector<1x384xf32> -> vector<1x384xf32>
    %102 = arith.addf %101, %8 : vector<1x384xf32>
    %103 = vector.extract_strided_slice %6 {offsets = [3, 0], sizes = [1, 384], strides = [1, 1]} : vector<8x384xf32> to vector<1x384xf32>
    %104 = vector.extract_strided_slice %103 {offsets = [0, 0], sizes = [1, 128], strides = [1, 1]} : vector<1x384xf32> to vector<1x128xf32>
    %105 = vector.extract_strided_slice %102 {offsets = [0, 0], sizes = [1, 128], strides = [1, 1]} : vector<1x384xf32> to vector<1x128xf32>
    %106 = arith.addf %104, %105 : vector<1x128xf32>
    %107 = arith.negf %106 : vector<1x128xf32>
    %108 = math.exp %107 : vector<1x128xf32>
    %cst_24 = arith.constant 1.000000e+00 : f32
    %109 = vector.broadcast %cst_24 : f32 to vector<1x128xf32>
    %110 = arith.addf %109, %108 : vector<1x128xf32>
    %111 = arith.divf %109, %110 : vector<1x128xf32>
    %112 = vector.extract_strided_slice %103 {offsets = [0, 128], sizes = [1, 128], strides = [1, 1]} : vector<1x384xf32> to vector<1x128xf32>
    %113 = vector.extract_strided_slice %102 {offsets = [0, 128], sizes = [1, 128], strides = [1, 1]} : vector<1x384xf32> to vector<1x128xf32>
    %114 = arith.addf %112, %113 : vector<1x128xf32>
    %115 = arith.negf %114 : vector<1x128xf32>
    %116 = math.exp %115 : vector<1x128xf32>
    %cst_25 = arith.constant 1.000000e+00 : f32
    %117 = vector.broadcast %cst_25 : f32 to vector<1x128xf32>
    %118 = arith.addf %117, %116 : vector<1x128xf32>
    %119 = arith.divf %117, %118 : vector<1x128xf32>
    %120 = vector.extract_strided_slice %103 {offsets = [0, 256], sizes = [1, 128], strides = [1, 1]} : vector<1x384xf32> to vector<1x128xf32>
    %121 = vector.extract_strided_slice %102 {offsets = [0, 256], sizes = [1, 128], strides = [1, 1]} : vector<1x384xf32> to vector<1x128xf32>
    %122 = arith.mulf %111, %121 : vector<1x128xf32>
    %123 = arith.addf %120, %122 : vector<1x128xf32>
    %124 = math.tanh %123 : vector<1x128xf32>
    %cst_26 = arith.constant 1.000000e+00 : f32
    %125 = vector.broadcast %cst_26 : f32 to vector<1x128xf32>
    %126 = arith.subf %125, %119 : vector<1x128xf32>
    %127 = arith.mulf %126, %124 : vector<1x128xf32>
    %128 = arith.mulf %119, %99 : vector<1x128xf32>
    %129 = arith.addf %127, %128 : vector<1x128xf32>
    %130 = arith.truncf %129 : vector<1x128xf32> to vector<1x128xbf16>
    %cst_27 = arith.constant dense<0.000000e+00> : vector<1x384xf32>
    %131 = tpu.matmul %130, %7, %cst_27 {dimension_numbers = #tpu.dot_dimension_numbers<[1], [0], [0], [1], [0, 0, 1, 1], [], []>} : vector<1x128xbf16>, vector<128x384xbf16>, vector<1x384xf32> -> vector<1x384xf32>
    %132 = arith.addf %131, %8 : vector<1x384xf32>
    %133 = vector.extract_strided_slice %6 {offsets = [4, 0], sizes = [1, 384], strides = [1, 1]} : vector<8x384xf32> to vector<1x384xf32>
    %134 = vector.extract_strided_slice %133 {offsets = [0, 0], sizes = [1, 128], strides = [1, 1]} : vector<1x384xf32> to vector<1x128xf32>
    %135 = vector.extract_strided_slice %132 {offsets = [0, 0], sizes = [1, 128], strides = [1, 1]} : vector<1x384xf32> to vector<1x128xf32>
    %136 = arith.addf %134, %135 : vector<1x128xf32>
    %137 = arith.negf %136 : vector<1x128xf32>
    %138 = math.exp %137 : vector<1x128xf32>
    %cst_28 = arith.constant 1.000000e+00 : f32
    %139 = vector.broadcast %cst_28 : f32 to vector<1x128xf32>
    %140 = arith.addf %139, %138 : vector<1x128xf32>
    %141 = arith.divf %139, %140 : vector<1x128xf32>
    %142 = vector.extract_strided_slice %133 {offsets = [0, 128], sizes = [1, 128], strides = [1, 1]} : vector<1x384xf32> to vector<1x128xf32>
    %143 = vector.extract_strided_slice %132 {offsets = [0, 128], sizes = [1, 128], strides = [1, 1]} : vector<1x384xf32> to vector<1x128xf32>
    %144 = arith.addf %142, %143 : vector<1x128xf32>
    %145 = arith.negf %144 : vector<1x128xf32>
    %146 = math.exp %145 : vector<1x128xf32>
    %cst_29 = arith.constant 1.000000e+00 : f32
    %147 = vector.broadcast %cst_29 : f32 to vector<1x128xf32>
    %148 = arith.addf %147, %146 : vector<1x128xf32>
    %149 = arith.divf %147, %148 : vector<1x128xf32>
    %150 = vector.extract_strided_slice %133 {offsets = [0, 256], sizes = [1, 128], strides = [1, 1]} : vector<1x384xf32> to vector<1x128xf32>
    %151 = vector.extract_strided_slice %132 {offsets = [0, 256], sizes = [1, 128], strides = [1, 1]} : vector<1x384xf32> to vector<1x128xf32>
    %152 = arith.mulf %141, %151 : vector<1x128xf32>
    %153 = arith.addf %150, %152 : vector<1x128xf32>
    %154 = math.tanh %153 : vector<1x128xf32>
    %cst_30 = arith.constant 1.000000e+00 : f32
    %155 = vector.broadcast %cst_30 : f32 to vector<1x128xf32>
    %156 = arith.subf %155, %149 : vector<1x128xf32>
    %157 = arith.mulf %156, %154 : vector<1x128xf32>
    %158 = arith.mulf %149, %129 : vector<1x128xf32>
    %159 = arith.addf %157, %158 : vector<1x128xf32>
    %160 = arith.truncf %159 : vector<1x128xf32> to vector<1x128xbf16>
    %cst_31 = arith.constant dense<0.000000e+00> : vector<1x384xf32>
    %161 = tpu.matmul %160, %7, %cst_31 {dimension_numbers = #tpu.dot_dimension_numbers<[1], [0], [0], [1], [0, 0, 1, 1], [], []>} : vector<1x128xbf16>, vector<128x384xbf16>, vector<1x384xf32> -> vector<1x384xf32>
    %162 = arith.addf %161, %8 : vector<1x384xf32>
    %163 = vector.extract_strided_slice %6 {offsets = [5, 0], sizes = [1, 384], strides = [1, 1]} : vector<8x384xf32> to vector<1x384xf32>
    %164 = vector.extract_strided_slice %163 {offsets = [0, 0], sizes = [1, 128], strides = [1, 1]} : vector<1x384xf32> to vector<1x128xf32>
    %165 = vector.extract_strided_slice %162 {offsets = [0, 0], sizes = [1, 128], strides = [1, 1]} : vector<1x384xf32> to vector<1x128xf32>
    %166 = arith.addf %164, %165 : vector<1x128xf32>
    %167 = arith.negf %166 : vector<1x128xf32>
    %168 = math.exp %167 : vector<1x128xf32>
    %cst_32 = arith.constant 1.000000e+00 : f32
    %169 = vector.broadcast %cst_32 : f32 to vector<1x128xf32>
    %170 = arith.addf %169, %168 : vector<1x128xf32>
    %171 = arith.divf %169, %170 : vector<1x128xf32>
    %172 = vector.extract_strided_slice %163 {offsets = [0, 128], sizes = [1, 128], strides = [1, 1]} : vector<1x384xf32> to vector<1x128xf32>
    %173 = vector.extract_strided_slice %162 {offsets = [0, 128], sizes = [1, 128], strides = [1, 1]} : vector<1x384xf32> to vector<1x128xf32>
    %174 = arith.addf %172, %173 : vector<1x128xf32>
    %175 = arith.negf %174 : vector<1x128xf32>
    %176 = math.exp %175 : vector<1x128xf32>
    %cst_33 = arith.constant 1.000000e+00 : f32
    %177 = vector.broadcast %cst_33 : f32 to vector<1x128xf32>
    %178 = arith.addf %177, %176 : vector<1x128xf32>
    %179 = arith.divf %177, %178 : vector<1x128xf32>
    %180 = vector.extract_strided_slice %163 {offsets = [0, 256], sizes = [1, 128], strides = [1, 1]} : vector<1x384xf32> to vector<1x128xf32>
    %181 = vector.extract_strided_slice %162 {offsets = [0, 256], sizes = [1, 128], strides = [1, 1]} : vector<1x384xf32> to vector<1x128xf32>
    %182 = arith.mulf %171, %181 : vector<1x128xf32>
    %183 = arith.addf %180, %182 : vector<1x128xf32>
    %184 = math.tanh %183 : vector<1x128xf32>
    %cst_34 = arith.constant 1.000000e+00 : f32
    %185 = vector.broadcast %cst_34 : f32 to vector<1x128xf32>
    %186 = arith.subf %185, %179 : vector<1x128xf32>
    %187 = arith.mulf %186, %184 : vector<1x128xf32>
    %188 = arith.mulf %179, %159 : vector<1x128xf32>
    %189 = arith.addf %187, %188 : vector<1x128xf32>
    %190 = arith.truncf %189 : vector<1x128xf32> to vector<1x128xbf16>
    %cst_35 = arith.constant dense<0.000000e+00> : vector<1x384xf32>
    %191 = tpu.matmul %190, %7, %cst_35 {dimension_numbers = #tpu.dot_dimension_numbers<[1], [0], [0], [1], [0, 0, 1, 1], [], []>} : vector<1x128xbf16>, vector<128x384xbf16>, vector<1x384xf32> -> vector<1x384xf32>
    %192 = arith.addf %191, %8 : vector<1x384xf32>
    %193 = vector.extract_strided_slice %6 {offsets = [6, 0], sizes = [1, 384], strides = [1, 1]} : vector<8x384xf32> to vector<1x384xf32>
    %194 = vector.extract_strided_slice %193 {offsets = [0, 0], sizes = [1, 128], strides = [1, 1]} : vector<1x384xf32> to vector<1x128xf32>
    %195 = vector.extract_strided_slice %192 {offsets = [0, 0], sizes = [1, 128], strides = [1, 1]} : vector<1x384xf32> to vector<1x128xf32>
    %196 = arith.addf %194, %195 : vector<1x128xf32>
    %197 = arith.negf %196 : vector<1x128xf32>
    %198 = math.exp %197 : vector<1x128xf32>
    %cst_36 = arith.constant 1.000000e+00 : f32
    %199 = vector.broadcast %cst_36 : f32 to vector<1x128xf32>
    %200 = arith.addf %199, %198 : vector<1x128xf32>
    %201 = arith.divf %199, %200 : vector<1x128xf32>
    %202 = vector.extract_strided_slice %193 {offsets = [0, 128], sizes = [1, 128], strides = [1, 1]} : vector<1x384xf32> to vector<1x128xf32>
    %203 = vector.extract_strided_slice %192 {offsets = [0, 128], sizes = [1, 128], strides = [1, 1]} : vector<1x384xf32> to vector<1x128xf32>
    %204 = arith.addf %202, %203 : vector<1x128xf32>
    %205 = arith.negf %204 : vector<1x128xf32>
    %206 = math.exp %205 : vector<1x128xf32>
    %cst_37 = arith.constant 1.000000e+00 : f32
    %207 = vector.broadcast %cst_37 : f32 to vector<1x128xf32>
    %208 = arith.addf %207, %206 : vector<1x128xf32>
    %209 = arith.divf %207, %208 : vector<1x128xf32>
    %210 = vector.extract_strided_slice %193 {offsets = [0, 256], sizes = [1, 128], strides = [1, 1]} : vector<1x384xf32> to vector<1x128xf32>
    %211 = vector.extract_strided_slice %192 {offsets = [0, 256], sizes = [1, 128], strides = [1, 1]} : vector<1x384xf32> to vector<1x128xf32>
    %212 = arith.mulf %201, %211 : vector<1x128xf32>
    %213 = arith.addf %210, %212 : vector<1x128xf32>
    %214 = math.tanh %213 : vector<1x128xf32>
    %cst_38 = arith.constant 1.000000e+00 : f32
    %215 = vector.broadcast %cst_38 : f32 to vector<1x128xf32>
    %216 = arith.subf %215, %209 : vector<1x128xf32>
    %217 = arith.mulf %216, %214 : vector<1x128xf32>
    %218 = arith.mulf %209, %189 : vector<1x128xf32>
    %219 = arith.addf %217, %218 : vector<1x128xf32>
    %220 = arith.truncf %219 : vector<1x128xf32> to vector<1x128xbf16>
    %cst_39 = arith.constant dense<0.000000e+00> : vector<1x384xf32>
    %221 = tpu.matmul %220, %7, %cst_39 {dimension_numbers = #tpu.dot_dimension_numbers<[1], [0], [0], [1], [0, 0, 1, 1], [], []>} : vector<1x128xbf16>, vector<128x384xbf16>, vector<1x384xf32> -> vector<1x384xf32>
    %222 = arith.addf %221, %8 : vector<1x384xf32>
    %223 = vector.extract_strided_slice %6 {offsets = [7, 0], sizes = [1, 384], strides = [1, 1]} : vector<8x384xf32> to vector<1x384xf32>
    %224 = vector.extract_strided_slice %223 {offsets = [0, 0], sizes = [1, 128], strides = [1, 1]} : vector<1x384xf32> to vector<1x128xf32>
    %225 = vector.extract_strided_slice %222 {offsets = [0, 0], sizes = [1, 128], strides = [1, 1]} : vector<1x384xf32> to vector<1x128xf32>
    %226 = arith.addf %224, %225 : vector<1x128xf32>
    %227 = arith.negf %226 : vector<1x128xf32>
    %228 = math.exp %227 : vector<1x128xf32>
    %cst_40 = arith.constant 1.000000e+00 : f32
    %229 = vector.broadcast %cst_40 : f32 to vector<1x128xf32>
    %230 = arith.addf %229, %228 : vector<1x128xf32>
    %231 = arith.divf %229, %230 : vector<1x128xf32>
    %232 = vector.extract_strided_slice %223 {offsets = [0, 128], sizes = [1, 128], strides = [1, 1]} : vector<1x384xf32> to vector<1x128xf32>
    %233 = vector.extract_strided_slice %222 {offsets = [0, 128], sizes = [1, 128], strides = [1, 1]} : vector<1x384xf32> to vector<1x128xf32>
    %234 = arith.addf %232, %233 : vector<1x128xf32>
    %235 = arith.negf %234 : vector<1x128xf32>
    %236 = math.exp %235 : vector<1x128xf32>
    %cst_41 = arith.constant 1.000000e+00 : f32
    %237 = vector.broadcast %cst_41 : f32 to vector<1x128xf32>
    %238 = arith.addf %237, %236 : vector<1x128xf32>
    %239 = arith.divf %237, %238 : vector<1x128xf32>
    %240 = vector.extract_strided_slice %223 {offsets = [0, 256], sizes = [1, 128], strides = [1, 1]} : vector<1x384xf32> to vector<1x128xf32>
    %241 = vector.extract_strided_slice %222 {offsets = [0, 256], sizes = [1, 128], strides = [1, 1]} : vector<1x384xf32> to vector<1x128xf32>
    %242 = arith.mulf %231, %241 : vector<1x128xf32>
    %243 = arith.addf %240, %242 : vector<1x128xf32>
    %244 = math.tanh %243 : vector<1x128xf32>
    %cst_42 = arith.constant 1.000000e+00 : f32
    %245 = vector.broadcast %cst_42 : f32 to vector<1x128xf32>
    %246 = arith.subf %245, %239 : vector<1x128xf32>
    %247 = arith.mulf %246, %244 : vector<1x128xf32>
    %248 = arith.mulf %239, %219 : vector<1x128xf32>
    %249 = arith.addf %247, %248 : vector<1x128xf32>
    %250 = tpu.concatenate %39, %69, %99, %129, %159, %189, %219, %249 in 0 : vector<1x128xf32>, vector<1x128xf32>, vector<1x128xf32>, vector<1x128xf32>, vector<1x128xf32>, vector<1x128xf32>, vector<1x128xf32>, vector<1x128xf32> -> vector<8x128xf32>
    %251 = vector.extract_strided_slice %250 {offsets = [0, 0], sizes = [8, 64], strides = [1, 1]} : vector<8x128xf32> to vector<8x64xf32>
    %252 = arith.truncf %251 : vector<8x64xf32> to vector<8x64xbf16>
    %c0_43 = arith.constant 0 : index
    %c0_44 = arith.constant 0 : index
    %c0_45 = arith.constant 0 : index
    %253 = vector.load %arg6[%c0_43, %c0_44, %c0_45] : memref<2x64x192xbf16, #tpu.memory_space<vmem>>, vector<1x64x192xbf16>
    %254 = vector.shape_cast %253 : vector<1x64x192xbf16> to vector<64x192xbf16>
    %cst_46 = arith.constant dense<0.000000e+00> : vector<8x192xf32>
    %255 = tpu.matmul %252, %254, %cst_46 {dimension_numbers = #tpu.dot_dimension_numbers<[1], [0], [0], [1], [0, 0, 1, 1], [], []>} : vector<8x64xbf16>, vector<64x192xbf16>, vector<8x192xf32> -> vector<8x192xf32>
    %c0_47 = arith.constant 0 : index
    %c0_48 = arith.constant 0 : index
    %c0_49 = arith.constant 0 : index
    %256 = vector.load %arg7[%c0_47, %c0_48, %c0_49] : memref<2x1x192xf32, #tpu.memory_space<vmem>>, vector<1x1x192xf32>
    %257 = vector.shape_cast %256 : vector<1x1x192xf32> to vector<1x192xf32>
    %258 = vector.broadcast %257 : vector<1x192xf32> to vector<8x192xf32>
    %259 = arith.addf %255, %258 : vector<8x192xf32>
    %260 = vector.extract_strided_slice %259 {offsets = [0, 0], sizes = [8, 64], strides = [1, 1]} : vector<8x192xf32> to vector<8x64xf32>
    %261 = vector.extract_strided_slice %260 {offsets = [0, 0], sizes = [8, 16], strides = [1, 1]} : vector<8x64xf32> to vector<8x16xf32>
    %262 = vector.shape_cast %261 : vector<8x16xf32> to vector<1x8x16xf32>
    %263 = vector.extract_strided_slice %260 {offsets = [0, 16], sizes = [8, 16], strides = [1, 1]} : vector<8x64xf32> to vector<8x16xf32>
    %264 = vector.shape_cast %263 : vector<8x16xf32> to vector<1x8x16xf32>
    %265 = vector.extract_strided_slice %260 {offsets = [0, 32], sizes = [8, 16], strides = [1, 1]} : vector<8x64xf32> to vector<8x16xf32>
    %266 = vector.shape_cast %265 : vector<8x16xf32> to vector<1x8x16xf32>
    %267 = vector.extract_strided_slice %260 {offsets = [0, 48], sizes = [8, 16], strides = [1, 1]} : vector<8x64xf32> to vector<8x16xf32>
    %268 = vector.shape_cast %267 : vector<8x16xf32> to vector<1x8x16xf32>
    %269 = tpu.concatenate %262, %264, %266, %268 in 0 : vector<1x8x16xf32>, vector<1x8x16xf32>, vector<1x8x16xf32>, vector<1x8x16xf32> -> vector<4x8x16xf32>
    %270 = arith.truncf %269 : vector<4x8x16xf32> to vector<4x8x16xbf16>
    %271 = vector.extract_strided_slice %259 {offsets = [0, 64], sizes = [8, 64], strides = [1, 1]} : vector<8x192xf32> to vector<8x64xf32>
    %272 = vector.extract_strided_slice %271 {offsets = [0, 0], sizes = [8, 16], strides = [1, 1]} : vector<8x64xf32> to vector<8x16xf32>
    %273 = vector.shape_cast %272 : vector<8x16xf32> to vector<1x8x16xf32>
    %274 = vector.extract_strided_slice %271 {offsets = [0, 16], sizes = [8, 16], strides = [1, 1]} : vector<8x64xf32> to vector<8x16xf32>
    %275 = vector.shape_cast %274 : vector<8x16xf32> to vector<1x8x16xf32>
    %276 = vector.extract_strided_slice %271 {offsets = [0, 32], sizes = [8, 16], strides = [1, 1]} : vector<8x64xf32> to vector<8x16xf32>
    %277 = vector.shape_cast %276 : vector<8x16xf32> to vector<1x8x16xf32>
    %278 = vector.extract_strided_slice %271 {offsets = [0, 48], sizes = [8, 16], strides = [1, 1]} : vector<8x64xf32> to vector<8x16xf32>
    %279 = vector.shape_cast %278 : vector<8x16xf32> to vector<1x8x16xf32>
    %280 = tpu.concatenate %273, %275, %277, %279 in 0 : vector<1x8x16xf32>, vector<1x8x16xf32>, vector<1x8x16xf32>, vector<1x8x16xf32> -> vector<4x8x16xf32>
    %281 = arith.truncf %280 : vector<4x8x16xf32> to vector<4x8x16xbf16>
    %282 = vector.extract_strided_slice %259 {offsets = [0, 128], sizes = [8, 64], strides = [1, 1]} : vector<8x192xf32> to vector<8x64xf32>
    %283 = vector.extract_strided_slice %282 {offsets = [0, 0], sizes = [8, 16], strides = [1, 1]} : vector<8x64xf32> to vector<8x16xf32>
    %284 = vector.shape_cast %283 : vector<8x16xf32> to vector<1x8x16xf32>
    %285 = vector.extract_strided_slice %282 {offsets = [0, 16], sizes = [8, 16], strides = [1, 1]} : vector<8x64xf32> to vector<8x16xf32>
    %286 = vector.shape_cast %285 : vector<8x16xf32> to vector<1x8x16xf32>
    %287 = vector.extract_strided_slice %282 {offsets = [0, 32], sizes = [8, 16], strides = [1, 1]} : vector<8x64xf32> to vector<8x16xf32>
    %288 = vector.shape_cast %287 : vector<8x16xf32> to vector<1x8x16xf32>
    %289 = vector.extract_strided_slice %282 {offsets = [0, 48], sizes = [8, 16], strides = [1, 1]} : vector<8x64xf32> to vector<8x16xf32>
    %290 = vector.shape_cast %289 : vector<8x16xf32> to vector<1x8x16xf32>
    %291 = tpu.concatenate %284, %286, %288, %290 in 0 : vector<1x8x16xf32>, vector<1x8x16xf32>, vector<1x8x16xf32>, vector<1x8x16xf32> -> vector<4x8x16xf32>
    %292 = arith.truncf %291 : vector<4x8x16xf32> to vector<4x8x16xbf16>
    "tpu.trace_start"() <{level = 10 : i32, message = "hqd,hkd->hqk"}> : () -> ()
    %cst_50 = arith.constant dense<0.000000e+00> : vector<4x8x8xf32>
    %293 = tpu.matmul %270, %281, %cst_50 {dimension_numbers = #tpu.dot_dimension_numbers<[2], [2], [1], [1], [0, 0, 0, 1, 1, 1], [0], [0]>} : vector<4x8x16xbf16>, vector<4x8x16xbf16>, vector<4x8x8xf32> -> vector<4x8x8xf32>
    "tpu.trace_stop"() : () -> ()
    %cst_51 = arith.constant dense<0xFF800000> : vector<4x8xf32>
    %294 = vector.multi_reduction <maximumf>, %293, %cst_51 [2] : vector<4x8x8xf32> to vector<4x8xf32>
    %295 = vector.shape_cast %294 : vector<4x8xf32> to vector<4x8x1xf32>
    %296 = vector.broadcast %295 : vector<4x8x1xf32> to vector<4x8x8xf32>
    %297 = arith.subf %293, %296 : vector<4x8x8xf32>
    %298 = math.exp %297 : vector<4x8x8xf32>
    %cst_52 = arith.constant dense<0.000000e+00> : vector<4x8xf32>
    %299 = vector.multi_reduction <add>, %298, %cst_52 [2] : vector<4x8x8xf32> to vector<4x8xf32>
    %300 = vector.shape_cast %299 : vector<4x8xf32> to vector<4x8x1xf32>
    %301 = tpu.reciprocal %300 : vector<4x8x1xf32> -> vector<4x8x1xf32>
    %302 = vector.broadcast %301 : vector<4x8x1xf32> to vector<4x8x8xf32>
    %303 = arith.mulf %298, %302 : vector<4x8x8xf32>
    %304 = arith.truncf %303 : vector<4x8x8xf32> to vector<4x8x8xbf16>
    "tpu.trace_start"() <{level = 10 : i32, message = "hqk,hkd->hqd"}> : () -> ()
    %cst_53 = arith.constant dense<0.000000e+00> : vector<4x8x16xf32>
    %305 = tpu.matmul %304, %292, %cst_53 {dimension_numbers = #tpu.dot_dimension_numbers<[2], [1], [1], [2], [0, 0, 0, 1, 1, 2], [0], [0]>} : vector<4x8x8xbf16>, vector<4x8x16xbf16>, vector<4x8x16xf32> -> vector<4x8x16xf32>
    "tpu.trace_stop"() : () -> ()
    %306 = vector.extract_strided_slice %305 {offsets = [0, 0, 0], sizes = [1, 8, 16], strides = [1, 1, 1]} : vector<4x8x16xf32> to vector<1x8x16xf32>
    %307 = vector.shape_cast %306 : vector<1x8x16xf32> to vector<8x16xf32>
    %308 = vector.extract_strided_slice %305 {offsets = [1, 0, 0], sizes = [1, 8, 16], strides = [1, 1, 1]} : vector<4x8x16xf32> to vector<1x8x16xf32>
    %309 = vector.shape_cast %308 : vector<1x8x16xf32> to vector<8x16xf32>
    %310 = vector.extract_strided_slice %305 {offsets = [2, 0, 0], sizes = [1, 8, 16], strides = [1, 1, 1]} : vector<4x8x16xf32> to vector<1x8x16xf32>
    %311 = vector.shape_cast %310 : vector<1x8x16xf32> to vector<8x16xf32>
    %312 = vector.extract_strided_slice %305 {offsets = [3, 0, 0], sizes = [1, 8, 16], strides = [1, 1, 1]} : vector<4x8x16xf32> to vector<1x8x16xf32>
    %313 = vector.shape_cast %312 : vector<1x8x16xf32> to vector<8x16xf32>
    %314 = tpu.concatenate %307, %309, %311, %313 in 1 : vector<8x16xf32>, vector<8x16xf32>, vector<8x16xf32>, vector<8x16xf32> -> vector<8x64xf32>
    %315 = arith.truncf %314 : vector<8x64xf32> to vector<8x64xbf16>
    %c0_54 = arith.constant 0 : index
    %c0_55 = arith.constant 0 : index
    %c0_56 = arith.constant 0 : index
    %316 = vector.load %arg8[%c0_54, %c0_55, %c0_56] : memref<2x64x64xbf16, #tpu.memory_space<vmem>>, vector<1x64x64xbf16>
    %317 = vector.shape_cast %316 : vector<1x64x64xbf16> to vector<64x64xbf16>
    %cst_57 = arith.constant dense<0.000000e+00> : vector<8x64xf32>
    %318 = tpu.matmul %315, %317, %cst_57 {dimension_numbers = #tpu.dot_dimension_numbers<[1], [0], [0], [1], [0, 0, 1, 1], [], []>} : vector<8x64xbf16>, vector<64x64xbf16>, vector<8x64xf32> -> vector<8x64xf32>
    %c0_58 = arith.constant 0 : index
    %c0_59 = arith.constant 0 : index
    %c0_60 = arith.constant 0 : index
    %319 = vector.load %arg9[%c0_58, %c0_59, %c0_60] : memref<2x1x64xf32, #tpu.memory_space<vmem>>, vector<1x1x64xf32>
    %320 = vector.shape_cast %319 : vector<1x1x64xf32> to vector<1x64xf32>
    %321 = vector.broadcast %320 : vector<1x64xf32> to vector<8x64xf32>
    %322 = arith.addf %318, %321 : vector<8x64xf32>
    %323 = arith.addf %251, %322 : vector<8x64xf32>
    %c0_61 = arith.constant 0 : index
    %c0_62 = arith.constant 0 : index
    %c0_63 = arith.constant 0 : index
    %324 = vector.load %arg10[%c0_61, %c0_62, %c0_63] : memref<2x1x64xf32, #tpu.memory_space<vmem>>, vector<1x1x64xf32>
    %325 = vector.shape_cast %324 : vector<1x1x64xf32> to vector<1x64xf32>
    %c0_64 = arith.constant 0 : index
    %c0_65 = arith.constant 0 : index
    %c0_66 = arith.constant 0 : index
    %326 = vector.load %arg11[%c0_64, %c0_65, %c0_66] : memref<2x1x64xf32, #tpu.memory_space<vmem>>, vector<1x1x64xf32>
    %327 = vector.shape_cast %326 : vector<1x1x64xf32> to vector<1x64xf32>
    %cst_67 = arith.constant dense<0.000000e+00> : vector<8xf32>
    %328 = vector.multi_reduction <add>, %323, %cst_67 [1] : vector<8x64xf32> to vector<8xf32>
    %329 = vector.shape_cast %328 : vector<8xf32> to vector<8x1xf32>
    %cst_68 = arith.constant 6.400000e+01 : f32
    %330 = vector.broadcast %cst_68 : f32 to vector<8x1xf32>
    %331 = arith.divf %329, %330 : vector<8x1xf32>
    %332 = vector.broadcast %331 : vector<8x1xf32> to vector<8x64xf32>
    %333 = arith.subf %323, %332 : vector<8x64xf32>
    %334 = arith.mulf %333, %333 : vector<8x64xf32>
    %cst_69 = arith.constant dense<0.000000e+00> : vector<8xf32>
    %335 = vector.multi_reduction <add>, %334, %cst_69 [1] : vector<8x64xf32> to vector<8xf32>
    %336 = vector.shape_cast %335 : vector<8xf32> to vector<8x1xf32>
    %cst_70 = arith.constant 6.400000e+01 : f32
    %337 = vector.broadcast %cst_70 : f32 to vector<8x1xf32>
    %338 = arith.divf %336, %337 : vector<8x1xf32>
    %339 = vector.broadcast %331 : vector<8x1xf32> to vector<8x64xf32>
    %340 = arith.subf %323, %339 : vector<8x64xf32>
    %cst_71 = arith.constant 9.99999974E-6 : f32
    %341 = vector.broadcast %cst_71 : f32 to vector<8x1xf32>
    %342 = arith.addf %338, %341 : vector<8x1xf32>
    %343 = math.rsqrt %342 : vector<8x1xf32>
    %344 = vector.broadcast %343 : vector<8x1xf32> to vector<8x64xf32>
    %345 = arith.mulf %340, %344 : vector<8x64xf32>
    %346 = vector.broadcast %325 : vector<1x64xf32> to vector<8x64xf32>
    %347 = arith.mulf %345, %346 : vector<8x64xf32>
    %348 = vector.broadcast %327 : vector<1x64xf32> to vector<8x64xf32>
    %349 = arith.addf %347, %348 : vector<8x64xf32>
    %350 = arith.truncf %349 : vector<8x64xf32> to vector<8x64xbf16>
    %c0_72 = arith.constant 0 : index
    %c0_73 = arith.constant 0 : index
    %c0_74 = arith.constant 0 : index
    %351 = vector.load %arg12[%c0_72, %c0_73, %c0_74] : memref<2x64x64xbf16, #tpu.memory_space<vmem>>, vector<1x64x64xbf16>
    %352 = vector.shape_cast %351 : vector<1x64x64xbf16> to vector<64x64xbf16>
    %cst_75 = arith.constant dense<0.000000e+00> : vector<8x64xf32>
    %353 = tpu.matmul %350, %352, %cst_75 {dimension_numbers = #tpu.dot_dimension_numbers<[1], [0], [0], [1], [0, 0, 1, 1], [], []>} : vector<8x64xbf16>, vector<64x64xbf16>, vector<8x64xf32> -> vector<8x64xf32>
    %c0_76 = arith.constant 0 : index
    %c0_77 = arith.constant 0 : index
    %c0_78 = arith.constant 0 : index
    %354 = vector.load %arg13[%c0_76, %c0_77, %c0_78] : memref<2x1x64xf32, #tpu.memory_space<vmem>>, vector<1x1x64xf32>
    %355 = vector.shape_cast %354 : vector<1x1x64xf32> to vector<1x64xf32>
    %356 = vector.broadcast %355 : vector<1x64xf32> to vector<8x64xf32>
    %357 = arith.addf %353, %356 : vector<8x64xf32>
    %cst_79 = arith.constant 0.000000e+00 : f32
    %358 = vector.broadcast %cst_79 : f32 to vector<8x64xf32>
    %359 = arith.maximumf %357, %358 : vector<8x64xf32>
    %360 = arith.truncf %359 : vector<8x64xf32> to vector<8x64xbf16>
    %c0_80 = arith.constant 0 : index
    %c0_81 = arith.constant 0 : index
    %c0_82 = arith.constant 0 : index
    %361 = vector.load %arg14[%c0_80, %c0_81, %c0_82] : memref<2x64x64xbf16, #tpu.memory_space<vmem>>, vector<1x64x64xbf16>
    %362 = vector.shape_cast %361 : vector<1x64x64xbf16> to vector<64x64xbf16>
    %cst_83 = arith.constant dense<0.000000e+00> : vector<8x64xf32>
    %363 = tpu.matmul %360, %362, %cst_83 {dimension_numbers = #tpu.dot_dimension_numbers<[1], [0], [0], [1], [0, 0, 1, 1], [], []>} : vector<8x64xbf16>, vector<64x64xbf16>, vector<8x64xf32> -> vector<8x64xf32>
    %c0_84 = arith.constant 0 : index
    %c0_85 = arith.constant 0 : index
    %c0_86 = arith.constant 0 : index
    %364 = vector.load %arg15[%c0_84, %c0_85, %c0_86] : memref<2x1x64xf32, #tpu.memory_space<vmem>>, vector<1x1x64xf32>
    %365 = vector.shape_cast %364 : vector<1x1x64xf32> to vector<1x64xf32>
    %366 = vector.broadcast %365 : vector<1x64xf32> to vector<8x64xf32>
    %367 = arith.addf %363, %366 : vector<8x64xf32>
    %368 = arith.addf %349, %367 : vector<8x64xf32>
    %c0_87 = arith.constant 0 : index
    %c0_88 = arith.constant 0 : index
    %c0_89 = arith.constant 0 : index
    %369 = vector.load %arg16[%c0_87, %c0_88, %c0_89] : memref<2x1x64xf32, #tpu.memory_space<vmem>>, vector<1x1x64xf32>
    %370 = vector.shape_cast %369 : vector<1x1x64xf32> to vector<1x64xf32>
    %c0_90 = arith.constant 0 : index
    %c0_91 = arith.constant 0 : index
    %c0_92 = arith.constant 0 : index
    %371 = vector.load %arg17[%c0_90, %c0_91, %c0_92] : memref<2x1x64xf32, #tpu.memory_space<vmem>>, vector<1x1x64xf32>
    %372 = vector.shape_cast %371 : vector<1x1x64xf32> to vector<1x64xf32>
    %cst_93 = arith.constant dense<0.000000e+00> : vector<8xf32>
    %373 = vector.multi_reduction <add>, %368, %cst_93 [1] : vector<8x64xf32> to vector<8xf32>
    %374 = vector.shape_cast %373 : vector<8xf32> to vector<8x1xf32>
    %cst_94 = arith.constant 6.400000e+01 : f32
    %375 = vector.broadcast %cst_94 : f32 to vector<8x1xf32>
    %376 = arith.divf %374, %375 : vector<8x1xf32>
    %377 = vector.broadcast %376 : vector<8x1xf32> to vector<8x64xf32>
    %378 = arith.subf %368, %377 : vector<8x64xf32>
    %379 = arith.mulf %378, %378 : vector<8x64xf32>
    %cst_95 = arith.constant dense<0.000000e+00> : vector<8xf32>
    %380 = vector.multi_reduction <add>, %379, %cst_95 [1] : vector<8x64xf32> to vector<8xf32>
    %381 = vector.shape_cast %380 : vector<8xf32> to vector<8x1xf32>
    %cst_96 = arith.constant 6.400000e+01 : f32
    %382 = vector.broadcast %cst_96 : f32 to vector<8x1xf32>
    %383 = arith.divf %381, %382 : vector<8x1xf32>
    %384 = vector.broadcast %376 : vector<8x1xf32> to vector<8x64xf32>
    %385 = arith.subf %368, %384 : vector<8x64xf32>
    %cst_97 = arith.constant 9.99999974E-6 : f32
    %386 = vector.broadcast %cst_97 : f32 to vector<8x1xf32>
    %387 = arith.addf %383, %386 : vector<8x1xf32>
    %388 = math.rsqrt %387 : vector<8x1xf32>
    %389 = vector.broadcast %388 : vector<8x1xf32> to vector<8x64xf32>
    %390 = arith.mulf %385, %389 : vector<8x64xf32>
    %391 = vector.broadcast %370 : vector<1x64xf32> to vector<8x64xf32>
    %392 = arith.mulf %390, %391 : vector<8x64xf32>
    %393 = vector.broadcast %372 : vector<1x64xf32> to vector<8x64xf32>
    %394 = arith.addf %392, %393 : vector<8x64xf32>
    %395 = arith.truncf %394 : vector<8x64xf32> to vector<8x64xbf16>
    %c1 = arith.constant 1 : index
    %c0_98 = arith.constant 0 : index
    %c0_99 = arith.constant 0 : index
    %396 = vector.load %arg6[%c1, %c0_98, %c0_99] : memref<2x64x192xbf16, #tpu.memory_space<vmem>>, vector<1x64x192xbf16>
    %397 = vector.shape_cast %396 : vector<1x64x192xbf16> to vector<64x192xbf16>
    %cst_100 = arith.constant dense<0.000000e+00> : vector<8x192xf32>
    %398 = tpu.matmul %395, %397, %cst_100 {dimension_numbers = #tpu.dot_dimension_numbers<[1], [0], [0], [1], [0, 0, 1, 1], [], []>} : vector<8x64xbf16>, vector<64x192xbf16>, vector<8x192xf32> -> vector<8x192xf32>
    %c1_101 = arith.constant 1 : index
    %c0_102 = arith.constant 0 : index
    %c0_103 = arith.constant 0 : index
    %399 = vector.load %arg7[%c1_101, %c0_102, %c0_103] : memref<2x1x192xf32, #tpu.memory_space<vmem>>, vector<1x1x192xf32>
    %400 = vector.shape_cast %399 : vector<1x1x192xf32> to vector<1x192xf32>
    %401 = vector.broadcast %400 : vector<1x192xf32> to vector<8x192xf32>
    %402 = arith.addf %398, %401 : vector<8x192xf32>
    %403 = vector.extract_strided_slice %402 {offsets = [0, 0], sizes = [8, 64], strides = [1, 1]} : vector<8x192xf32> to vector<8x64xf32>
    %404 = vector.extract_strided_slice %403 {offsets = [0, 0], sizes = [8, 16], strides = [1, 1]} : vector<8x64xf32> to vector<8x16xf32>
    %405 = vector.shape_cast %404 : vector<8x16xf32> to vector<1x8x16xf32>
    %406 = vector.extract_strided_slice %403 {offsets = [0, 16], sizes = [8, 16], strides = [1, 1]} : vector<8x64xf32> to vector<8x16xf32>
    %407 = vector.shape_cast %406 : vector<8x16xf32> to vector<1x8x16xf32>
    %408 = vector.extract_strided_slice %403 {offsets = [0, 32], sizes = [8, 16], strides = [1, 1]} : vector<8x64xf32> to vector<8x16xf32>
    %409 = vector.shape_cast %408 : vector<8x16xf32> to vector<1x8x16xf32>
    %410 = vector.extract_strided_slice %403 {offsets = [0, 48], sizes = [8, 16], strides = [1, 1]} : vector<8x64xf32> to vector<8x16xf32>
    %411 = vector.shape_cast %410 : vector<8x16xf32> to vector<1x8x16xf32>
    %412 = tpu.concatenate %405, %407, %409, %411 in 0 : vector<1x8x16xf32>, vector<1x8x16xf32>, vector<1x8x16xf32>, vector<1x8x16xf32> -> vector<4x8x16xf32>
    %413 = arith.truncf %412 : vector<4x8x16xf32> to vector<4x8x16xbf16>
    %414 = vector.extract_strided_slice %402 {offsets = [0, 64], sizes = [8, 64], strides = [1, 1]} : vector<8x192xf32> to vector<8x64xf32>
    %415 = vector.extract_strided_slice %414 {offsets = [0, 0], sizes = [8, 16], strides = [1, 1]} : vector<8x64xf32> to vector<8x16xf32>
    %416 = vector.shape_cast %415 : vector<8x16xf32> to vector<1x8x16xf32>
    %417 = vector.extract_strided_slice %414 {offsets = [0, 16], sizes = [8, 16], strides = [1, 1]} : vector<8x64xf32> to vector<8x16xf32>
    %418 = vector.shape_cast %417 : vector<8x16xf32> to vector<1x8x16xf32>
    %419 = vector.extract_strided_slice %414 {offsets = [0, 32], sizes = [8, 16], strides = [1, 1]} : vector<8x64xf32> to vector<8x16xf32>
    %420 = vector.shape_cast %419 : vector<8x16xf32> to vector<1x8x16xf32>
    %421 = vector.extract_strided_slice %414 {offsets = [0, 48], sizes = [8, 16], strides = [1, 1]} : vector<8x64xf32> to vector<8x16xf32>
    %422 = vector.shape_cast %421 : vector<8x16xf32> to vector<1x8x16xf32>
    %423 = tpu.concatenate %416, %418, %420, %422 in 0 : vector<1x8x16xf32>, vector<1x8x16xf32>, vector<1x8x16xf32>, vector<1x8x16xf32> -> vector<4x8x16xf32>
    %424 = arith.truncf %423 : vector<4x8x16xf32> to vector<4x8x16xbf16>
    %425 = vector.extract_strided_slice %402 {offsets = [0, 128], sizes = [8, 64], strides = [1, 1]} : vector<8x192xf32> to vector<8x64xf32>
    %426 = vector.extract_strided_slice %425 {offsets = [0, 0], sizes = [8, 16], strides = [1, 1]} : vector<8x64xf32> to vector<8x16xf32>
    %427 = vector.shape_cast %426 : vector<8x16xf32> to vector<1x8x16xf32>
    %428 = vector.extract_strided_slice %425 {offsets = [0, 16], sizes = [8, 16], strides = [1, 1]} : vector<8x64xf32> to vector<8x16xf32>
    %429 = vector.shape_cast %428 : vector<8x16xf32> to vector<1x8x16xf32>
    %430 = vector.extract_strided_slice %425 {offsets = [0, 32], sizes = [8, 16], strides = [1, 1]} : vector<8x64xf32> to vector<8x16xf32>
    %431 = vector.shape_cast %430 : vector<8x16xf32> to vector<1x8x16xf32>
    %432 = vector.extract_strided_slice %425 {offsets = [0, 48], sizes = [8, 16], strides = [1, 1]} : vector<8x64xf32> to vector<8x16xf32>
    %433 = vector.shape_cast %432 : vector<8x16xf32> to vector<1x8x16xf32>
    %434 = tpu.concatenate %427, %429, %431, %433 in 0 : vector<1x8x16xf32>, vector<1x8x16xf32>, vector<1x8x16xf32>, vector<1x8x16xf32> -> vector<4x8x16xf32>
    %435 = arith.truncf %434 : vector<4x8x16xf32> to vector<4x8x16xbf16>
    "tpu.trace_start"() <{level = 10 : i32, message = "hqd,hkd->hqk"}> : () -> ()
    %cst_104 = arith.constant dense<0.000000e+00> : vector<4x8x8xf32>
    %436 = tpu.matmul %413, %424, %cst_104 {dimension_numbers = #tpu.dot_dimension_numbers<[2], [2], [1], [1], [0, 0, 0, 1, 1, 1], [0], [0]>} : vector<4x8x16xbf16>, vector<4x8x16xbf16>, vector<4x8x8xf32> -> vector<4x8x8xf32>
    "tpu.trace_stop"() : () -> ()
    %cst_105 = arith.constant dense<0xFF800000> : vector<4x8xf32>
    %437 = vector.multi_reduction <maximumf>, %436, %cst_105 [2] : vector<4x8x8xf32> to vector<4x8xf32>
    %438 = vector.shape_cast %437 : vector<4x8xf32> to vector<4x8x1xf32>
    %439 = vector.broadcast %438 : vector<4x8x1xf32> to vector<4x8x8xf32>
    %440 = arith.subf %436, %439 : vector<4x8x8xf32>
    %441 = math.exp %440 : vector<4x8x8xf32>
    %cst_106 = arith.constant dense<0.000000e+00> : vector<4x8xf32>
    %442 = vector.multi_reduction <add>, %441, %cst_106 [2] : vector<4x8x8xf32> to vector<4x8xf32>
    %443 = vector.shape_cast %442 : vector<4x8xf32> to vector<4x8x1xf32>
    %444 = tpu.reciprocal %443 : vector<4x8x1xf32> -> vector<4x8x1xf32>
    %445 = vector.broadcast %444 : vector<4x8x1xf32> to vector<4x8x8xf32>
    %446 = arith.mulf %441, %445 : vector<4x8x8xf32>
    %447 = arith.truncf %446 : vector<4x8x8xf32> to vector<4x8x8xbf16>
    "tpu.trace_start"() <{level = 10 : i32, message = "hqk,hkd->hqd"}> : () -> ()
    %cst_107 = arith.constant dense<0.000000e+00> : vector<4x8x16xf32>
    %448 = tpu.matmul %447, %435, %cst_107 {dimension_numbers = #tpu.dot_dimension_numbers<[2], [1], [1], [2], [0, 0, 0, 1, 1, 2], [0], [0]>} : vector<4x8x8xbf16>, vector<4x8x16xbf16>, vector<4x8x16xf32> -> vector<4x8x16xf32>
    "tpu.trace_stop"() : () -> ()
    %449 = vector.extract_strided_slice %448 {offsets = [0, 0, 0], sizes = [1, 8, 16], strides = [1, 1, 1]} : vector<4x8x16xf32> to vector<1x8x16xf32>
    %450 = vector.shape_cast %449 : vector<1x8x16xf32> to vector<8x16xf32>
    %451 = vector.extract_strided_slice %448 {offsets = [1, 0, 0], sizes = [1, 8, 16], strides = [1, 1, 1]} : vector<4x8x16xf32> to vector<1x8x16xf32>
    %452 = vector.shape_cast %451 : vector<1x8x16xf32> to vector<8x16xf32>
    %453 = vector.extract_strided_slice %448 {offsets = [2, 0, 0], sizes = [1, 8, 16], strides = [1, 1, 1]} : vector<4x8x16xf32> to vector<1x8x16xf32>
    %454 = vector.shape_cast %453 : vector<1x8x16xf32> to vector<8x16xf32>
    %455 = vector.extract_strided_slice %448 {offsets = [3, 0, 0], sizes = [1, 8, 16], strides = [1, 1, 1]} : vector<4x8x16xf32> to vector<1x8x16xf32>
    %456 = vector.shape_cast %455 : vector<1x8x16xf32> to vector<8x16xf32>
    %457 = tpu.concatenate %450, %452, %454, %456 in 1 : vector<8x16xf32>, vector<8x16xf32>, vector<8x16xf32>, vector<8x16xf32> -> vector<8x64xf32>
    %458 = arith.truncf %457 : vector<8x64xf32> to vector<8x64xbf16>
    %c1_108 = arith.constant 1 : index
    %c0_109 = arith.constant 0 : index
    %c0_110 = arith.constant 0 : index
    %459 = vector.load %arg8[%c1_108, %c0_109, %c0_110] : memref<2x64x64xbf16, #tpu.memory_space<vmem>>, vector<1x64x64xbf16>
    %460 = vector.shape_cast %459 : vector<1x64x64xbf16> to vector<64x64xbf16>
    %cst_111 = arith.constant dense<0.000000e+00> : vector<8x64xf32>
    %461 = tpu.matmul %458, %460, %cst_111 {dimension_numbers = #tpu.dot_dimension_numbers<[1], [0], [0], [1], [0, 0, 1, 1], [], []>} : vector<8x64xbf16>, vector<64x64xbf16>, vector<8x64xf32> -> vector<8x64xf32>
    %c1_112 = arith.constant 1 : index
    %c0_113 = arith.constant 0 : index
    %c0_114 = arith.constant 0 : index
    %462 = vector.load %arg9[%c1_112, %c0_113, %c0_114] : memref<2x1x64xf32, #tpu.memory_space<vmem>>, vector<1x1x64xf32>
    %463 = vector.shape_cast %462 : vector<1x1x64xf32> to vector<1x64xf32>
    %464 = vector.broadcast %463 : vector<1x64xf32> to vector<8x64xf32>
    %465 = arith.addf %461, %464 : vector<8x64xf32>
    %466 = arith.addf %394, %465 : vector<8x64xf32>
    %c1_115 = arith.constant 1 : index
    %c0_116 = arith.constant 0 : index
    %c0_117 = arith.constant 0 : index
    %467 = vector.load %arg10[%c1_115, %c0_116, %c0_117] : memref<2x1x64xf32, #tpu.memory_space<vmem>>, vector<1x1x64xf32>
    %468 = vector.shape_cast %467 : vector<1x1x64xf32> to vector<1x64xf32>
    %c1_118 = arith.constant 1 : index
    %c0_119 = arith.constant 0 : index
    %c0_120 = arith.constant 0 : index
    %469 = vector.load %arg11[%c1_118, %c0_119, %c0_120] : memref<2x1x64xf32, #tpu.memory_space<vmem>>, vector<1x1x64xf32>
    %470 = vector.shape_cast %469 : vector<1x1x64xf32> to vector<1x64xf32>
    %cst_121 = arith.constant dense<0.000000e+00> : vector<8xf32>
    %471 = vector.multi_reduction <add>, %466, %cst_121 [1] : vector<8x64xf32> to vector<8xf32>
    %472 = vector.shape_cast %471 : vector<8xf32> to vector<8x1xf32>
    %cst_122 = arith.constant 6.400000e+01 : f32
    %473 = vector.broadcast %cst_122 : f32 to vector<8x1xf32>
    %474 = arith.divf %472, %473 : vector<8x1xf32>
    %475 = vector.broadcast %474 : vector<8x1xf32> to vector<8x64xf32>
    %476 = arith.subf %466, %475 : vector<8x64xf32>
    %477 = arith.mulf %476, %476 : vector<8x64xf32>
    %cst_123 = arith.constant dense<0.000000e+00> : vector<8xf32>
    %478 = vector.multi_reduction <add>, %477, %cst_123 [1] : vector<8x64xf32> to vector<8xf32>
    %479 = vector.shape_cast %478 : vector<8xf32> to vector<8x1xf32>
    %cst_124 = arith.constant 6.400000e+01 : f32
    %480 = vector.broadcast %cst_124 : f32 to vector<8x1xf32>
    %481 = arith.divf %479, %480 : vector<8x1xf32>
    %482 = vector.broadcast %474 : vector<8x1xf32> to vector<8x64xf32>
    %483 = arith.subf %466, %482 : vector<8x64xf32>
    %cst_125 = arith.constant 9.99999974E-6 : f32
    %484 = vector.broadcast %cst_125 : f32 to vector<8x1xf32>
    %485 = arith.addf %481, %484 : vector<8x1xf32>
    %486 = math.rsqrt %485 : vector<8x1xf32>
    %487 = vector.broadcast %486 : vector<8x1xf32> to vector<8x64xf32>
    %488 = arith.mulf %483, %487 : vector<8x64xf32>
    %489 = vector.broadcast %468 : vector<1x64xf32> to vector<8x64xf32>
    %490 = arith.mulf %488, %489 : vector<8x64xf32>
    %491 = vector.broadcast %470 : vector<1x64xf32> to vector<8x64xf32>
    %492 = arith.addf %490, %491 : vector<8x64xf32>
    %493 = arith.truncf %492 : vector<8x64xf32> to vector<8x64xbf16>
    %c1_126 = arith.constant 1 : index
    %c0_127 = arith.constant 0 : index
    %c0_128 = arith.constant 0 : index
    %494 = vector.load %arg12[%c1_126, %c0_127, %c0_128] : memref<2x64x64xbf16, #tpu.memory_space<vmem>>, vector<1x64x64xbf16>
    %495 = vector.shape_cast %494 : vector<1x64x64xbf16> to vector<64x64xbf16>
    %cst_129 = arith.constant dense<0.000000e+00> : vector<8x64xf32>
    %496 = tpu.matmul %493, %495, %cst_129 {dimension_numbers = #tpu.dot_dimension_numbers<[1], [0], [0], [1], [0, 0, 1, 1], [], []>} : vector<8x64xbf16>, vector<64x64xbf16>, vector<8x64xf32> -> vector<8x64xf32>
    %c1_130 = arith.constant 1 : index
    %c0_131 = arith.constant 0 : index
    %c0_132 = arith.constant 0 : index
    %497 = vector.load %arg13[%c1_130, %c0_131, %c0_132] : memref<2x1x64xf32, #tpu.memory_space<vmem>>, vector<1x1x64xf32>
    %498 = vector.shape_cast %497 : vector<1x1x64xf32> to vector<1x64xf32>
    %499 = vector.broadcast %498 : vector<1x64xf32> to vector<8x64xf32>
    %500 = arith.addf %496, %499 : vector<8x64xf32>
    %cst_133 = arith.constant 0.000000e+00 : f32
    %501 = vector.broadcast %cst_133 : f32 to vector<8x64xf32>
    %502 = arith.maximumf %500, %501 : vector<8x64xf32>
    %503 = arith.truncf %502 : vector<8x64xf32> to vector<8x64xbf16>
    %c1_134 = arith.constant 1 : index
    %c0_135 = arith.constant 0 : index
    %c0_136 = arith.constant 0 : index
    %504 = vector.load %arg14[%c1_134, %c0_135, %c0_136] : memref<2x64x64xbf16, #tpu.memory_space<vmem>>, vector<1x64x64xbf16>
    %505 = vector.shape_cast %504 : vector<1x64x64xbf16> to vector<64x64xbf16>
    %cst_137 = arith.constant dense<0.000000e+00> : vector<8x64xf32>
    %506 = tpu.matmul %503, %505, %cst_137 {dimension_numbers = #tpu.dot_dimension_numbers<[1], [0], [0], [1], [0, 0, 1, 1], [], []>} : vector<8x64xbf16>, vector<64x64xbf16>, vector<8x64xf32> -> vector<8x64xf32>
    %c1_138 = arith.constant 1 : index
    %c0_139 = arith.constant 0 : index
    %c0_140 = arith.constant 0 : index
    %507 = vector.load %arg15[%c1_138, %c0_139, %c0_140] : memref<2x1x64xf32, #tpu.memory_space<vmem>>, vector<1x1x64xf32>
    %508 = vector.shape_cast %507 : vector<1x1x64xf32> to vector<1x64xf32>
    %509 = vector.broadcast %508 : vector<1x64xf32> to vector<8x64xf32>
    %510 = arith.addf %506, %509 : vector<8x64xf32>
    %511 = arith.addf %492, %510 : vector<8x64xf32>
    %c1_141 = arith.constant 1 : index
    %c0_142 = arith.constant 0 : index
    %c0_143 = arith.constant 0 : index
    %512 = vector.load %arg16[%c1_141, %c0_142, %c0_143] : memref<2x1x64xf32, #tpu.memory_space<vmem>>, vector<1x1x64xf32>
    %513 = vector.shape_cast %512 : vector<1x1x64xf32> to vector<1x64xf32>
    %c1_144 = arith.constant 1 : index
    %c0_145 = arith.constant 0 : index
    %c0_146 = arith.constant 0 : index
    %514 = vector.load %arg17[%c1_144, %c0_145, %c0_146] : memref<2x1x64xf32, #tpu.memory_space<vmem>>, vector<1x1x64xf32>
    %515 = vector.shape_cast %514 : vector<1x1x64xf32> to vector<1x64xf32>
    %cst_147 = arith.constant dense<0.000000e+00> : vector<8xf32>
    %516 = vector.multi_reduction <add>, %511, %cst_147 [1] : vector<8x64xf32> to vector<8xf32>
    %517 = vector.shape_cast %516 : vector<8xf32> to vector<8x1xf32>
    %cst_148 = arith.constant 6.400000e+01 : f32
    %518 = vector.broadcast %cst_148 : f32 to vector<8x1xf32>
    %519 = arith.divf %517, %518 : vector<8x1xf32>
    %520 = vector.broadcast %519 : vector<8x1xf32> to vector<8x64xf32>
    %521 = arith.subf %511, %520 : vector<8x64xf32>
    %522 = arith.mulf %521, %521 : vector<8x64xf32>
    %cst_149 = arith.constant dense<0.000000e+00> : vector<8xf32>
    %523 = vector.multi_reduction <add>, %522, %cst_149 [1] : vector<8x64xf32> to vector<8xf32>
    %524 = vector.shape_cast %523 : vector<8xf32> to vector<8x1xf32>
    %cst_150 = arith.constant 6.400000e+01 : f32
    %525 = vector.broadcast %cst_150 : f32 to vector<8x1xf32>
    %526 = arith.divf %524, %525 : vector<8x1xf32>
    %527 = vector.broadcast %519 : vector<8x1xf32> to vector<8x64xf32>
    %528 = arith.subf %511, %527 : vector<8x64xf32>
    %cst_151 = arith.constant 9.99999974E-6 : f32
    %529 = vector.broadcast %cst_151 : f32 to vector<8x1xf32>
    %530 = arith.addf %526, %529 : vector<8x1xf32>
    %531 = math.rsqrt %530 : vector<8x1xf32>
    %532 = vector.broadcast %531 : vector<8x1xf32> to vector<8x64xf32>
    %533 = arith.mulf %528, %532 : vector<8x64xf32>
    %534 = vector.broadcast %513 : vector<1x64xf32> to vector<8x64xf32>
    %535 = arith.mulf %533, %534 : vector<8x64xf32>
    %536 = vector.broadcast %515 : vector<1x64xf32> to vector<8x64xf32>
    %537 = arith.addf %535, %536 : vector<8x64xf32>
    %538 = vector.shape_cast %537 : vector<8x64xf32> to vector<1x8x64xf32>
    %c0_152 = arith.constant 0 : index
    %c0_153 = arith.constant 0 : index
    %c0_154 = arith.constant 0 : index
    %539 = vector.load %arg18[%c0_152, %c0_153, %c0_154] : memref<1x8x64xf32, #tpu.memory_space<vmem>>, vector<1x8x64xf32>
    tpu.vector_store %arg18[%c0_152, %c0_153, %c0_154], %538 {strides = array<i32>} : memref<1x8x64xf32, #tpu.memory_space<vmem>>, vector<1x8x64xf32>,
    return
  }
  func.func @transform_0(%arg0: i32) -> (i32, i32, i32) {
    %c0_i32 = arith.constant 0 : i32
    %c0_i32_0 = arith.constant 0 : i32
    %c0_i32_1 = arith.constant 0 : i32
    return %arg0, %c0_i32, %c0_i32_0 : i32, i32, i32
  }
  func.func @transform_1(%arg0: i32) -> (i32, i32) {
    %c0_i32 = arith.constant 0 : i32
    %c0_i32_0 = arith.constant 0 : i32
    %c0_i32_1 = arith.constant 0 : i32
    return %c0_i32, %c0_i32_0 : i32, i32
  }
  func.func @transform_2(%arg0: i32) -> (i32, i32) {
    %c0_i32 = arith.constant 0 : i32
    %c0_i32_0 = arith.constant 0 : i32
    %c0_i32_1 = arith.constant 0 : i32
    return %c0_i32, %c0_i32_0 : i32, i32
  }
  func.func @transform_3(%arg0: i32) -> (i32, i32) {
    %c0_i32 = arith.constant 0 : i32
    %c0_i32_0 = arith.constant 0 : i32
    %c0_i32_1 = arith.constant 0 : i32
    return %c0_i32, %c0_i32_0 : i32, i32
  }
  func.func @transform_4(%arg0: i32) -> (i32, i32) {
    %c0_i32 = arith.constant 0 : i32
    %c0_i32_0 = arith.constant 0 : i32
    %c0_i32_1 = arith.constant 0 : i32
    return %c0_i32, %c0_i32_0 : i32, i32
  }
  func.func @transform_5(%arg0: i32) -> (i32, i32, i32) {
    %c0_i32 = arith.constant 0 : i32
    %c0_i32_0 = arith.constant 0 : i32
    %c0_i32_1 = arith.constant 0 : i32
    %c0_i32_2 = arith.constant 0 : i32
    return %c0_i32, %c0_i32_0, %c0_i32_1 : i32, i32, i32
  }
  func.func @transform_6(%arg0: i32) -> (i32, i32, i32) {
    %c0_i32 = arith.constant 0 : i32
    %c0_i32_0 = arith.constant 0 : i32
    %c0_i32_1 = arith.constant 0 : i32
    %c0_i32_2 = arith.constant 0 : i32
    return %c0_i32, %c0_i32_0, %c0_i32_1 : i32, i32, i32
  }
  func.func @transform_7(%arg0: i32) -> (i32, i32, i32) {
    %c0_i32 = arith.constant 0 : i32
    %c0_i32_0 = arith.constant 0 : i32
    %c0_i32_1 = arith.constant 0 : i32
    %c0_i32_2 = arith.constant 0 : i32
    return %c0_i32, %c0_i32_0, %c0_i32_1 : i32, i32, i32
  }
  func.func @transform_8(%arg0: i32) -> (i32, i32, i32) {
    %c0_i32 = arith.constant 0 : i32
    %c0_i32_0 = arith.constant 0 : i32
    %c0_i32_1 = arith.constant 0 : i32
    %c0_i32_2 = arith.constant 0 : i32
    return %c0_i32, %c0_i32_0, %c0_i32_1 : i32, i32, i32
  }
  func.func @transform_9(%arg0: i32) -> (i32, i32, i32) {
    %c0_i32 = arith.constant 0 : i32
    %c0_i32_0 = arith.constant 0 : i32
    %c0_i32_1 = arith.constant 0 : i32
    %c0_i32_2 = arith.constant 0 : i32
    return %c0_i32, %c0_i32_0, %c0_i32_1 : i32, i32, i32
  }
  func.func @transform_10(%arg0: i32) -> (i32, i32, i32) {
    %c0_i32 = arith.constant 0 : i32
    %c0_i32_0 = arith.constant 0 : i32
    %c0_i32_1 = arith.constant 0 : i32
    %c0_i32_2 = arith.constant 0 : i32
    return %c0_i32, %c0_i32_0, %c0_i32_1 : i32, i32, i32
  }
  func.func @transform_11(%arg0: i32) -> (i32, i32, i32) {
    %c0_i32 = arith.constant 0 : i32
    %c0_i32_0 = arith.constant 0 : i32
    %c0_i32_1 = arith.constant 0 : i32
    %c0_i32_2 = arith.constant 0 : i32
    return %c0_i32, %c0_i32_0, %c0_i32_1 : i32, i32, i32
  }
  func.func @transform_12(%arg0: i32) -> (i32, i32, i32) {
    %c0_i32 = arith.constant 0 : i32
    %c0_i32_0 = arith.constant 0 : i32
    %c0_i32_1 = arith.constant 0 : i32
    %c0_i32_2 = arith.constant 0 : i32
    return %c0_i32, %c0_i32_0, %c0_i32_1 : i32, i32, i32
  }
  func.func @transform_13(%arg0: i32) -> (i32, i32, i32) {
    %c0_i32 = arith.constant 0 : i32
    %c0_i32_0 = arith.constant 0 : i32
    %c0_i32_1 = arith.constant 0 : i32
    %c0_i32_2 = arith.constant 0 : i32
    return %c0_i32, %c0_i32_0, %c0_i32_1 : i32, i32, i32
  }
  func.func @transform_14(%arg0: i32) -> (i32, i32, i32) {
    %c0_i32 = arith.constant 0 : i32
    %c0_i32_0 = arith.constant 0 : i32
    %c0_i32_1 = arith.constant 0 : i32
    %c0_i32_2 = arith.constant 0 : i32
    return %c0_i32, %c0_i32_0, %c0_i32_1 : i32, i32, i32
  }
  func.func @transform_15(%arg0: i32) -> (i32, i32, i32) {
    %c0_i32 = arith.constant 0 : i32
    %c0_i32_0 = arith.constant 0 : i32
    %c0_i32_1 = arith.constant 0 : i32
    %c0_i32_2 = arith.constant 0 : i32
    return %c0_i32, %c0_i32_0, %c0_i32_1 : i32, i32, i32
  }
  func.func @transform_16(%arg0: i32) -> (i32, i32, i32) {
    %c0_i32 = arith.constant 0 : i32
    %c0_i32_0 = arith.constant 0 : i32
    %c0_i32_1 = arith.constant 0 : i32
    %c0_i32_2 = arith.constant 0 : i32
    return %c0_i32, %c0_i32_0, %c0_i32_1 : i32, i32, i32
  }
  func.func @transform_17(%arg0: i32) -> (i32, i32, i32) {
    %c0_i32 = arith.constant 0 : i32
    %c0_i32_0 = arith.constant 0 : i32
    %c0_i32_1 = arith.constant 0 : i32
    return %arg0, %c0_i32, %c0_i32_0 : i32, i32, i32
  }
}

</mosaic_0001>

<llo_original>
// kernel: tpu_custom_call.1
$region0: #{tpu_custom_call.1}
  #allocation0 [shape = 'u32[]', space=smem, size = 0x4, offset = 0x4, fixed_abs, tag = 'smem constant byte address 0x4 - core index']
  #allocation1 [shape = 'u32[72,128]{1,0:T(1,128)}', space=vmem, size = 0x9000, scoped, tag = 'internal scratch']
  %s0 = inlined_call_operand.hbm [shape: bf16[2,8,32], index: 0, kind: input, shape index: {}]
  %s1 = inlined_call_operand.hbm [shape: bf16[32,384], index: 1, kind: input, shape index: {}]
  %s2 = inlined_call_operand.hbm [shape: bf16[128,384], index: 2, kind: input, shape index: {}]
  %s3 = inlined_call_operand.hbm [shape: f32[1,384], index: 3, kind: input, shape index: {}]
  %s4 = inlined_call_operand.hbm [shape: f32[1,384], index: 4, kind: input, shape index: {}]
  %s5 = inlined_call_operand.hbm [shape: bf16[2,64,192], index: 5, kind: input, shape index: {}]
  %s6 = inlined_call_operand.vmem [shape: f32[2,1,192], index: 6, kind: input, shape index: {}]
  %s7 = inlined_call_operand.hbm [shape: bf16[2,64,64], index: 7, kind: input, shape index: {}]
  %s8 = inlined_call_operand.vmem [shape: f32[2,1,64], index: 8, kind: input, shape index: {}]
  %s9 = inlined_call_operand.vmem [shape: f32[2,1,64], index: 9, kind: input, shape index: {}]
  %s10 = inlined_call_operand.hbm [shape: f32[2,1,64], index: 10, kind: input, shape index: {}]
  %s11 = inlined_call_operand.hbm [shape: bf16[2,64,64], index: 11, kind: input, shape index: {}]
  %s12 = inlined_call_operand.vmem [shape: f32[2,1,64], index: 12, kind: input, shape index: {}]
  %s13 = inlined_call_operand.hbm [shape: bf16[2,64,64], index: 13, kind: input, shape index: {}]
  %s14 = inlined_call_operand.vmem [shape: f32[2,1,64], index: 14, kind: input, shape index: {}]
  %s15 = inlined_call_operand.vmem [shape: f32[2,1,64], index: 15, kind: input, shape index: {}]
  %s16 = inlined_call_operand.hbm [shape: f32[2,1,64], index: 16, kind: input, shape index: {}]
  %s17 = inlined_call_operand.hbm [shape: f32[2,8,64], index: 17, kind: output, shape index: {}]
  %s18 = sld [smem:[#allocation0]]
  $region145: #{tpu_custom_call.1} parent=0
    _
  %s20 = ssub.s32 1, %s18
  %s21 = scalar_select 0, %s20, %s18
  $region1: #{tpu_custom_call.1} parent=0
    #allocation2 [shape = 'u8[4096]{0}', space=vmem, size = 0x1000, scoped, tag = 'input window, operand 0']
    #allocation3 [shape = 's32[2]{0}', space=sflag, size = 0x8, scoped, tag = 'scoped memory for tpu_custom_call.1']
    #allocation4 [shape = 's32[2]{0}', space=sflag, size = 0x8, scoped, tag = 'scoped memory for tpu_custom_call.1']
    #allocation5 [shape = 'u8[24576]{0}', space=vmem, size = 0x6000, scoped, tag = 'input window, operand 1, single buffered']
    #allocation6 [shape = 's32[1]{0}', space=sflag, size = 0x4, scoped, tag = 'scoped memory for tpu_custom_call.1']
    #allocation7 [shape = 'u8[98304]{0}', space=vmem, size = 0x18000, scoped, tag = 'input window, operand 2, single buffered']
    #allocation8 [shape = 'u8[1536]{0}', space=vmem, size = 0x800, scoped, tag = 'input window, operand 3, single buffered']
    #allocation9 [shape = 's32[1]{0}', space=sflag, size = 0x4, scoped, tag = 'scoped memory for tpu_custom_call.1']
    #allocation10 [shape = 'u8[1536]{0}', space=vmem, size = 0x800, scoped, tag = 'input window, operand 4, single buffered']
    #allocation11 [shape = 'u8[65536]{0}', space=vmem, size = 0x10000, scoped, tag = 'input window, operand 5, single buffered']
    #allocation12 [shape = 's32[1]{0}', space=sflag, size = 0x4, scoped, tag = 'scoped memory for tpu_custom_call.1']
    #allocation13 [shape = 'u8[32768]{0}', space=vmem, size = 0x8000, scoped, tag = 'input window, operand 7, single buffered']
    #allocation14 [shape = 'u8[1024]{0}', space=vmem, size = 0x400, scoped, tag = 'input window, operand 10, single buffered']
    #allocation15 [shape = 's32[1]{0}', space=sflag, size = 0x4, scoped, tag = 'scoped memory for tpu_custom_call.1']
    #allocation16 [shape = 'u8[32768]{0}', space=vmem, size = 0x8000, scoped, tag = 'input window, operand 11, single buffered']
    #allocation17 [shape = 'u8[32768]{0}', space=vmem, size = 0x8000, scoped, tag = 'input window, operand 13, single buffered']
    #allocation18 [shape = 's32[1]{0}', space=sflag, size = 0x4, scoped, tag = 'scoped memory for tpu_custom_call.1']
    #allocation19 [shape = 'u8[1024]{0}', space=vmem, size = 0x400, scoped, tag = 'input window, operand 16, single buffered']
    #allocation20 [shape = 'u8[8192]{0}', space=vmem, size = 0x2000, scoped, tag = 'output window, operand 0']
    %22 = vsyncpa [#allocation3], 0
    %s23 = scalar_lea.sflag [#allocation3], 1
    %24 = vsyncpa %s23, 0
    %25 = vsyncpa [#allocation6], 0
    %26 = vsyncpa [#allocation9], 0
    %27 = vsyncpa [#allocation12], 0
    %28 = vsyncpa [#allocation15], 0
    %29 = vsyncpa [#allocation18], 0
    %30 = vsyncpa [#allocation4], 0
    %s31 = scalar_lea.sflag [#allocation4], 1
    %32 = vsyncpa %s31, 0
    loop: start=0, step=1, limit=4
    $region2: #{tpu_custom_call.1} parent=1 // loop_pre_header
      _
    $region3: #{tpu_custom_call.1} parent=1 // loop_header
      %s34 = sphi 0, %s38
      %p35 = scmp.ge.s32.totalorder %s34, 4
      %s44 = sphi 0, %s46
      %s47 = sphi 0, %s44
      %s48 = sphi 0, %s47
      %s64 = sphi 0, %s48
      %s68 = sphi 0, %s68
      %s70 = sphi 0, %s68
      %s71 = sphi 0, %s70
      %s85 = sphi 0, %s71
      %s89 = sphi 0, %s89
      %s91 = sphi 0, %s89
      %s92 = sphi 0, %s91
      %s106 = sphi 0, %s92
      %s110 = sphi 0, %s110
      %s112 = sphi 0, %s110
      %s113 = sphi 0, %s112
      %s127 = sphi 0, %s113
      %s131 = sphi 0, %s131
      %s133 = sphi 0, %s131
      %s134 = sphi 0, %s133
      %s148 = sphi 0, %s134
      %s152 = sphi 0, %s152
      %s154 = sphi 0, %s152
      %s155 = sphi 0, %s154
      %s169 = sphi 0, %s155
      %s173 = sphi 0, %s173
      %s175 = sphi 0, %s173
      %s176 = sphi 0, %s175
      %s190 = sphi 0, %s176
      %s194 = sphi 0, %s194
      %s196 = sphi 0, %s194
      %s197 = sphi 0, %s196
      %s211 = sphi 0, %s197
      %s215 = sphi 0, %s215
      %s217 = sphi 0, %s215
      %s218 = sphi 0, %s217
      %s232 = sphi 0, %s218
      %s236 = sphi 0, %s236
      %s238 = sphi 0, %s236
      %s239 = sphi 0, %s238
      %s253 = sphi 0, %s239
      %s257 = sphi 0, %s257
      %s259 = sphi 0, %s257
      %s260 = sphi 0, %s259
      %s274 = sphi 0, %s260
      %s278 = sphi 0, %s278
      %s280 = sphi 0, %s278
      %s281 = sphi 0, %s280
      %s295 = sphi 0, %s281
      %s299 = sphi 0, %s299
      %s301 = sphi 0, %s299
      %s302 = sphi 0, %s301
      %s316 = sphi 0, %s302
      %s320 = sphi 0, %s320
      %s322 = sphi 0, %s320
      %s323 = sphi 0, %s322
      %s337 = sphi 0, %s323
      %s341 = sphi 0, %s341
      %s343 = sphi 0, %s341
      %s344 = sphi 0, %s343
      %s358 = sphi 0, %s344
      %s362 = sphi 0, %s362
      %s364 = sphi 0, %s362
      %s365 = sphi 0, %s364
      %s379 = sphi 0, %s365
      %s383 = sphi 0, %s383
      %s385 = sphi 0, %s383
      %s386 = sphi 0, %s385
      %s400 = sphi 0, %s386
      %s406 = sphi 0, %s408
      %s409 = sphi 0, %s406
      %s410 = sphi 0, %s409
      %s426 = sphi 0, %s410
    $region4: #{tpu_custom_call.1} parent=1 // loop_header_branch
      %37 = sbr.rel (%p35) target = $region8
    $region5: #{tpu_custom_call.1} parent=1 // loop_body
      %s39 = ssub.s32 %s34, 1
      %s40 = ssub.s32 %s34, 2
      %s41 = sadd.s32 %s34, 1
      %s42 = ssub.s32 %s34, %s41
      %p43 = scmp.eq.s32.totalorder %s42, 0
      %s45 = sadd.s32 %s44, 1
      %s46 = scalar_select %p43, %s44, %s45
      %p49 = pneg %p43
      %p50 = scmp.eq.s32.totalorder %s34, 1
      %p51 = por %p49, %p50
      %p52 = scmp.ne.s32.totalorder %s44, %s47
      %p53 = scmp.eq.s32.totalorder %s34, 0
      %p54 = por %p52, %p53
      %p55 = scmp.ne.s32.totalorder %s44, %s47
      %p56 = scmp.eq.s32.totalorder %s39, 1
      %p57 = por %p55, %p56
      %p58 = scmp.ne.s32.totalorder %s47, %s48
      %p59 = scmp.eq.s32.totalorder %s39, 0
      %p60 = por %p58, %p59
      %p61 = scmp.ne.s32.totalorder %s47, %s48
      %p62 = scmp.eq.s32.totalorder %s40, 1
      %p63 = por %p61, %p62
      %p65 = scmp.ne.s32.totalorder %s48, %s64
      %p66 = scmp.eq.s32.totalorder %s40, 0
      %p67 = por %p65, %p66
      %s69 = sadd.s32 %s68, 1
      %p72 = scmp.eq.s32.totalorder %s34, 1
      %p73 = scmp.ne.s32.totalorder %s68, %s70
      %p74 = scmp.eq.s32.totalorder %s34, 0
      %p75 = por %p73, %p74
      %p76 = scmp.ne.s32.totalorder %s68, %s70
      %p77 = scmp.eq.s32.totalorder %s39, 1
      %p78 = por %p76, %p77
      %p79 = scmp.ne.s32.totalorder %s70, %s71
      %p80 = scmp.eq.s32.totalorder %s39, 0
      %p81 = por %p79, %p80
      %p82 = scmp.ne.s32.totalorder %s70, %s71
      %p83 = scmp.eq.s32.totalorder %s40, 1
      %p84 = por %p82, %p83
      %p86 = scmp.ne.s32.totalorder %s71, %s85
      %p87 = scmp.eq.s32.totalorder %s40, 0
      %p88 = por %p86, %p87
      %s90 = sadd.s32 %s89, 1
      %p93 = scmp.eq.s32.totalorder %s34, 1
      %p94 = scmp.ne.s32.totalorder %s89, %s91
      %p95 = scmp.eq.s32.totalorder %s34, 0
      %p96 = por %p94, %p95
      %p97 = scmp.ne.s32.totalorder %s89, %s91
      %p98 = scmp.eq.s32.totalorder %s39, 1
      %p99 = por %p97, %p98
      %p100 = scmp.ne.s32.totalorder %s91, %s92
      %p101 = scmp.eq.s32.totalorder %s39, 0
      %p102 = por %p100, %p101
      %p103 = scmp.ne.s32.totalorder %s91, %s92
      %p104 = scmp.eq.s32.totalorder %s40, 1
      %p105 = por %p103, %p104
      %p107 = scmp.ne.s32.totalorder %s92, %s106
      %p108 = scmp.eq.s32.totalorder %s40, 0
      %p109 = por %p107, %p108
      %s111 = sadd.s32 %s110, 1
      %p114 = scmp.eq.s32.totalorder %s34, 1
      %p115 = scmp.ne.s32.totalorder %s110, %s112
      %p116 = scmp.eq.s32.totalorder %s34, 0
      %p117 = por %p115, %p116
      %p118 = scmp.ne.s32.totalorder %s110, %s112
      %p119 = scmp.eq.s32.totalorder %s39, 1
      %p120 = por %p118, %p119
      %p121 = scmp.ne.s32.totalorder %s112, %s113
      %p122 = scmp.eq.s32.totalorder %s39, 0
      %p123 = por %p121, %p122
      %p124 = scmp.ne.s32.totalorder %s112, %s113
      %p125 = scmp.eq.s32.totalorder %s40, 1
      %p126 = por %p124, %p125
      %p128 = scmp.ne.s32.totalorder %s113, %s127
      %p129 = scmp.eq.s32.totalorder %s40, 0
      %p130 = por %p128, %p129
      %s132 = sadd.s32 %s131, 1
      %p135 = scmp.eq.s32.totalorder %s34, 1
      %p136 = scmp.ne.s32.totalorder %s131, %s133
      %p137 = scmp.eq.s32.totalorder %s34, 0
      %p138 = por %p136, %p137
      %p139 = scmp.ne.s32.totalorder %s131, %s133
      %p140 = scmp.eq.s32.totalorder %s39, 1
      %p141 = por %p139, %p140
      %p142 = scmp.ne.s32.totalorder %s133, %s134
      %p143 = scmp.eq.s32.totalorder %s39, 0
      %p144 = por %p142, %p143
      %p145 = scmp.ne.s32.totalorder %s133, %s134
      %p146 = scmp.eq.s32.totalorder %s40, 1
      %p147 = por %p145, %p146
      %p149 = scmp.ne.s32.totalorder %s134, %s148
      %p150 = scmp.eq.s32.totalorder %s40, 0
      %p151 = por %p149, %p150
      %s153 = sadd.s32 %s152, 1
      %p156 = scmp.eq.s32.totalorder %s34, 1
      %p157 = scmp.ne.s32.totalorder %s152, %s154
      %p158 = scmp.eq.s32.totalorder %s34, 0
      %p159 = por %p157, %p158
      %p160 = scmp.ne.s32.totalorder %s152, %s154
      %p161 = scmp.eq.s32.totalorder %s39, 1
      %p162 = por %p160, %p161
      %p163 = scmp.ne.s32.totalorder %s154, %s155
      %p164 = scmp.eq.s32.totalorder %s39, 0
      %p165 = por %p163, %p164
      %p166 = scmp.ne.s32.totalorder %s154, %s155
      %p167 = scmp.eq.s32.totalorder %s40, 1
      %p168 = por %p166, %p167
      %p170 = scmp.ne.s32.totalorder %s155, %s169
      %p171 = scmp.eq.s32.totalorder %s40, 0
      %p172 = por %p170, %p171
      %s174 = sadd.s32 %s173, 1
      %p177 = scmp.eq.s32.totalorder %s34, 1
      %p178 = scmp.ne.s32.totalorder %s173, %s175
      %p179 = scmp.eq.s32.totalorder %s34, 0
      %p180 = por %p178, %p179
      %p181 = scmp.ne.s32.totalorder %s173, %s175
      %p182 = scmp.eq.s32.totalorder %s39, 1
      %p183 = por %p181, %p182
      %p184 = scmp.ne.s32.totalorder %s175, %s176
      %p185 = scmp.eq.s32.totalorder %s39, 0
      %p186 = por %p184, %p185
      %p187 = scmp.ne.s32.totalorder %s175, %s176
      %p188 = scmp.eq.s32.totalorder %s40, 1
      %p189 = por %p187, %p188
      %p191 = scmp.ne.s32.totalorder %s176, %s190
      %p192 = scmp.eq.s32.totalorder %s40, 0
      %p193 = por %p191, %p192
      %s195 = sadd.s32 %s194, 1
      %p198 = scmp.eq.s32.totalorder %s34, 1
      %p199 = scmp.ne.s32.totalorder %s194, %s196
      %p200 = scmp.eq.s32.totalorder %s34, 0
      %p201 = por %p199, %p200
      %p202 = scmp.ne.s32.totalorder %s194, %s196
      %p203 = scmp.eq.s32.totalorder %s39, 1
      %p204 = por %p202, %p203
      %p205 = scmp.ne.s32.totalorder %s196, %s197
      %p206 = scmp.eq.s32.totalorder %s39, 0
      %p207 = por %p205, %p206
      %p208 = scmp.ne.s32.totalorder %s196, %s197
      %p209 = scmp.eq.s32.totalorder %s40, 1
      %p210 = por %p208, %p209
      %p212 = scmp.ne.s32.totalorder %s197, %s211
      %p213 = scmp.eq.s32.totalorder %s40, 0
      %p214 = por %p212, %p213
      %s216 = sadd.s32 %s215, 1
      %p219 = scmp.eq.s32.totalorder %s34, 1
      %p220 = scmp.ne.s32.totalorder %s215, %s217
      %p221 = scmp.eq.s32.totalorder %s34, 0
      %p222 = por %p220, %p221
      %p223 = scmp.ne.s32.totalorder %s215, %s217
      %p224 = scmp.eq.s32.totalorder %s39, 1
      %p225 = por %p223, %p224
      %p226 = scmp.ne.s32.totalorder %s217, %s218
      %p227 = scmp.eq.s32.totalorder %s39, 0
      %p228 = por %p226, %p227
      %p229 = scmp.ne.s32.totalorder %s217, %s218
      %p230 = scmp.eq.s32.totalorder %s40, 1
      %p231 = por %p229, %p230
      %p233 = scmp.ne.s32.totalorder %s218, %s232
      %p234 = scmp.eq.s32.totalorder %s40, 0
      %p235 = por %p233, %p234
      %s237 = sadd.s32 %s236, 1
      %p240 = scmp.eq.s32.totalorder %s34, 1
      %p241 = scmp.ne.s32.totalorder %s236, %s238
      %p242 = scmp.eq.s32.totalorder %s34, 0
      %p243 = por %p241, %p242
      %p244 = scmp.ne.s32.totalorder %s236, %s238
      %p245 = scmp.eq.s32.totalorder %s39, 1
      %p246 = por %p244, %p245
      %p247 = scmp.ne.s32.totalorder %s238, %s239
      %p248 = scmp.eq.s32.totalorder %s39, 0
      %p249 = por %p247, %p248
      %p250 = scmp.ne.s32.totalorder %s238, %s239
      %p251 = scmp.eq.s32.totalorder %s40, 1
      %p252 = por %p250, %p251
      %p254 = scmp.ne.s32.totalorder %s239, %s253
      %p255 = scmp.eq.s32.totalorder %s40, 0
      %p256 = por %p254, %p255
      %s258 = sadd.s32 %s257, 1
      %p261 = scmp.eq.s32.totalorder %s34, 1
      %p262 = scmp.ne.s32.totalorder %s257, %s259
      %p263 = scmp.eq.s32.totalorder %s34, 0
      %p264 = por %p262, %p263
      %p265 = scmp.ne.s32.totalorder %s257, %s259
      %p266 = scmp.eq.s32.totalorder %s39, 1
      %p267 = por %p265, %p266
      %p268 = scmp.ne.s32.totalorder %s259, %s260
      %p269 = scmp.eq.s32.totalorder %s39, 0
      %p270 = por %p268, %p269
      %p271 = scmp.ne.s32.totalorder %s259, %s260
      %p272 = scmp.eq.s32.totalorder %s40, 1
      %p273 = por %p271, %p272
      %p275 = scmp.ne.s32.totalorder %s260, %s274
      %p276 = scmp.eq.s32.totalorder %s40, 0
      %p277 = por %p275, %p276
      %s279 = sadd.s32 %s278, 1
      %p282 = scmp.eq.s32.totalorder %s34, 1
      %p283 = scmp.ne.s32.totalorder %s278, %s280
      %p284 = scmp.eq.s32.totalorder %s34, 0
      %p285 = por %p283, %p284
      %p286 = scmp.ne.s32.totalorder %s278, %s280
      %p287 = scmp.eq.s32.totalorder %s39, 1
      %p288 = por %p286, %p287
      %p289 = scmp.ne.s32.totalorder %s280, %s281
      %p290 = scmp.eq.s32.totalorder %s39, 0
      %p291 = por %p289, %p290
      %p292 = scmp.ne.s32.totalorder %s280, %s281
      %p293 = scmp.eq.s32.totalorder %s40, 1
      %p294 = por %p292, %p293
      %p296 = scmp.ne.s32.totalorder %s281, %s295
      %p297 = scmp.eq.s32.totalorder %s40, 0
      %p298 = por %p296, %p297
      %s300 = sadd.s32 %s299, 1
      %p303 = scmp.eq.s32.totalorder %s34, 1
      %p304 = scmp.ne.s32.totalorder %s299, %s301
      %p305 = scmp.eq.s32.totalorder %s34, 0
      %p306 = por %p304, %p305
      %p307 = scmp.ne.s32.totalorder %s299, %s301
      %p308 = scmp.eq.s32.totalorder %s39, 1
      %p309 = por %p307, %p308
      %p310 = scmp.ne.s32.totalorder %s301, %s302
      %p311 = scmp.eq.s32.totalorder %s39, 0
      %p312 = por %p310, %p311
      %p313 = scmp.ne.s32.totalorder %s301, %s302
      %p314 = scmp.eq.s32.totalorder %s40, 1
      %p315 = por %p313, %p314
      %p317 = scmp.ne.s32.totalorder %s302, %s316
      %p318 = scmp.eq.s32.totalorder %s40, 0
      %p319 = por %p317, %p318
      %s321 = sadd.s32 %s320, 1
      %p324 = scmp.eq.s32.totalorder %s34, 1
      %p325 = scmp.ne.s32.totalorder %s320, %s322
      %p326 = scmp.eq.s32.totalorder %s34, 0
      %p327 = por %p325, %p326
      %p328 = scmp.ne.s32.totalorder %s320, %s322
      %p329 = scmp.eq.s32.totalorder %s39, 1
      %p330 = por %p328, %p329
      %p331 = scmp.ne.s32.totalorder %s322, %s323
      %p332 = scmp.eq.s32.totalorder %s39, 0
      %p333 = por %p331, %p332
      %p334 = scmp.ne.s32.totalorder %s322, %s323
      %p335 = scmp.eq.s32.totalorder %s40, 1
      %p336 = por %p334, %p335
      %p338 = scmp.ne.s32.totalorder %s323, %s337
      %p339 = scmp.eq.s32.totalorder %s40, 0
      %p340 = por %p338, %p339
      %s342 = sadd.s32 %s341, 1
      %p345 = scmp.eq.s32.totalorder %s34, 1
      %p346 = scmp.ne.s32.totalorder %s341, %s343
      %p347 = scmp.eq.s32.totalorder %s34, 0
      %p348 = por %p346, %p347
      %p349 = scmp.ne.s32.totalorder %s341, %s343
      %p350 = scmp.eq.s32.totalorder %s39, 1
      %p351 = por %p349, %p350
      %p352 = scmp.ne.s32.totalorder %s343, %s344
      %p353 = scmp.eq.s32.totalorder %s39, 0
      %p354 = por %p352, %p353
      %p355 = scmp.ne.s32.totalorder %s343, %s344
      %p356 = scmp.eq.s32.totalorder %s40, 1
      %p357 = por %p355, %p356
      %p359 = scmp.ne.s32.totalorder %s344, %s358
      %p360 = scmp.eq.s32.totalorder %s40, 0
      %p361 = por %p359, %p360
      %s363 = sadd.s32 %s362, 1
      %p366 = scmp.eq.s32.totalorder %s34, 1
      %p367 = scmp.ne.s32.totalorder %s362, %s364
      %p368 = scmp.eq.s32.totalorder %s34, 0
      %p369 = por %p367, %p368
      %p370 = scmp.ne.s32.totalorder %s362, %s364
      %p371 = scmp.eq.s32.totalorder %s39, 1
      %p372 = por %p370, %p371
      %p373 = scmp.ne.s32.totalorder %s364, %s365
      %p374 = scmp.eq.s32.totalorder %s39, 0
      %p375 = por %p373, %p374
      %p376 = scmp.ne.s32.totalorder %s364, %s365
      %p377 = scmp.eq.s32.totalorder %s40, 1
      %p378 = por %p376, %p377
      %p380 = scmp.ne.s32.totalorder %s365, %s379
      %p381 = scmp.eq.s32.totalorder %s40, 0
      %p382 = por %p380, %p381
      %s384 = sadd.s32 %s383, 1
      %p387 = scmp.eq.s32.totalorder %s34, 1
      %p388 = scmp.ne.s32.totalorder %s383, %s385
      %p389 = scmp.eq.s32.totalorder %s34, 0
      %p390 = por %p388, %p389
      %p391 = scmp.ne.s32.totalorder %s383, %s385
      %p392 = scmp.eq.s32.totalorder %s39, 1
      %p393 = por %p391, %p392
      %p394 = scmp.ne.s32.totalorder %s385, %s386
      %p395 = scmp.eq.s32.totalorder %s39, 0
      %p396 = por %p394, %p395
      %p397 = scmp.ne.s32.totalorder %s385, %s386
      %p398 = scmp.eq.s32.totalorder %s40, 1
      %p399 = por %p397, %p398
      %p401 = scmp.ne.s32.totalorder %s386, %s400
      %p402 = scmp.eq.s32.totalorder %s40, 0
      %p403 = por %p401, %p402
      %s404 = ssub.s32 %s34, %s41
      %p405 = scmp.eq.s32.totalorder %s404, 0
      %s407 = sadd.s32 %s406, 1
      %s408 = scalar_select %p405, %s406, %s407
      %p411 = pneg %p405
      %p412 = scmp.eq.s32.totalorder %s34, 1
      %p413 = por %p411, %p412
      %p414 = scmp.ne.s32.totalorder %s406, %s409
      %p415 = scmp.eq.s32.totalorder %s34, 0
      %p416 = por %p414, %p415
      %p417 = scmp.ne.s32.totalorder %s406, %s409
      %p418 = scmp.eq.s32.totalorder %s39, 1
      %p419 = por %p417, %p418
      %p420 = scmp.ne.s32.totalorder %s409, %s410
      %p421 = scmp.eq.s32.totalorder %s39, 0
      %p422 = por %p420, %p421
      %p423 = scmp.ne.s32.totalorder %s409, %s410
      %p424 = scmp.eq.s32.totalorder %s40, 1
      %p425 = por %p423, %p424
      %p427 = scmp.ne.s32.totalorder %s410, %s426
      %p428 = scmp.eq.s32.totalorder %s40, 0
      %p429 = por %p427, %p428
      %p430 = scmp.le.s32.totalorder 1, %s34
      %p431 = scmp.lt.s32.totalorder %s34, 3
      %p432 = pnand %p430, %p431
      %p433 = pneg %p432
      // Predicated region
      $region9: #{tpu_custom_call.1} parent=5 // pred_check
        _
      $region10: #{tpu_custom_call.1} parent=5 // pred_check_branch
        %435 = sbr.rel (%p432) target = $region12
      $region11: #{tpu_custom_call.1} parent=5 // pred_region
        %s436 = ssub.s32 %s34, 1
        // Predicated region
        $region13: #{tpu_custom_call.1} parent=11 // pred_check
          %p437 = pneg %p81
        $region14: #{tpu_custom_call.1} parent=11 // pred_check_branch
          %439 = sbr.rel (%p437) target = $region16
        $region15: #{tpu_custom_call.1} parent=11 // pred_region
          %441 = vsyncadd [#allocation6], 0
          %s442 = sshll.u32 %s1, 4
          %s443 = int_to_ptr.hbm [resolvable:$true] %s442
          %s444 = sshll.u32 [#allocation5], 4
          %s445 = int_to_ptr.vmem [resolvable:$true] %s444
          %450 = dma.hbm_to_vmem [thread:$0]  %s443, 768, %s445, [#allocation6], 192, 192, 12
        $region16: #{tpu_custom_call.1} parent=11 // pred_fallthru
          _
        // Predicated region
        $region17: #{tpu_custom_call.1} parent=11 // pred_check
          %p451 = pneg %p102
        $region18: #{tpu_custom_call.1} parent=11 // pred_check_branch
          %453 = sbr.rel (%p451) target = $region20
        $region19: #{tpu_custom_call.1} parent=11 // pred_region
          %455 = vsyncadd [#allocation6], 0
          %s456 = sshll.u32 %s2, 4
          %s457 = int_to_ptr.hbm [resolvable:$true] %s456
          %s458 = sshll.u32 [#allocation7], 4
          %s459 = int_to_ptr.vmem [resolvable:$true] %s458
          %464 = dma.hbm_to_vmem [thread:$0]  %s457, 3072, %s459, [#allocation6], 192, 192, 12
        $region20: #{tpu_custom_call.1} parent=11 // pred_fallthru
          _
        // Predicated region
        $region21: #{tpu_custom_call.1} parent=11 // pred_check
          %p465 = pneg %p123
        $region22: #{tpu_custom_call.1} parent=11 // pred_check_branch
          %467 = sbr.rel (%p465) target = $region24
        $region23: #{tpu_custom_call.1} parent=11 // pred_region
          %469 = vsyncadd [#allocation9], 0
          %s471 = sshll.u32 %s3, 4
          %s472 = int_to_ptr.hbm [resolvable:$true] %s471
          %s473 = sshll.u32 [#allocation8], 4
          %s474 = int_to_ptr.vmem [resolvable:$true] %s473
          %476 = dma.hbm_to_vmem [thread:$0]  %s472, 48, %s474, [#allocation9]
        $region24: #{tpu_custom_call.1} parent=11 // pred_fallthru
          _
        // Predicated region
        $region25: #{tpu_custom_call.1} parent=11 // pred_check
          %p477 = pneg %p144
        $region26: #{tpu_custom_call.1} parent=11 // pred_check_branch
          %479 = sbr.rel (%p477) target = $region28
        $region27: #{tpu_custom_call.1} parent=11 // pred_region
          %481 = vsyncadd [#allocation9], 0
          %s483 = sshll.u32 %s4, 4
          %s484 = int_to_ptr.hbm [resolvable:$true] %s483
          %s485 = sshll.u32 [#allocation10], 4
          %s486 = int_to_ptr.vmem [resolvable:$true] %s485
          %488 = dma.hbm_to_vmem [thread:$0]  %s484, 48, %s486, [#allocation9]
        $region28: #{tpu_custom_call.1} parent=11 // pred_fallthru
          _
        // Predicated region
        $region29: #{tpu_custom_call.1} parent=11 // pred_check
          %p489 = pneg %p165
        $region30: #{tpu_custom_call.1} parent=11 // pred_check_branch
          %491 = sbr.rel (%p489) target = $region32
        $region31: #{tpu_custom_call.1} parent=11 // pred_region
          %493 = vsyncadd [#allocation12], 0
          %s494 = sshll.u32 %s5, 4
          %s495 = int_to_ptr.hbm [resolvable:$true] %s494
          %s496 = sshll.u32 [#allocation11], 4
          %s497 = int_to_ptr.vmem [resolvable:$true] %s496
          %502 = dma.hbm_to_vmem [thread:$0]  %s495, 2048, %s497, [#allocation12], 128, 128, 8
        $region32: #{tpu_custom_call.1} parent=11 // pred_fallthru
          _
        // Predicated region
        $region33: #{tpu_custom_call.1} parent=11 // pred_check
          %p503 = pneg %p186
        $region34: #{tpu_custom_call.1} parent=11 // pred_check_branch
          %505 = sbr.rel (%p503) target = $region36
        $region35: #{tpu_custom_call.1} parent=11 // pred_region
          _
        $region36: #{tpu_custom_call.1} parent=11 // pred_fallthru
          _
        // Predicated region
        $region37: #{tpu_custom_call.1} parent=11 // pred_check
          %p506 = pneg %p207
        $region38: #{tpu_custom_call.1} parent=11 // pred_check_branch
          %508 = sbr.rel (%p506) target = $region40
        $region39: #{tpu_custom_call.1} parent=11 // pred_region
          %510 = vsyncadd [#allocation12], 0
          %s511 = sshll.u32 %s7, 4
          %s512 = int_to_ptr.hbm [resolvable:$true] %s511
          %s513 = sshll.u32 [#allocation13], 4
          %s514 = int_to_ptr.vmem [resolvable:$true] %s513
          %519 = dma.hbm_to_vmem [thread:$0]  %s512, 1024, %s514, [#allocation12], 64, 64, 4
        $region40: #{tpu_custom_call.1} parent=11 // pred_fallthru
          _
        // Predicated region
        $region41: #{tpu_custom_call.1} parent=11 // pred_check
          %p520 = pneg %p228
        $region42: #{tpu_custom_call.1} parent=11 // pred_check_branch
          %522 = sbr.rel (%p520) target = $region44
        $region43: #{tpu_custom_call.1} parent=11 // pred_region
          _
        $region44: #{tpu_custom_call.1} parent=11 // pred_fallthru
          _
        // Predicated region
        $region45: #{tpu_custom_call.1} parent=11 // pred_check
          %p523 = pneg %p249
        $region46: #{tpu_custom_call.1} parent=11 // pred_check_branch
          %525 = sbr.rel (%p523) target = $region48
        $region47: #{tpu_custom_call.1} parent=11 // pred_region
          _
        $region48: #{tpu_custom_call.1} parent=11 // pred_fallthru
          _
        // Predicated region
        $region49: #{tpu_custom_call.1} parent=11 // pred_check
          %p526 = pneg %p270
        $region50: #{tpu_custom_call.1} parent=11 // pred_check_branch
          %528 = sbr.rel (%p526) target = $region52
        $region51: #{tpu_custom_call.1} parent=11 // pred_region
          %530 = vsyncadd [#allocation15], 0
          %s531 = sshll.u32 %s10, 4
          %s532 = int_to_ptr.hbm [resolvable:$true] %s531
          %s533 = sshll.u32 [#allocation14], 4
          %s534 = int_to_ptr.vmem [resolvable:$true] %s533
          %539 = dma.hbm_to_vmem [thread:$0]  %s532, 32, %s534, [#allocation15], 16, 16, 1
        $region52: #{tpu_custom_call.1} parent=11 // pred_fallthru
          _
        // Predicated region
        $region53: #{tpu_custom_call.1} parent=11 // pred_check
          %p540 = pneg %p291
        $region54: #{tpu_custom_call.1} parent=11 // pred_check_branch
          %542 = sbr.rel (%p540) target = $region56
        $region55: #{tpu_custom_call.1} parent=11 // pred_region
          %544 = vsyncadd [#allocation15], 0
          %s545 = sshll.u32 %s11, 4
          %s546 = int_to_ptr.hbm [resolvable:$true] %s545
          %s547 = sshll.u32 [#allocation16], 4
          %s548 = int_to_ptr.vmem [resolvable:$true] %s547
          %553 = dma.hbm_to_vmem [thread:$0]  %s546, 1024, %s548, [#allocation15], 64, 64, 4
        $region56: #{tpu_custom_call.1} parent=11 // pred_fallthru
          _
        // Predicated region
        $region57: #{tpu_custom_call.1} parent=11 // pred_check
          %p554 = pneg %p312
        $region58: #{tpu_custom_call.1} parent=11 // pred_check_branch
          %556 = sbr.rel (%p554) target = $region60
        $region59: #{tpu_custom_call.1} parent=11 // pred_region
          _
        $region60: #{tpu_custom_call.1} parent=11 // pred_fallthru
          _
        // Predicated region
        $region61: #{tpu_custom_call.1} parent=11 // pred_check
          %p557 = pneg %p333
        $region62: #{tpu_custom_call.1} parent=11 // pred_check_branch
          %559 = sbr.rel (%p557) target = $region64
        $region63: #{tpu_custom_call.1} parent=11 // pred_region
          %561 = vsyncadd [#allocation18], 0
          %s562 = sshll.u32 %s13, 4
          %s563 = int_to_ptr.hbm [resolvable:$true] %s562
          %s564 = sshll.u32 [#allocation17], 4
          %s565 = int_to_ptr.vmem [resolvable:$true] %s564
          %570 = dma.hbm_to_vmem [thread:$0]  %s563, 1024, %s565, [#allocation18], 64, 64, 4
        $region64: #{tpu_custom_call.1} parent=11 // pred_fallthru
          _
        // Predicated region
        $region65: #{tpu_custom_call.1} parent=11 // pred_check
          %p571 = pneg %p354
        $region66: #{tpu_custom_call.1} parent=11 // pred_check_branch
          %573 = sbr.rel (%p571) target = $region68
        $region67: #{tpu_custom_call.1} parent=11 // pred_region
          _
        $region68: #{tpu_custom_call.1} parent=11 // pred_fallthru
          _
        // Predicated region
        $region69: #{tpu_custom_call.1} parent=11 // pred_check
          %p574 = pneg %p375
        $region70: #{tpu_custom_call.1} parent=11 // pred_check_branch
          %576 = sbr.rel (%p574) target = $region72
        $region71: #{tpu_custom_call.1} parent=11 // pred_region
          _
        $region72: #{tpu_custom_call.1} parent=11 // pred_fallthru
          _
        // Predicated region
        $region73: #{tpu_custom_call.1} parent=11 // pred_check
          %p577 = pneg %p396
        $region74: #{tpu_custom_call.1} parent=11 // pred_check_branch
          %579 = sbr.rel (%p577) target = $region76
        $region75: #{tpu_custom_call.1} parent=11 // pred_region
          %581 = vsyncadd [#allocation18], 0
          %s582 = sshll.u32 %s16, 4
          %s583 = int_to_ptr.hbm [resolvable:$true] %s582
          %s584 = sshll.u32 [#allocation19], 4
          %s585 = int_to_ptr.vmem [resolvable:$true] %s584
          %590 = dma.hbm_to_vmem [thread:$0]  %s583, 32, %s585, [#allocation18], 16, 16, 1
        $region76: #{tpu_custom_call.1} parent=11 // pred_fallthru
          _
      $region12: #{tpu_custom_call.1} parent=5 // pred_fallthru
        _
      %p591 = scmp.lt.s32.totalorder %s34, 2
      // Predicated region
      $region77: #{tpu_custom_call.1} parent=5 // pred_check
        %p592 = pneg %p591
      $region78: #{tpu_custom_call.1} parent=5 // pred_check_branch
        %594 = sbr.rel (%p592) target = $region80
      $region79: #{tpu_custom_call.1} parent=5 // pred_region
        // Predicated region
        $region81: #{tpu_custom_call.1} parent=79 // pred_check
          %p595 = pneg %p54
        $region82: #{tpu_custom_call.1} parent=79 // pred_check_branch
          %597 = sbr.rel (%p595) target = $region84
        $region83: #{tpu_custom_call.1} parent=79 // pred_region
          %s598 = sand.u32 %s44, 1
          %s599 = scalar_lea.sflag [#allocation3], %s598
          %s600 = sand.u32 %s44, 1
          %s601 = smul.addr %s600, 4
          %s602 = scalar_lea.vmem [#allocation2], %s601
          %604 = vsyncadd %s599, 0
          %s605 = smul.addr %s34, 4
          %s606 = scalar_lea.hbm %s0, %s605
          %s608 = sshll.u32 %s606, 4
          %s609 = int_to_ptr.hbm [resolvable:$true] %s608
          %s610 = sshll.u32 %s602, 4
          %s611 = int_to_ptr.vmem [resolvable:$true] %s610
          %613 = dma.hbm_to_vmem [thread:$0]  %s609, 64, %s611, %s599
        $region84: #{tpu_custom_call.1} parent=79 // pred_fallthru
          _
      $region80: #{tpu_custom_call.1} parent=5 // pred_fallthru
        _
      %p614 = scmp.le.s32.totalorder 1, %s34
      %p615 = scmp.lt.s32.totalorder %s34, 3
      %p616 = pnand %p614, %p615
      %p617 = pneg %p616
      // Predicated region
      $region85: #{tpu_custom_call.1} parent=5 // pred_check
        _
      $region86: #{tpu_custom_call.1} parent=5 // pred_check_branch
        %619 = sbr.rel (%p616) target = $region88
      $region87: #{tpu_custom_call.1} parent=5 // pred_region
        %s620 = ssub.s32 %s34, 1
        %s621 = sand.u32 %s47, 1
        %s622 = scalar_lea.sflag [#allocation3], %s621
        %s623 = sand.u32 %s47, 1
        %s624 = smul.addr %s623, 4
        %s625 = scalar_lea.vmem [#allocation2], %s624
        // Predicated region
        $region89: #{tpu_custom_call.1} parent=87 // pred_check
          %p626 = pneg %p60
        $region90: #{tpu_custom_call.1} parent=87 // pred_check_branch
          %628 = sbr.rel (%p626) target = $region92
        $region91: #{tpu_custom_call.1} parent=87 // pred_region
          %630 = dma.done %s622, 64
        $region92: #{tpu_custom_call.1} parent=87 // pred_fallthru
          _
        // Predicated region
        $region93: #{tpu_custom_call.1} parent=87 // pred_check
          %p631 = pneg %p81
        $region94: #{tpu_custom_call.1} parent=87 // pred_check_branch
          %633 = sbr.rel (%p631) target = $region96
        $region95: #{tpu_custom_call.1} parent=87 // pred_region
          %635 = dma.done [#allocation6], 768
        $region96: #{tpu_custom_call.1} parent=87 // pred_fallthru
          _
        // Predicated region
        $region97: #{tpu_custom_call.1} parent=87 // pred_check
          %p636 = pneg %p102
        $region98: #{tpu_custom_call.1} parent=87 // pred_check_branch
          %638 = sbr.rel (%p636) target = $region100
        $region99: #{tpu_custom_call.1} parent=87 // pred_region
          %640 = dma.done [#allocation6], 3072
        $region100: #{tpu_custom_call.1} parent=87 // pred_fallthru
          _
        // Predicated region
        $region101: #{tpu_custom_call.1} parent=87 // pred_check
          %p641 = pneg %p123
        $region102: #{tpu_custom_call.1} parent=87 // pred_check_branch
          %643 = sbr.rel (%p641) target = $region104
        $region103: #{tpu_custom_call.1} parent=87 // pred_region
          %645 = dma.done [#allocation9], 48
        $region104: #{tpu_custom_call.1} parent=87 // pred_fallthru
          _
        // Predicated region
        $region105: #{tpu_custom_call.1} parent=87 // pred_check
          %p646 = pneg %p144
        $region106: #{tpu_custom_call.1} parent=87 // pred_check_branch
          %648 = sbr.rel (%p646) target = $region108
        $region107: #{tpu_custom_call.1} parent=87 // pred_region
          %650 = dma.done [#allocation9], 48
        $region108: #{tpu_custom_call.1} parent=87 // pred_fallthru
          _
        // Predicated region
        $region109: #{tpu_custom_call.1} parent=87 // pred_check
          %p651 = pneg %p165
        $region110: #{tpu_custom_call.1} parent=87 // pred_check_branch
          %653 = sbr.rel (%p651) target = $region112
        $region111: #{tpu_custom_call.1} parent=87 // pred_region
          %655 = dma.done [#allocation12], 2048
        $region112: #{tpu_custom_call.1} parent=87 // pred_fallthru
          _
        // Predicated region
        $region113: #{tpu_custom_call.1} parent=87 // pred_check
          %p656 = pneg %p207
        $region114: #{tpu_custom_call.1} parent=87 // pred_check_branch
          %658 = sbr.rel (%p656) target = $region116
        $region115: #{tpu_custom_call.1} parent=87 // pred_region
          %660 = dma.done [#allocation12], 1024
        $region116: #{tpu_custom_call.1} parent=87 // pred_fallthru
          _
        // Predicated region
        $region117: #{tpu_custom_call.1} parent=87 // pred_check
          %p661 = pneg %p270
        $region118: #{tpu_custom_call.1} parent=87 // pred_check_branch
          %663 = sbr.rel (%p661) target = $region120
        $region119: #{tpu_custom_call.1} parent=87 // pred_region
          %665 = dma.done [#allocation15], 32
        $region120: #{tpu_custom_call.1} parent=87 // pred_fallthru
          _
        // Predicated region
        $region121: #{tpu_custom_call.1} parent=87 // pred_check
          %p666 = pneg %p291
        $region122: #{tpu_custom_call.1} parent=87 // pred_check_branch
          %668 = sbr.rel (%p666) target = $region124
        $region123: #{tpu_custom_call.1} parent=87 // pred_region
          %670 = dma.done [#allocation15], 1024
        $region124: #{tpu_custom_call.1} parent=87 // pred_fallthru
          _
        // Predicated region
        $region125: #{tpu_custom_call.1} parent=87 // pred_check
          %p671 = pneg %p333
        $region126: #{tpu_custom_call.1} parent=87 // pred_check_branch
          %673 = sbr.rel (%p671) target = $region128
        $region127: #{tpu_custom_call.1} parent=87 // pred_region
          %675 = dma.done [#allocation18], 1024
        $region128: #{tpu_custom_call.1} parent=87 // pred_fallthru
          _
        // Predicated region
        $region129: #{tpu_custom_call.1} parent=87 // pred_check
          %p676 = pneg %p396
        $region130: #{tpu_custom_call.1} parent=87 // pred_check_branch
          %678 = sbr.rel (%p676) target = $region132
        $region131: #{tpu_custom_call.1} parent=87 // pred_region
          %680 = dma.done [#allocation18], 32
        $region132: #{tpu_custom_call.1} parent=87 // pred_fallthru
          _
        %s681 = sand.u32 %s47, 1
        %s682 = scalar_lea.sflag [#allocation3], %s681
        %s683 = sand.u32 %s47, 1
        %s684 = smul.addr %s683, 4
        %s685 = scalar_lea.vmem [#allocation2], %s684
        %p686 = pneg %p60
        %p687 = pneg %p57
        %p688 = pneg %p81
        %p689 = pneg %p78
        %p690 = pneg %p102
        %p691 = pneg %p99
        %p692 = pneg %p123
        %p693 = pneg %p120
        %p694 = pneg %p144
        %p695 = pneg %p141
        %p696 = pneg %p165
        %p697 = pneg %p162
        %p698 = pneg %p186
        %p699 = pneg %p183
        %p700 = pneg %p207
        %p701 = pneg %p204
        %p702 = pneg %p228
        %p703 = pneg %p225
        %p704 = pneg %p249
        %p705 = pneg %p246
        %p706 = pneg %p270
        %p707 = pneg %p267
        %p708 = pneg %p291
        %p709 = pneg %p288
        %p710 = pneg %p312
        %p711 = pneg %p309
        %p712 = pneg %p333
        %p713 = pneg %p330
        %p714 = pneg %p354
        %p715 = pneg %p351
        %p716 = pneg %p375
        %p717 = pneg %p372
        %p718 = pneg %p396
        %p719 = pneg %p393
        %p720 = pneg %p422
        %p721 = pneg %p419
        %s722 = sand.u32 %s409, 1
        %s723 = scalar_lea.sflag [#allocation4], %s722
        %s724 = sand.u32 %s409, 1
        %s725 = smul.addr %s724, 8
        %s726 = scalar_lea.vmem [#allocation20], %s725
        %v728 = vld [vmem:[%s625] sm:$0xf]
        %v729 = vld [vmem:[#allocation5] sm:$0xff]
        %v730 = vld [vmem:[#allocation5 + $0x8] sm:$0xf]
        %v731 = vld [vmem:[#allocation5 + $0xc] sm:$0xff]
        %v732 = vld [vmem:[#allocation5 + $0x14] sm:$0xf]
        %v733 = vld [vmem:[#allocation5 + $0x18] sm:$0xff]
        %v734 = vld [vmem:[#allocation5 + $0x20] sm:$0xf]
        %v735 = vld [vmem:[#allocation5 + $0x24] sm:$0xff]
        %v736 = vld [vmem:[#allocation5 + $0x2c] sm:$0xf]
        %v737 = vld [vmem:[#allocation8] sm:$0x7]
        %v739 = vperm.slane %v737, 0
        %v740 = vperm.slane %v737, 1
        %v741 = vperm.slane %v737, 2
        %v753 = vunpack.c.l.b16 %v729
        %v754 = vunpack.c.h.b16 %v729
        %v755 = vunpack.c.l.b16 %v730
        %v756 = vunpack.c.l.b16 %v731
        %v757 = vunpack.c.h.b16 %v731
        %v758 = vunpack.c.l.b16 %v732
        %v759 = vunpack.c.l.b16 %v733
        %v760 = vunpack.c.h.b16 %v733
        %v761 = vunpack.c.l.b16 %v734
        %v762 = vunpack.c.l.b16 %v735
        %v763 = vunpack.c.h.b16 %v735
        %v764 = vunpack.c.l.b16 %v736
        %v765 = vpack.c.b16 %v756, %v753
        %v766 = vpack.c.b16 %v757, %v754
        %v767 = vpack.c.b16 %v758, %v755
        %v768 = vpack.c.b16 %v762, %v759
        %v769 = vpack.c.b16 %v763, %v760
        %v770 = vpack.c.b16 %v764, %v761
        %vm777 = vcmask 261120
        %v779 = vsel %vm777, %v728, 0
        %781 = vmatpush.bf16.msra.mxu0 0
        %782 = vmatpush.bf16.msra.mxu0 0
        %783 = vmatpush.bf16.msra.mxu0 0
        %784 = vmatpush.bf16.msra.mxu0 0
        %785 = vmatpush.bf16.msra.mxu0 0
        %786 = vmatpush.bf16.msra.mxu0 0
        %787 = vmatpush.bf16.msra.mxu0 %v768
        %788 = vmatpush.bf16.msra.mxu0 %v765
        %789 = vmatmul.bf16.gmra.mxu0 %v779
        %v790 = vpop.f32.mrf.mxu0
        %v791 = vadd.f32 %v739, %v790
        %v792 = vpop.f32.mrf.mxu0
        %793 = vdwg.mxu0
        %794 = vmatpush.bf16.msra.mxu0 0
        %795 = vmatpush.bf16.msra.mxu0 0
        %796 = vmatpush.bf16.msra.mxu0 0
        %797 = vmatpush.bf16.msra.mxu0 0
        %798 = vmatpush.bf16.msra.mxu0 0
        %799 = vmatpush.bf16.msra.mxu0 0
        %800 = vmatpush.bf16.msra.mxu0 %v769
        %801 = vmatpush.bf16.msra.mxu0 %v766
        %802 = vmatmul.bf16.gmra.mxu0 %v779
        %v803 = vpop.f32.mrf.mxu0
        %v804 = vadd.f32 %v740, %v803
        %v805 = vpop.f32.mrf.mxu0
        %806 = vdwg.mxu0
        %807 = vmatpush.bf16.msra.mxu0 0
        %808 = vmatpush.bf16.msra.mxu0 0
        %809 = vmatpush.bf16.msra.mxu0 0
        %810 = vmatpush.bf16.msra.mxu0 0
        %811 = vmatpush.bf16.msra.mxu0 0
        %812 = vmatpush.bf16.msra.mxu0 0
        %813 = vmatpush.bf16.msra.mxu0 %v770
        %814 = vmatpush.bf16.msra.mxu0 %v767
        %815 = vmatmul.bf16.gmra.mxu0 %v779
        %v816 = vpop.f32.mrf.mxu0
        %v817 = vadd.f32 %v741, %v816
        %v818 = vpop.f32.mrf.mxu0
        %819 = vdwg.mxu0
        %v820 = vld [vmem:[#allocation7] sm:$0xff]
        %v821 = vld [vmem:[#allocation7 + $0x8] sm:$0xf]
        %v822 = vld [vmem:[#allocation7 + $0xc] sm:$0xff]
        %v823 = vld [vmem:[#allocation7 + $0x14] sm:$0xf]
        %v824 = vld [vmem:[#allocation7 + $0x18] sm:$0xff]
        %v825 = vld [vmem:[#allocation7 + $0x20] sm:$0xf]
        %v826 = vld [vmem:[#allocation7 + $0x24] sm:$0xff]
        %v827 = vld [vmem:[#allocation7 + $0x2c] sm:$0xf]
        %v828 = vld [vmem:[#allocation7 + $0x30] sm:$0xff]
        %v829 = vld [vmem:[#allocation7 + $0x38] sm:$0xf]
        %v830 = vld [vmem:[#allocation7 + $0x3c] sm:$0xff]
        %v831 = vld [vmem:[#allocation7 + $0x44] sm:$0xf]
        %v832 = vld [vmem:[#allocation7 + $0x48] sm:$0xff]
        %v833 = vld [vmem:[#allocation7 + $0x50] sm:$0xf]
        %v834 = vld [vmem:[#allocation7 + $0x54] sm:$0xff]
        %v835 = vld [vmem:[#allocation7 + $0x5c] sm:$0xf]
        %v836 = vld [vmem:[#allocation7 + $0x60] sm:$0xff]
        %v837 = vld [vmem:[#allocation7 + $0x68] sm:$0xf]
        %v838 = vld [vmem:[#allocation7 + $0x6c] sm:$0xff]
        %v839 = vld [vmem:[#allocation7 + $0x74] sm:$0xf]
        %v840 = vld [vmem:[#allocation7 + $0x78] sm:$0xff]
        %v841 = vld [vmem:[#allocation7 + $0x80] sm:$0xf]
        %v842 = vld [vmem:[#allocation7 + $0x84] sm:$0xff]
        %v843 = vld [vmem:[#allocation7 + $0x8c] sm:$0xf]
        %v844 = vld [vmem:[#allocation7 + $0x90] sm:$0xff]
        %v845 = vld [vmem:[#allocation7 + $0x98] sm:$0xf]
        %v846 = vld [vmem:[#allocation7 + $0x9c] sm:$0xff]
        %v847 = vld [vmem:[#allocation7 + $0xa4] sm:$0xf]
        %v848 = vld [vmem:[#allocation7 + $0xa8] sm:$0xff]
        %v849 = vld [vmem:[#allocation7 + $0xb0] sm:$0xf]
        %v850 = vld [vmem:[#allocation7 + $0xb4] sm:$0xff]
        %v851 = vld [vmem:[#allocation7 + $0xbc] sm:$0xf]
        %v852 = vld [vmem:[#allocation10] sm:$0x7]
        %v885 = vunpack.c.l.b16 %v820
        %v886 = vunpack.c.h.b16 %v820
        %v887 = vunpack.c.l.b16 %v821
        %v888 = vunpack.c.l.b16 %v822
        %v889 = vunpack.c.h.b16 %v822
        %v890 = vunpack.c.l.b16 %v823
        %v891 = vunpack.c.l.b16 %v824
        %v892 = vunpack.c.h.b16 %v824
        %v893 = vunpack.c.l.b16 %v825
        %v894 = vunpack.c.l.b16 %v826
        %v895 = vunpack.c.h.b16 %v826
        %v896 = vunpack.c.l.b16 %v827
        %v897 = vunpack.c.l.b16 %v828
        %v898 = vunpack.c.h.b16 %v828
        %v899 = vunpack.c.l.b16 %v829
        %v900 = vunpack.c.l.b16 %v830
        %v901 = vunpack.c.h.b16 %v830
        %v902 = vunpack.c.l.b16 %v831
        %v903 = vunpack.c.l.b16 %v832
        %v904 = vunpack.c.h.b16 %v832
        %v905 = vunpack.c.l.b16 %v833
        %v906 = vunpack.c.l.b16 %v834
        %v907 = vunpack.c.h.b16 %v834
        %v908 = vunpack.c.l.b16 %v835
        %v909 = vunpack.c.l.b16 %v836
        %v910 = vunpack.c.h.b16 %v836
        %v911 = vunpack.c.l.b16 %v837
        %v912 = vunpack.c.l.b16 %v838
        %v913 = vunpack.c.h.b16 %v838
        %v914 = vunpack.c.l.b16 %v839
        %v915 = vunpack.c.l.b16 %v840
        %v916 = vunpack.c.h.b16 %v840
        %v917 = vunpack.c.l.b16 %v841
        %v918 = vunpack.c.l.b16 %v842
        %v919 = vunpack.c.h.b16 %v842
        %v920 = vunpack.c.l.b16 %v843
        %v921 = vunpack.c.l.b16 %v844
        %v922 = vunpack.c.h.b16 %v844
        %v923 = vunpack.c.l.b16 %v845
        %v924 = vunpack.c.l.b16 %v846
        %v925 = vunpack.c.h.b16 %v846
        %v926 = vunpack.c.l.b16 %v847
        %v927 = vunpack.c.l.b16 %v848
        %v928 = vunpack.c.h.b16 %v848
        %v929 = vunpack.c.l.b16 %v849
        %v930 = vunpack.c.l.b16 %v850
        %v931 = vunpack.c.h.b16 %v850
        %v932 = vunpack.c.l.b16 %v851
        %v933 = vpack.c.b16 %v888, %v885
        %v934 = vpack.c.b16 %v889, %v886
        %v935 = vpack.c.b16 %v890, %v887
        %v936 = vpack.c.b16 %v894, %v891
        %v937 = vpack.c.b16 %v895, %v892
        %v938 = vpack.c.b16 %v896, %v893
        %v939 = vpack.c.b16 %v900, %v897
        %v940 = vpack.c.b16 %v901, %v898
        %v941 = vpack.c.b16 %v902, %v899
        %v942 = vpack.c.b16 %v906, %v903
        %v943 = vpack.c.b16 %v907, %v904
        %v944 = vpack.c.b16 %v908, %v905
        %v945 = vpack.c.b16 %v912, %v909
        %v946 = vpack.c.b16 %v913, %v910
        %v947 = vpack.c.b16 %v914, %v911
        %v948 = vpack.c.b16 %v918, %v915
        %v949 = vpack.c.b16 %v919, %v916
        %v950 = vpack.c.b16 %v920, %v917
        %v951 = vpack.c.b16 %v924, %v921
        %v952 = vpack.c.b16 %v925, %v922
        %v953 = vpack.c.b16 %v926, %v923
        %v954 = vpack.c.b16 %v930, %v927
        %v955 = vpack.c.b16 %v931, %v928
        %v956 = vpack.c.b16 %v932, %v929
        %v982 = vperm.slane %v852, 0
        %v983 = vperm.slane %v852, 1
        %v984 = vperm.slane %v852, 2
        %988 = vmatpush.bf16.msra.mxu0 %v954
        %989 = vmatpush.bf16.msra.mxu0 %v951
        %990 = vmatpush.bf16.msra.mxu0 %v948
        %991 = vmatpush.bf16.msra.mxu0 %v945
        %992 = vmatpush.bf16.msra.mxu0 %v942
        %993 = vmatpush.bf16.msra.mxu0 %v939
        %994 = vmatpush.bf16.msra.mxu0 %v936
        %995 = vmatpush.bf16.msra.mxu0 %v933
        %996 = vmatmul.bf16.gmra.mxu0 0
        %v997 = vpop.f32.mrf.mxu0
        %v998 = vadd.f32 %v982, %v997
        %v999 = vpop.f32.mrf.mxu0
        %1000 = vdwg.mxu0
        %1001 = vmatpush.bf16.msra.mxu0 %v955
        %1002 = vmatpush.bf16.msra.mxu0 %v952
        %1003 = vmatpush.bf16.msra.mxu0 %v949
        %1004 = vmatpush.bf16.msra.mxu0 %v946
        %1005 = vmatpush.bf16.msra.mxu0 %v943
        %1006 = vmatpush.bf16.msra.mxu0 %v940
        %1007 = vmatpush.bf16.msra.mxu0 %v937
        %1008 = vmatpush.bf16.msra.mxu0 %v934
        %1009 = vmatmul.bf16.gmra.mxu0 0
        %v1010 = vpop.f32.mrf.mxu0
        %v1011 = vadd.f32 %v983, %v1010
        %v1012 = vpop.f32.mrf.mxu0
        %1013 = vdwg.mxu0
        %1014 = vmatpush.bf16.msra.mxu0 %v956
        %1015 = vmatpush.bf16.msra.mxu0 %v953
        %1016 = vmatpush.bf16.msra.mxu0 %v950
        %1017 = vmatpush.bf16.msra.mxu0 %v947
        %1018 = vmatpush.bf16.msra.mxu0 %v944
        %1019 = vmatpush.bf16.msra.mxu0 %v941
        %1020 = vmatpush.bf16.msra.mxu0 %v938
        %1021 = vmatpush.bf16.msra.mxu0 %v935
        %1022 = vmatmul.bf16.gmra.mxu0 0
        %v1023 = vpop.f32.mrf.mxu0
        %v1024 = vadd.f32 %v984, %v1023
        %v1025 = vpop.f32.mrf.mxu0
        %1026 = vdwg.mxu0
        %v1027 = vadd.f32 %v791, %v998
        %v1028 = vxor.u32 %v1027, 2147483648
        %v1029 = vmul.f32 %v1028, 1.442695
        %v1030 = vpow.pop %v1029
        %v1031 = vadd.f32 %v1030, 1.0
        %v1032 = vrcp.pop %v1031
        %v1033 = vmul.f32 %v1031, %v1032
        %v1034 = vsub.f32 1.0, %v1033
        %v1035 = vmul.f32 %v1032, %v1034
        %v1036 = vadd.f32 %v1032, %v1035
        %vm1037 = vweird.f32 %v1031
        %vm1038 = vweird.f32 %v1032
        %vm1039 = vmor %vm1037, %vm1038
        %v1040 = vsel %vm1039, %v1032, %v1036
        %v1041 = vand.u32 2147483647, %v1031
        %vm1042 = vcmp.eq.f32.partialorder %v1041, 8.507059e+37
        %v1043 = vand.u32 %v1031, 2147483648
        %v1044 = vor.u32 1.1754944e-38, %v1043
        %v1045 = vsel %vm1042, %v1044, %v1040
        %v1046 = vmul.f32 1.0, %v1045
        %v1047 = vadd.f32 %v804, %v1011
        %v1048 = vxor.u32 %v1047, 2147483648
        %v1049 = vmul.f32 %v1048, 1.442695
        %v1050 = vpow.pop %v1049
        %v1051 = vadd.f32 %v1050, 1.0
        %v1052 = vrcp.pop %v1051
        %v1053 = vmul.f32 %v1051, %v1052
        %v1054 = vsub.f32 1.0, %v1053
        %v1055 = vmul.f32 %v1052, %v1054
        %v1056 = vadd.f32 %v1052, %v1055
        %vm1057 = vweird.f32 %v1051
        %vm1058 = vweird.f32 %v1052
        %vm1059 = vmor %vm1057, %vm1058
        %v1060 = vsel %vm1059, %v1052, %v1056
        %v1061 = vand.u32 2147483647, %v1051
        %vm1062 = vcmp.eq.f32.partialorder %v1061, 8.507059e+37
        %v1063 = vand.u32 %v1051, 2147483648
        %v1064 = vor.u32 1.1754944e-38, %v1063
        %v1065 = vsel %vm1062, %v1064, %v1060
        %v1066 = vmul.f32 1.0, %v1065
        %v1067 = vmul.f32 %v1046, %v1024
        %v1068 = vadd.f32 %v817, %v1067
        %v1069 = vtanh.pop %v1068
        %v1070 = vsub.f32 1.0, %v1066
        %v1071 = vmul.f32 %v1070, %v1069
        %v1072 = vmul.f32 %v1066, 0.0
        %v1073 = vadd.f32 %v1071, %v1072
        %v1074 = vpack.c.bf16 %v1073, %v1073
        %1075 = vmatpush.bf16.msra.mxu0 %v954
        %1076 = vmatpush.bf16.msra.mxu0 %v951
        %1077 = vmatpush.bf16.msra.mxu0 %v948
        %1078 = vmatpush.bf16.msra.mxu0 %v945
        %1079 = vmatpush.bf16.msra.mxu0 %v942
        %1080 = vmatpush.bf16.msra.mxu0 %v939
        %1081 = vmatpush.bf16.msra.mxu0 %v936
        %1082 = vmatpush.bf16.msra.mxu0 %v933
        %1083 = vmatmul.bf16.gmra.mxu0 %v1074
        %v1084 = vpop.f32.mrf.mxu0
        %v1085 = vadd.f32 %v982, %v1084
        %v1086 = vpop.f32.mrf.mxu0
        %1087 = vdwg.mxu0
        %1088 = vmatpush.bf16.msra.mxu0 %v955
        %1089 = vmatpush.bf16.msra.mxu0 %v952
        %1090 = vmatpush.bf16.msra.mxu0 %v949
        %1091 = vmatpush.bf16.msra.mxu0 %v946
        %1092 = vmatpush.bf16.msra.mxu0 %v943
        %1093 = vmatpush.bf16.msra.mxu0 %v940
        %1094 = vmatpush.bf16.msra.mxu0 %v937
        %1095 = vmatpush.bf16.msra.mxu0 %v934
        %1096 = vmatmul.bf16.gmra.mxu0 %v1074
        %v1097 = vpop.f32.mrf.mxu0
        %v1098 = vadd.f32 %v983, %v1097
        %v1099 = vpop.f32.mrf.mxu0
        %1100 = vdwg.mxu0
        %1101 = vmatpush.bf16.msra.mxu0 %v956
        %1102 = vmatpush.bf16.msra.mxu0 %v953
        %1103 = vmatpush.bf16.msra.mxu0 %v950
        %1104 = vmatpush.bf16.msra.mxu0 %v947
        %1105 = vmatpush.bf16.msra.mxu0 %v944
        %1106 = vmatpush.bf16.msra.mxu0 %v941
        %1107 = vmatpush.bf16.msra.mxu0 %v938
        %1108 = vmatpush.bf16.msra.mxu0 %v935
        %1109 = vmatmul.bf16.gmra.mxu0 %v1074
        %v1110 = vpop.f32.mrf.mxu0
        %v1111 = vadd.f32 %v984, %v1110
        %v1112 = vpop.f32.mrf.mxu0
        %1113 = vdwg.mxu0
        %v1115 = vrot.slane %v1085, 7
        %v1117 = vadd.f32 %v791, %v1115
        %v1118 = vxor.u32 %v1117, 2147483648
        %v1119 = vmul.f32 %v1118, 1.442695
        %v1120 = vpow.pop %v1119
        %v1121 = vadd.f32 %v1120, 1.0
        %v1122 = vrcp.pop %v1121
        %v1123 = vmul.f32 %v1121, %v1122
        %v1124 = vsub.f32 1.0, %v1123
        %v1125 = vmul.f32 %v1122, %v1124
        %v1126 = vadd.f32 %v1122, %v1125
        %vm1127 = vweird.f32 %v1121
        %vm1128 = vweird.f32 %v1122
        %vm1129 = vmor %vm1127, %vm1128
        %v1130 = vsel %vm1129, %v1122, %v1126
        %v1131 = vand.u32 2147483647, %v1121
        %vm1132 = vcmp.eq.f32.partialorder %v1131, 8.507059e+37
        %v1133 = vand.u32 %v1121, 2147483648
        %v1134 = vor.u32 1.1754944e-38, %v1133
        %v1135 = vsel %vm1132, %v1134, %v1130
        %v1136 = vmul.f32 1.0, %v1135
        %v1138 = vrot.slane %v1098, 7
        %v1140 = vadd.f32 %v804, %v1138
        %v1141 = vxor.u32 %v1140, 2147483648
        %v1142 = vmul.f32 %v1141, 1.442695
        %v1143 = vpow.pop %v1142
        %v1144 = vadd.f32 %v1143, 1.0
        %v1145 = vrcp.pop %v1144
        %v1146 = vmul.f32 %v1144, %v1145
        %v1147 = vsub.f32 1.0, %v1146
        %v1148 = vmul.f32 %v1145, %v1147
        %v1149 = vadd.f32 %v1145, %v1148
        %vm1150 = vweird.f32 %v1144
        %vm1151 = vweird.f32 %v1145
        %vm1152 = vmor %vm1150, %vm1151
        %v1153 = vsel %vm1152, %v1145, %v1149
        %v1154 = vand.u32 2147483647, %v1144
        %vm1155 = vcmp.eq.f32.partialorder %v1154, 8.507059e+37
        %v1156 = vand.u32 %v1144, 2147483648
        %v1157 = vor.u32 1.1754944e-38, %v1156
        %v1158 = vsel %vm1155, %v1157, %v1153
        %v1159 = vmul.f32 1.0, %v1158
        %v1161 = vrot.slane %v1111, 7
        %v1163 = vmul.f32 %v1136, %v1161
        %v1164 = vadd.f32 %v817, %v1163
        %v1165 = vtanh.pop %v1164
        %v1166 = vsub.f32 1.0, %v1159
        %v1167 = vmul.f32 %v1166, %v1165
        %v1169 = vrot.slane %v1073, 7
        %v1171 = vmul.f32 %v1159, %v1169
        %v1172 = vadd.f32 %v1167, %v1171
        %v1173 = vpack.c.bf16 %v1172, %v1172
        %v1175 = vshrl.u32 %v1173, 16
        %1178 = vmatpush.bf16.msra.mxu0 %v954
        %1179 = vmatpush.bf16.msra.mxu0 %v951
        %1180 = vmatpush.bf16.msra.mxu0 %v948
        %1181 = vmatpush.bf16.msra.mxu0 %v945
        %1182 = vmatpush.bf16.msra.mxu0 %v942
        %1183 = vmatpush.bf16.msra.mxu0 %v939
        %1184 = vmatpush.bf16.msra.mxu0 %v936
        %1185 = vmatpush.bf16.msra.mxu0 %v933
        %1186 = vmatmul.bf16.gmra.mxu0 %v1175
        %v1187 = vpop.f32.mrf.mxu0
        %v1188 = vadd.f32 %v982, %v1187
        %v1189 = vpop.f32.mrf.mxu0
        %1190 = vdwg.mxu0
        %1191 = vmatpush.bf16.msra.mxu0 %v955
        %1192 = vmatpush.bf16.msra.mxu0 %v952
        %1193 = vmatpush.bf16.msra.mxu0 %v949
        %1194 = vmatpush.bf16.msra.mxu0 %v946
        %1195 = vmatpush.bf16.msra.mxu0 %v943
        %1196 = vmatpush.bf16.msra.mxu0 %v940
        %1197 = vmatpush.bf16.msra.mxu0 %v937
        %1198 = vmatpush.bf16.msra.mxu0 %v934
        %1199 = vmatmul.bf16.gmra.mxu0 %v1175
        %v1200 = vpop.f32.mrf.mxu0
        %v1201 = vadd.f32 %v983, %v1200
        %v1202 = vpop.f32.mrf.mxu0
        %1203 = vdwg.mxu0
        %1204 = vmatpush.bf16.msra.mxu0 %v956
        %1205 = vmatpush.bf16.msra.mxu0 %v953
        %1206 = vmatpush.bf16.msra.mxu0 %v950
        %1207 = vmatpush.bf16.msra.mxu0 %v947
        %1208 = vmatpush.bf16.msra.mxu0 %v944
        %1209 = vmatpush.bf16.msra.mxu0 %v941
        %1210 = vmatpush.bf16.msra.mxu0 %v938
        %1211 = vmatpush.bf16.msra.mxu0 %v935
        %1212 = vmatmul.bf16.gmra.mxu0 %v1175
        %v1213 = vpop.f32.mrf.mxu0
        %v1214 = vadd.f32 %v984, %v1213
        %v1215 = vpop.f32.mrf.mxu0
        %1216 = vdwg.mxu0
        %v1218 = vrot.slane %v1188, 6
        %v1220 = vadd.f32 %v791, %v1218
        %v1221 = vxor.u32 %v1220, 2147483648
        %v1222 = vmul.f32 %v1221, 1.442695
        %v1223 = vpow.pop %v1222
        %v1224 = vadd.f32 %v1223, 1.0
        %v1225 = vrcp.pop %v1224
        %v1226 = vmul.f32 %v1224, %v1225
        %v1227 = vsub.f32 1.0, %v1226
        %v1228 = vmul.f32 %v1225, %v1227
        %v1229 = vadd.f32 %v1225, %v1228
        %vm1230 = vweird.f32 %v1224
        %vm1231 = vweird.f32 %v1225
        %vm1232 = vmor %vm1230, %vm1231
        %v1233 = vsel %vm1232, %v1225, %v1229
        %v1234 = vand.u32 2147483647, %v1224
        %vm1235 = vcmp.eq.f32.partialorder %v1234, 8.507059e+37
        %v1236 = vand.u32 %v1224, 2147483648
        %v1237 = vor.u32 1.1754944e-38, %v1236
        %v1238 = vsel %vm1235, %v1237, %v1233
        %v1239 = vmul.f32 1.0, %v1238
        %v1241 = vrot.slane %v1201, 6
        %v1243 = vadd.f32 %v804, %v1241
        %v1244 = vxor.u32 %v1243, 2147483648
        %v1245 = vmul.f32 %v1244, 1.442695
        %v1246 = vpow.pop %v1245
        %v1247 = vadd.f32 %v1246, 1.0
        %v1248 = vrcp.pop %v1247
        %v1249 = vmul.f32 %v1247, %v1248
        %v1250 = vsub.f32 1.0, %v1249
        %v1251 = vmul.f32 %v1248, %v1250
        %v1252 = vadd.f32 %v1248, %v1251
        %vm1253 = vweird.f32 %v1247
        %vm1254 = vweird.f32 %v1248
        %vm1255 = vmor %vm1253, %vm1254
        %v1256 = vsel %vm1255, %v1248, %v1252
        %v1257 = vand.u32 2147483647, %v1247
        %vm1258 = vcmp.eq.f32.partialorder %v1257, 8.507059e+37
        %v1259 = vand.u32 %v1247, 2147483648
        %v1260 = vor.u32 1.1754944e-38, %v1259
        %v1261 = vsel %vm1258, %v1260, %v1256
        %v1262 = vmul.f32 1.0, %v1261
        %v1264 = vrot.slane %v1214, 6
        %v1266 = vmul.f32 %v1239, %v1264
        %v1267 = vadd.f32 %v817, %v1266
        %v1268 = vtanh.pop %v1267
        %v1269 = vsub.f32 1.0, %v1262
        %v1270 = vmul.f32 %v1269, %v1268
        %v1272 = vrot.slane %v1172, 7
        %v1274 = vmul.f32 %v1262, %v1272
        %v1275 = vadd.f32 %v1270, %v1274
        %v1276 = vpack.c.bf16 %v1275, %v1275
        %v1278 = vrot.slane %v1276, 1
        %1280 = vmatpush.bf16.msra.mxu0 %v954
        %1281 = vmatpush.bf16.msra.mxu0 %v951
        %1282 = vmatpush.bf16.msra.mxu0 %v948
        %1283 = vmatpush.bf16.msra.mxu0 %v945
        %1284 = vmatpush.bf16.msra.mxu0 %v942
        %1285 = vmatpush.bf16.msra.mxu0 %v939
        %1286 = vmatpush.bf16.msra.mxu0 %v936
        %1287 = vmatpush.bf16.msra.mxu0 %v933
        %1288 = vmatmul.bf16.gmra.mxu0 %v1278
        %v1289 = vpop.f32.mrf.mxu0
        %v1290 = vadd.f32 %v982, %v1289
        %v1291 = vpop.f32.mrf.mxu0
        %1292 = vdwg.mxu0
        %1293 = vmatpush.bf16.msra.mxu0 %v955
        %1294 = vmatpush.bf16.msra.mxu0 %v952
        %1295 = vmatpush.bf16.msra.mxu0 %v949
        %1296 = vmatpush.bf16.msra.mxu0 %v946
        %1297 = vmatpush.bf16.msra.mxu0 %v943
        %1298 = vmatpush.bf16.msra.mxu0 %v940
        %1299 = vmatpush.bf16.msra.mxu0 %v937
        %1300 = vmatpush.bf16.msra.mxu0 %v934
        %1301 = vmatmul.bf16.gmra.mxu0 %v1278
        %v1302 = vpop.f32.mrf.mxu0
        %v1303 = vadd.f32 %v983, %v1302
        %v1304 = vpop.f32.mrf.mxu0
        %1305 = vdwg.mxu0
        %1306 = vmatpush.bf16.msra.mxu0 %v956
        %1307 = vmatpush.bf16.msra.mxu0 %v953
        %1308 = vmatpush.bf16.msra.mxu0 %v950
        %1309 = vmatpush.bf16.msra.mxu0 %v947
        %1310 = vmatpush.bf16.msra.mxu0 %v944
        %1311 = vmatpush.bf16.msra.mxu0 %v941
        %1312 = vmatpush.bf16.msra.mxu0 %v938
        %1313 = vmatpush.bf16.msra.mxu0 %v935
        %1314 = vmatmul.bf16.gmra.mxu0 %v1278
        %v1315 = vpop.f32.mrf.mxu0
        %v1316 = vadd.f32 %v984, %v1315
        %v1317 = vpop.f32.mrf.mxu0
        %1318 = vdwg.mxu0
        %v1320 = vrot.slane %v1290, 5
        %v1322 = vadd.f32 %v791, %v1320
        %v1323 = vxor.u32 %v1322, 2147483648
        %v1324 = vmul.f32 %v1323, 1.442695
        %v1325 = vpow.pop %v1324
        %v1326 = vadd.f32 %v1325, 1.0
        %v1327 = vrcp.pop %v1326
        %v1328 = vmul.f32 %v1326, %v1327
        %v1329 = vsub.f32 1.0, %v1328
        %v1330 = vmul.f32 %v1327, %v1329
        %v1331 = vadd.f32 %v1327, %v1330
        %vm1332 = vweird.f32 %v1326
        %vm1333 = vweird.f32 %v1327
        %vm1334 = vmor %vm1332, %vm1333
        %v1335 = vsel %vm1334, %v1327, %v1331
        %v1336 = vand.u32 2147483647, %v1326
        %vm1337 = vcmp.eq.f32.partialorder %v1336, 8.507059e+37
        %v1338 = vand.u32 %v1326, 2147483648
        %v1339 = vor.u32 1.1754944e-38, %v1338
        %v1340 = vsel %vm1337, %v1339, %v1335
        %v1341 = vmul.f32 1.0, %v1340
        %v1343 = vrot.slane %v1303, 5
        %v1345 = vadd.f32 %v804, %v1343
        %v1346 = vxor.u32 %v1345, 2147483648
        %v1347 = vmul.f32 %v1346, 1.442695
        %v1348 = vpow.pop %v1347
        %v1349 = vadd.f32 %v1348, 1.0
        %v1350 = vrcp.pop %v1349
        %v1351 = vmul.f32 %v1349, %v1350
        %v1352 = vsub.f32 1.0, %v1351
        %v1353 = vmul.f32 %v1350, %v1352
        %v1354 = vadd.f32 %v1350, %v1353
        %vm1355 = vweird.f32 %v1349
        %vm1356 = vweird.f32 %v1350
        %vm1357 = vmor %vm1355, %vm1356
        %v1358 = vsel %vm1357, %v1350, %v1354
        %v1359 = vand.u32 2147483647, %v1349
        %vm1360 = vcmp.eq.f32.partialorder %v1359, 8.507059e+37
        %v1361 = vand.u32 %v1349, 2147483648
        %v1362 = vor.u32 1.1754944e-38, %v1361
        %v1363 = vsel %vm1360, %v1362, %v1358
        %v1364 = vmul.f32 1.0, %v1363
        %v1366 = vrot.slane %v1316, 5
        %v1368 = vmul.f32 %v1341, %v1366
        %v1369 = vadd.f32 %v817, %v1368
        %v1370 = vtanh.pop %v1369
        %v1371 = vsub.f32 1.0, %v1364
        %v1372 = vmul.f32 %v1371, %v1370
        %v1374 = vrot.slane %v1275, 7
        %v1376 = vmul.f32 %v1364, %v1374
        %v1377 = vadd.f32 %v1372, %v1376
        %v1378 = vpack.c.bf16 %v1377, %v1377
        %v1380 = vshrl.u32 %v1378, 16
        %v1382 = vrot.slane %v1380, 1
        %1384 = vmatpush.bf16.msra.mxu0 %v954
        %1385 = vmatpush.bf16.msra.mxu0 %v951
        %1386 = vmatpush.bf16.msra.mxu0 %v948
        %1387 = vmatpush.bf16.msra.mxu0 %v945
        %1388 = vmatpush.bf16.msra.mxu0 %v942
        %1389 = vmatpush.bf16.msra.mxu0 %v939
        %1390 = vmatpush.bf16.msra.mxu0 %v936
        %1391 = vmatpush.bf16.msra.mxu0 %v933
        %1392 = vmatmul.bf16.gmra.mxu0 %v1382
        %v1393 = vpop.f32.mrf.mxu0
        %v1394 = vadd.f32 %v982, %v1393
        %v1395 = vpop.f32.mrf.mxu0
        %1396 = vdwg.mxu0
        %1397 = vmatpush.bf16.msra.mxu0 %v955
        %1398 = vmatpush.bf16.msra.mxu0 %v952
        %1399 = vmatpush.bf16.msra.mxu0 %v949
        %1400 = vmatpush.bf16.msra.mxu0 %v946
        %1401 = vmatpush.bf16.msra.mxu0 %v943
        %1402 = vmatpush.bf16.msra.mxu0 %v940
        %1403 = vmatpush.bf16.msra.mxu0 %v937
        %1404 = vmatpush.bf16.msra.mxu0 %v934
        %1405 = vmatmul.bf16.gmra.mxu0 %v1382
        %v1406 = vpop.f32.mrf.mxu0
        %v1407 = vadd.f32 %v983, %v1406
        %v1408 = vpop.f32.mrf.mxu0
        %1409 = vdwg.mxu0
        %1410 = vmatpush.bf16.msra.mxu0 %v956
        %1411 = vmatpush.bf16.msra.mxu0 %v953
        %1412 = vmatpush.bf16.msra.mxu0 %v950
        %1413 = vmatpush.bf16.msra.mxu0 %v947
        %1414 = vmatpush.bf16.msra.mxu0 %v944
        %1415 = vmatpush.bf16.msra.mxu0 %v941
        %1416 = vmatpush.bf16.msra.mxu0 %v938
        %1417 = vmatpush.bf16.msra.mxu0 %v935
        %1418 = vmatmul.bf16.gmra.mxu0 %v1382
        %v1419 = vpop.f32.mrf.mxu0
        %v1420 = vadd.f32 %v984, %v1419
        %v1421 = vpop.f32.mrf.mxu0
        %1422 = vdwg.mxu0
        %v1424 = vrot.slane %v1394, 4
        %v1426 = vadd.f32 %v791, %v1424
        %v1427 = vxor.u32 %v1426, 2147483648
        %v1428 = vmul.f32 %v1427, 1.442695
        %v1429 = vpow.pop %v1428
        %v1430 = vadd.f32 %v1429, 1.0
        %v1431 = vrcp.pop %v1430
        %v1432 = vmul.f32 %v1430, %v1431
        %v1433 = vsub.f32 1.0, %v1432
        %v1434 = vmul.f32 %v1431, %v1433
        %v1435 = vadd.f32 %v1431, %v1434
        %vm1436 = vweird.f32 %v1430
        %vm1437 = vweird.f32 %v1431
        %vm1438 = vmor %vm1436, %vm1437
        %v1439 = vsel %vm1438, %v1431, %v1435
        %v1440 = vand.u32 2147483647, %v1430
        %vm1441 = vcmp.eq.f32.partialorder %v1440, 8.507059e+37
        %v1442 = vand.u32 %v1430, 2147483648
        %v1443 = vor.u32 1.1754944e-38, %v1442
        %v1444 = vsel %vm1441, %v1443, %v1439
        %v1445 = vmul.f32 1.0, %v1444
        %v1447 = vrot.slane %v1407, 4
        %v1449 = vadd.f32 %v804, %v1447
        %v1450 = vxor.u32 %v1449, 2147483648
        %v1451 = vmul.f32 %v1450, 1.442695
        %v1452 = vpow.pop %v1451
        %v1453 = vadd.f32 %v1452, 1.0
        %v1454 = vrcp.pop %v1453
        %v1455 = vmul.f32 %v1453, %v1454
        %v1456 = vsub.f32 1.0, %v1455
        %v1457 = vmul.f32 %v1454, %v1456
        %v1458 = vadd.f32 %v1454, %v1457
        %vm1459 = vweird.f32 %v1453
        %vm1460 = vweird.f32 %v1454
        %vm1461 = vmor %vm1459, %vm1460
        %v1462 = vsel %vm1461, %v1454, %v1458
        %v1463 = vand.u32 2147483647, %v1453
        %vm1464 = vcmp.eq.f32.partialorder %v1463, 8.507059e+37
        %v1465 = vand.u32 %v1453, 2147483648
        %v1466 = vor.u32 1.1754944e-38, %v1465
        %v1467 = vsel %vm1464, %v1466, %v1462
        %v1468 = vmul.f32 1.0, %v1467
        %v1470 = vrot.slane %v1420, 4
        %v1472 = vmul.f32 %v1445, %v1470
        %v1473 = vadd.f32 %v817, %v1472
        %v1474 = vtanh.pop %v1473
        %v1475 = vsub.f32 1.0, %v1468
        %v1476 = vmul.f32 %v1475, %v1474
        %v1478 = vrot.slane %v1377, 7
        %v1480 = vmul.f32 %v1468, %v1478
        %v1481 = vadd.f32 %v1476, %v1480
        %v1482 = vpack.c.bf16 %v1481, %v1481
        %v1484 = vrot.slane %v1482, 2
        %1486 = vmatpush.bf16.msra.mxu0 %v954
        %1487 = vmatpush.bf16.msra.mxu0 %v951
        %1488 = vmatpush.bf16.msra.mxu0 %v948
        %1489 = vmatpush.bf16.msra.mxu0 %v945
        %1490 = vmatpush.bf16.msra.mxu0 %v942
        %1491 = vmatpush.bf16.msra.mxu0 %v939
        %1492 = vmatpush.bf16.msra.mxu0 %v936
        %1493 = vmatpush.bf16.msra.mxu0 %v933
        %1494 = vmatmul.bf16.gmra.mxu0 %v1484
        %v1495 = vpop.f32.mrf.mxu0
        %v1496 = vadd.f32 %v982, %v1495
        %v1497 = vpop.f32.mrf.mxu0
        %1498 = vdwg.mxu0
        %1499 = vmatpush.bf16.msra.mxu0 %v955
        %1500 = vmatpush.bf16.msra.mxu0 %v952
        %1501 = vmatpush.bf16.msra.mxu0 %v949
        %1502 = vmatpush.bf16.msra.mxu0 %v946
        %1503 = vmatpush.bf16.msra.mxu0 %v943
        %1504 = vmatpush.bf16.msra.mxu0 %v940
        %1505 = vmatpush.bf16.msra.mxu0 %v937
        %1506 = vmatpush.bf16.msra.mxu0 %v934
        %1507 = vmatmul.bf16.gmra.mxu0 %v1484
        %v1508 = vpop.f32.mrf.mxu0
        %v1509 = vadd.f32 %v983, %v1508
        %v1510 = vpop.f32.mrf.mxu0
        %1511 = vdwg.mxu0
        %1512 = vmatpush.bf16.msra.mxu0 %v956
        %1513 = vmatpush.bf16.msra.mxu0 %v953
        %1514 = vmatpush.bf16.msra.mxu0 %v950
        %1515 = vmatpush.bf16.msra.mxu0 %v947
        %1516 = vmatpush.bf16.msra.mxu0 %v944
        %1517 = vmatpush.bf16.msra.mxu0 %v941
        %1518 = vmatpush.bf16.msra.mxu0 %v938
        %1519 = vmatpush.bf16.msra.mxu0 %v935
        %1520 = vmatmul.bf16.gmra.mxu0 %v1484
        %v1521 = vpop.f32.mrf.mxu0
        %v1522 = vadd.f32 %v984, %v1521
        %v1523 = vpop.f32.mrf.mxu0
        %1524 = vdwg.mxu0
        %v1526 = vrot.slane %v1496, 3
        %v1528 = vadd.f32 %v791, %v1526
        %v1529 = vxor.u32 %v1528, 2147483648
        %v1530 = vmul.f32 %v1529, 1.442695
        %v1531 = vpow.pop %v1530
        %v1532 = vadd.f32 %v1531, 1.0
        %v1533 = vrcp.pop %v1532
        %v1534 = vmul.f32 %v1532, %v1533
        %v1535 = vsub.f32 1.0, %v1534
        %v1536 = vmul.f32 %v1533, %v1535
        %v1537 = vadd.f32 %v1533, %v1536
        %vm1538 = vweird.f32 %v1532
        %vm1539 = vweird.f32 %v1533
        %vm1540 = vmor %vm1538, %vm1539
        %v1541 = vsel %vm1540, %v1533, %v1537
        %v1542 = vand.u32 2147483647, %v1532
        %vm1543 = vcmp.eq.f32.partialorder %v1542, 8.507059e+37
        %v1544 = vand.u32 %v1532, 2147483648
        %v1545 = vor.u32 1.1754944e-38, %v1544
        %v1546 = vsel %vm1543, %v1545, %v1541
        %v1547 = vmul.f32 1.0, %v1546
        %v1549 = vrot.slane %v1509, 3
        %v1551 = vadd.f32 %v804, %v1549
        %v1552 = vxor.u32 %v1551, 2147483648
        %v1553 = vmul.f32 %v1552, 1.442695
        %v1554 = vpow.pop %v1553
        %v1555 = vadd.f32 %v1554, 1.0
        %v1556 = vrcp.pop %v1555
        %v1557 = vmul.f32 %v1555, %v1556
        %v1558 = vsub.f32 1.0, %v1557
        %v1559 = vmul.f32 %v1556, %v1558
        %v1560 = vadd.f32 %v1556, %v1559
        %vm1561 = vweird.f32 %v1555
        %vm1562 = vweird.f32 %v1556
        %vm1563 = vmor %vm1561, %vm1562
        %v1564 = vsel %vm1563, %v1556, %v1560
        %v1565 = vand.u32 2147483647, %v1555
        %vm1566 = vcmp.eq.f32.partialorder %v1565, 8.507059e+37
        %v1567 = vand.u32 %v1555, 2147483648
        %v1568 = vor.u32 1.1754944e-38, %v1567
        %v1569 = vsel %vm1566, %v1568, %v1564
        %v1570 = vmul.f32 1.0, %v1569
        %v1572 = vrot.slane %v1522, 3
        %v1574 = vmul.f32 %v1547, %v1572
        %v1575 = vadd.f32 %v817, %v1574
        %v1576 = vtanh.pop %v1575
        %v1577 = vsub.f32 1.0, %v1570
        %v1578 = vmul.f32 %v1577, %v1576
        %v1580 = vrot.slane %v1481, 7
        %v1582 = vmul.f32 %v1570, %v1580
        %v1583 = vadd.f32 %v1578, %v1582
        %v1584 = vpack.c.bf16 %v1583, %v1583
        %v1586 = vshrl.u32 %v1584, 16
        %v1588 = vrot.slane %v1586, 2
        %1590 = vmatpush.bf16.msra.mxu0 %v954
        %1591 = vmatpush.bf16.msra.mxu0 %v951
        %1592 = vmatpush.bf16.msra.mxu0 %v948
        %1593 = vmatpush.bf16.msra.mxu0 %v945
        %1594 = vmatpush.bf16.msra.mxu0 %v942
        %1595 = vmatpush.bf16.msra.mxu0 %v939
        %1596 = vmatpush.bf16.msra.mxu0 %v936
        %1597 = vmatpush.bf16.msra.mxu0 %v933
        %1598 = vmatmul.bf16.gmra.mxu0 %v1588
        %v1599 = vpop.f32.mrf.mxu0
        %v1600 = vadd.f32 %v982, %v1599
        %v1601 = vpop.f32.mrf.mxu0
        %1602 = vdwg.mxu0
        %1603 = vmatpush.bf16.msra.mxu0 %v955
        %1604 = vmatpush.bf16.msra.mxu0 %v952
        %1605 = vmatpush.bf16.msra.mxu0 %v949
        %1606 = vmatpush.bf16.msra.mxu0 %v946
        %1607 = vmatpush.bf16.msra.mxu0 %v943
        %1608 = vmatpush.bf16.msra.mxu0 %v940
        %1609 = vmatpush.bf16.msra.mxu0 %v937
        %1610 = vmatpush.bf16.msra.mxu0 %v934
        %1611 = vmatmul.bf16.gmra.mxu0 %v1588
        %v1612 = vpop.f32.mrf.mxu0
        %v1613 = vadd.f32 %v983, %v1612
        %v1614 = vpop.f32.mrf.mxu0
        %1615 = vdwg.mxu0
        %1616 = vmatpush.bf16.msra.mxu0 %v956
        %1617 = vmatpush.bf16.msra.mxu0 %v953
        %1618 = vmatpush.bf16.msra.mxu0 %v950
        %1619 = vmatpush.bf16.msra.mxu0 %v947
        %1620 = vmatpush.bf16.msra.mxu0 %v944
        %1621 = vmatpush.bf16.msra.mxu0 %v941
        %1622 = vmatpush.bf16.msra.mxu0 %v938
        %1623 = vmatpush.bf16.msra.mxu0 %v935
        %1624 = vmatmul.bf16.gmra.mxu0 %v1588
        %v1625 = vpop.f32.mrf.mxu0
        %v1626 = vadd.f32 %v984, %v1625
        %v1627 = vpop.f32.mrf.mxu0
        %1628 = vdwg.mxu0
        %v1630 = vrot.slane %v1600, 2
        %v1632 = vadd.f32 %v791, %v1630
        %v1633 = vxor.u32 %v1632, 2147483648
        %v1634 = vmul.f32 %v1633, 1.442695
        %v1635 = vpow.pop %v1634
        %v1636 = vadd.f32 %v1635, 1.0
        %v1637 = vrcp.pop %v1636
        %v1638 = vmul.f32 %v1636, %v1637
        %v1639 = vsub.f32 1.0, %v1638
        %v1640 = vmul.f32 %v1637, %v1639
        %v1641 = vadd.f32 %v1637, %v1640
        %vm1642 = vweird.f32 %v1636
        %vm1643 = vweird.f32 %v1637
        %vm1644 = vmor %vm1642, %vm1643
        %v1645 = vsel %vm1644, %v1637, %v1641
        %v1646 = vand.u32 2147483647, %v1636
        %vm1647 = vcmp.eq.f32.partialorder %v1646, 8.507059e+37
        %v1648 = vand.u32 %v1636, 2147483648
        %v1649 = vor.u32 1.1754944e-38, %v1648
        %v1650 = vsel %vm1647, %v1649, %v1645
        %v1651 = vmul.f32 1.0, %v1650
        %v1653 = vrot.slane %v1613, 2
        %v1655 = vadd.f32 %v804, %v1653
        %v1656 = vxor.u32 %v1655, 2147483648
        %v1657 = vmul.f32 %v1656, 1.442695
        %v1658 = vpow.pop %v1657
        %v1659 = vadd.f32 %v1658, 1.0
        %v1660 = vrcp.pop %v1659
        %v1661 = vmul.f32 %v1659, %v1660
        %v1662 = vsub.f32 1.0, %v1661
        %v1663 = vmul.f32 %v1660, %v1662
        %v1664 = vadd.f32 %v1660, %v1663
        %vm1665 = vweird.f32 %v1659
        %vm1666 = vweird.f32 %v1660
        %vm1667 = vmor %vm1665, %vm1666
        %v1668 = vsel %vm1667, %v1660, %v1664
        %v1669 = vand.u32 2147483647, %v1659
        %vm1670 = vcmp.eq.f32.partialorder %v1669, 8.507059e+37
        %v1671 = vand.u32 %v1659, 2147483648
        %v1672 = vor.u32 1.1754944e-38, %v1671
        %v1673 = vsel %vm1670, %v1672, %v1668
        %v1674 = vmul.f32 1.0, %v1673
        %v1676 = vrot.slane %v1626, 2
        %v1678 = vmul.f32 %v1651, %v1676
        %v1679 = vadd.f32 %v817, %v1678
        %v1680 = vtanh.pop %v1679
        %v1681 = vsub.f32 1.0, %v1674
        %v1682 = vmul.f32 %v1681, %v1680
        %v1684 = vrot.slane %v1583, 7
        %v1686 = vmul.f32 %v1674, %v1684
        %v1687 = vadd.f32 %v1682, %v1686
        %v1688 = vpack.c.bf16 %v1687, %v1687
        %v1690 = vrot.slane %v1688, 3
        %1692 = vmatpush.bf16.msra.mxu0 %v954
        %1693 = vmatpush.bf16.msra.mxu0 %v951
        %1694 = vmatpush.bf16.msra.mxu0 %v948
        %1695 = vmatpush.bf16.msra.mxu0 %v945
        %1696 = vmatpush.bf16.msra.mxu0 %v942
        %1697 = vmatpush.bf16.msra.mxu0 %v939
        %1698 = vmatpush.bf16.msra.mxu0 %v936
        %1699 = vmatpush.bf16.msra.mxu0 %v933
        %1700 = vmatmul.bf16.gmra.mxu0 %v1690
        %v1701 = vpop.f32.mrf.mxu0
        %v1702 = vadd.f32 %v982, %v1701
        %v1703 = vpop.f32.mrf.mxu0
        %1704 = vdwg.mxu0
        %1705 = vmatpush.bf16.msra.mxu0 %v955
        %1706 = vmatpush.bf16.msra.mxu0 %v952
        %1707 = vmatpush.bf16.msra.mxu0 %v949
        %1708 = vmatpush.bf16.msra.mxu0 %v946
        %1709 = vmatpush.bf16.msra.mxu0 %v943
        %1710 = vmatpush.bf16.msra.mxu0 %v940
        %1711 = vmatpush.bf16.msra.mxu0 %v937
        %1712 = vmatpush.bf16.msra.mxu0 %v934
        %1713 = vmatmul.bf16.gmra.mxu0 %v1690
        %v1714 = vpop.f32.mrf.mxu0
        %v1715 = vadd.f32 %v983, %v1714
        %v1716 = vpop.f32.mrf.mxu0
        %1717 = vdwg.mxu0
        %1718 = vmatpush.bf16.msra.mxu0 %v956
        %1719 = vmatpush.bf16.msra.mxu0 %v953
        %1720 = vmatpush.bf16.msra.mxu0 %v950
        %1721 = vmatpush.bf16.msra.mxu0 %v947
        %1722 = vmatpush.bf16.msra.mxu0 %v944
        %1723 = vmatpush.bf16.msra.mxu0 %v941
        %1724 = vmatpush.bf16.msra.mxu0 %v938
        %1725 = vmatpush.bf16.msra.mxu0 %v935
        %1726 = vmatmul.bf16.gmra.mxu0 %v1690
        %v1727 = vpop.f32.mrf.mxu0
        %v1728 = vadd.f32 %v984, %v1727
        %v1729 = vpop.f32.mrf.mxu0
        %1730 = vdwg.mxu0
        %v1732 = vrot.slane %v1702, 1
        %v1734 = vadd.f32 %v791, %v1732
        %v1735 = vxor.u32 %v1734, 2147483648
        %v1736 = vmul.f32 %v1735, 1.442695
        %v1737 = vpow.pop %v1736
        %v1738 = vadd.f32 %v1737, 1.0
        %v1739 = vrcp.pop %v1738
        %v1740 = vmul.f32 %v1738, %v1739
        %v1741 = vsub.f32 1.0, %v1740
        %v1742 = vmul.f32 %v1739, %v1741
        %v1743 = vadd.f32 %v1739, %v1742
        %vm1744 = vweird.f32 %v1738
        %vm1745 = vweird.f32 %v1739
        %vm1746 = vmor %vm1744, %vm1745
        %v1747 = vsel %vm1746, %v1739, %v1743
        %v1748 = vand.u32 2147483647, %v1738
        %vm1749 = vcmp.eq.f32.partialorder %v1748, 8.507059e+37
        %v1750 = vand.u32 %v1738, 2147483648
        %v1751 = vor.u32 1.1754944e-38, %v1750
        %v1752 = vsel %vm1749, %v1751, %v1747
        %v1753 = vmul.f32 1.0, %v1752
        %v1755 = vrot.slane %v1715, 1
        %v1757 = vadd.f32 %v804, %v1755
        %v1758 = vxor.u32 %v1757, 2147483648
        %v1759 = vmul.f32 %v1758, 1.442695
        %v1760 = vpow.pop %v1759
        %v1761 = vadd.f32 %v1760, 1.0
        %v1762 = vrcp.pop %v1761
        %v1763 = vmul.f32 %v1761, %v1762
        %v1764 = vsub.f32 1.0, %v1763
        %v1765 = vmul.f32 %v1762, %v1764
        %v1766 = vadd.f32 %v1762, %v1765
        %vm1767 = vweird.f32 %v1761
        %vm1768 = vweird.f32 %v1762
        %vm1769 = vmor %vm1767, %vm1768
        %v1770 = vsel %vm1769, %v1762, %v1766
        %v1771 = vand.u32 2147483647, %v1761
        %vm1772 = vcmp.eq.f32.partialorder %v1771, 8.507059e+37
        %v1773 = vand.u32 %v1761, 2147483648
        %v1774 = vor.u32 1.1754944e-38, %v1773
        %v1775 = vsel %vm1772, %v1774, %v1770
        %v1776 = vmul.f32 1.0, %v1775
        %v1778 = vrot.slane %v1728, 1
        %v1780 = vmul.f32 %v1753, %v1778
        %v1781 = vadd.f32 %v817, %v1780
        %v1782 = vtanh.pop %v1781
        %v1783 = vsub.f32 1.0, %v1776
        %v1784 = vmul.f32 %v1783, %v1782
        %v1786 = vrot.slane %v1687, 7
        %v1788 = vmul.f32 %v1776, %v1786
        %v1789 = vadd.f32 %v1784, %v1788
        %vm1790 = vcmask 1040384
        %v1791 = vsel %vm1790, %v1073, %v1172
        %vm1792 = vcmask 1041408
        %v1793 = vsel %vm1792, %v1791, %v1275
        %vm1794 = vcmask 1042432
        %v1795 = vsel %vm1794, %v1793, %v1377
        %vm1796 = vcmask 1043456
        %v1797 = vsel %vm1796, %v1795, %v1481
        %vm1798 = vcmask 1044480
        %v1799 = vsel %vm1798, %v1797, %v1583
        %vm1800 = vcmask 1045504
        %v1801 = vsel %vm1800, %v1799, %v1687
        %vm1802 = vcmask 1046528
        %v1803 = vsel %vm1802, %v1801, %v1789
        %v1804 = vpack.c.bf16 %v1803, %v1803
        %v1805 = vld [vmem:[#allocation11] sm:$0xff]
        %v1806 = vld [vmem:[#allocation11 + $0x8] sm:$0xff]
        %v1807 = vld [vmem:[#allocation11 + $0x10] sm:$0xff]
        %v1808 = vld [vmem:[#allocation11 + $0x18] sm:$0xff]
        %v1809 = vld [vmem:[#allocation11 + $0x20] sm:$0xff]
        %v1810 = vld [vmem:[#allocation11 + $0x28] sm:$0xff]
        %v1811 = vld [vmem:[#allocation11 + $0x30] sm:$0xff]
        %v1812 = vld [vmem:[#allocation11 + $0x38] sm:$0xff]
        %v1813 = vld [vmem:[%s6] sm:$0x3]
        %v1815 = vperm.slane %v1813, 0
        %v1816 = vperm.slane %v1813, 1
        %v1827 = vunpack.c.l.b16 %v1805
        %v1828 = vunpack.c.h.b16 %v1805
        %v1829 = vunpack.c.l.b16 %v1806
        %v1830 = vunpack.c.h.b16 %v1806
        %v1831 = vunpack.c.l.b16 %v1807
        %v1832 = vunpack.c.h.b16 %v1807
        %v1833 = vunpack.c.l.b16 %v1808
        %v1834 = vunpack.c.h.b16 %v1808
        %v1835 = vunpack.c.l.b16 %v1809
        %v1836 = vunpack.c.h.b16 %v1809
        %v1837 = vunpack.c.l.b16 %v1810
        %v1838 = vunpack.c.h.b16 %v1810
        %v1839 = vunpack.c.l.b16 %v1811
        %v1840 = vunpack.c.h.b16 %v1811
        %v1841 = vunpack.c.l.b16 %v1812
        %v1842 = vunpack.c.h.b16 %v1812
        %v1843 = vpack.c.b16 %v1829, %v1827
        %v1844 = vpack.c.b16 %v1830, %v1828
        %v1845 = vpack.c.b16 %v1833, %v1831
        %v1846 = vpack.c.b16 %v1834, %v1832
        %v1847 = vpack.c.b16 %v1837, %v1835
        %v1848 = vpack.c.b16 %v1838, %v1836
        %v1849 = vpack.c.b16 %v1841, %v1839
        %v1850 = vpack.c.b16 %v1842, %v1840
        %vm1859 = vcmask 523264
        %v1861 = vsel %vm1859, %v1804, 0
        %1863 = vmatpush.bf16.msra.mxu0 0
        %1864 = vmatpush.bf16.msra.mxu0 0
        %1865 = vmatpush.bf16.msra.mxu0 0
        %1866 = vmatpush.bf16.msra.mxu0 0
        %1867 = vmatpush.bf16.msra.mxu0 %v1849
        %1868 = vmatpush.bf16.msra.mxu0 %v1847
        %1869 = vmatpush.bf16.msra.mxu0 %v1845
        %1870 = vmatpush.bf16.msra.mxu0 %v1843
        %1871 = vmatmul.bf16.gmra.mxu0 %v1861
        %v1872 = vpop.f32.mrf.mxu0
        %v1873 = vadd.f32 %v1815, %v1872
        %v1874 = vpop.f32.mrf.mxu0
        %1875 = vdwg.mxu0
        %1876 = vmatpush.bf16.msra.mxu0 0
        %1877 = vmatpush.bf16.msra.mxu0 0
        %1878 = vmatpush.bf16.msra.mxu0 0
        %1879 = vmatpush.bf16.msra.mxu0 0
        %1880 = vmatpush.bf16.msra.mxu0 %v1850
        %1881 = vmatpush.bf16.msra.mxu0 %v1848
        %1882 = vmatpush.bf16.msra.mxu0 %v1846
        %1883 = vmatpush.bf16.msra.mxu0 %v1844
        %1884 = vmatmul.bf16.gmra.mxu0 %v1861
        %v1885 = vpop.f32.mrf.mxu0
        %v1886 = vadd.f32 %v1816, %v1885
        %v1887 = vpop.f32.mrf.mxu0
        %1888 = vdwg.mxu0
        %1890 = vrot.lane.b32.xlu0 %v1873, 112
        %v1891 = vpop.permute.xlu0 %1890
        %1893 = vrot.lane.b32.xlu0 %v1873, 96
        %v1894 = vpop.permute.xlu0 %1893
        %1896 = vrot.lane.b32.xlu0 %v1873, 80
        %v1897 = vpop.permute.xlu0 %1896
        %v1899 = vpack.c.bf16 %v1873, %v1873
        %v1900 = vpack.c.bf16 %v1891, %v1891
        %v1901 = vpack.c.bf16 %v1894, %v1894
        %v1902 = vpack.c.bf16 %v1897, %v1897
        %1904 = vrot.lane.b32.xlu0 %v1886, 112
        %v1905 = vpop.permute.xlu0 %1904
        %1907 = vrot.lane.b32.xlu0 %v1886, 96
        %v1908 = vpop.permute.xlu0 %1907
        %1910 = vrot.lane.b32.xlu0 %v1886, 80
        %v1911 = vpop.permute.xlu0 %1910
        %v1913 = vpack.c.bf16 %v1886, %v1886
        %v1914 = vpack.c.bf16 %v1905, %v1905
        %v1915 = vpack.c.bf16 %v1908, %v1908
        %v1916 = vpack.c.bf16 %v1911, %v1911
        %v1918 = vunpack.c.l.b16 %v1899
        %v1919 = vpack.c.b16 %v1918, %v1918
        %1920 = vrot.lane.b32.xlu0 %v1919, 64
        %v1921 = vpop.permute.xlu0 %1920
        %vm1922 = vcmask 130048
        %v1924 = vsel %vm1922, %v1899, 0
        %v1927 = vsel %vm1922, %v1921, 0
        %1929 = vmatpush.bf16.xpose.msra.mxu0 0
        %1930 = vmatpush.bf16.xpose.msra.mxu0 0
        %1931 = vmatpush.bf16.xpose.msra.mxu0 0
        %1932 = vmatpush.bf16.xpose.msra.mxu0 0
        %1933 = vmatpush.bf16.xpose.msra.mxu0 0
        %1934 = vmatpush.bf16.xpose.msra.mxu0 0
        %1935 = vmatpush.bf16.xpose.msra.mxu0 0
        %1936 = vmatpush.bf16.xpose.msra.mxu0 %v1927
        %1937 = vmatmul.bf16.gmra.mxu0 %v1924
        %v1938 = vpop.f32.mrf.mxu0
        %v1939 = vadd.f32 0.0, %v1938
        %v1940 = vpop.f32.mrf.mxu0
        %1941 = vdwg.mxu0
        %v1943 = vunpack.c.l.b16 %v1900
        %v1944 = vpack.c.b16 %v1943, %v1943
        %1945 = vrot.lane.b32.xlu0 %v1944, 64
        %v1946 = vpop.permute.xlu0 %1945
        %v1948 = vsel %vm1922, %v1900, 0
        %v1951 = vsel %vm1922, %v1946, 0
        %1953 = vmatpush.bf16.xpose.msra.mxu0 0
        %1954 = vmatpush.bf16.xpose.msra.mxu0 0
        %1955 = vmatpush.bf16.xpose.msra.mxu0 0
        %1956 = vmatpush.bf16.xpose.msra.mxu0 0
        %1957 = vmatpush.bf16.xpose.msra.mxu0 0
        %1958 = vmatpush.bf16.xpose.msra.mxu0 0
        %1959 = vmatpush.bf16.xpose.msra.mxu0 0
        %1960 = vmatpush.bf16.xpose.msra.mxu0 %v1951
        %1961 = vmatmul.bf16.gmra.mxu0 %v1948
        %v1962 = vpop.f32.mrf.mxu0
        %v1963 = vadd.f32 0.0, %v1962
        %v1964 = vpop.f32.mrf.mxu0
        %1965 = vdwg.mxu0
        %v1967 = vunpack.c.l.b16 %v1901
        %v1968 = vpack.c.b16 %v1967, %v1967
        %1969 = vrot.lane.b32.xlu0 %v1968, 64
        %v1970 = vpop.permute.xlu0 %1969
        %v1972 = vsel %vm1922, %v1901, 0
        %v1975 = vsel %vm1922, %v1970, 0
        %1977 = vmatpush.bf16.xpose.msra.mxu0 0
        %1978 = vmatpush.bf16.xpose.msra.mxu0 0
        %1979 = vmatpush.bf16.xpose.msra.mxu0 0
        %1980 = vmatpush.bf16.xpose.msra.mxu0 0
        %1981 = vmatpush.bf16.xpose.msra.mxu0 0
        %1982 = vmatpush.bf16.xpose.msra.mxu0 0
        %1983 = vmatpush.bf16.xpose.msra.mxu0 0
        %1984 = vmatpush.bf16.xpose.msra.mxu0 %v1975
        %1985 = vmatmul.bf16.gmra.mxu0 %v1972
        %v1986 = vpop.f32.mrf.mxu0
        %v1987 = vadd.f32 0.0, %v1986
        %v1988 = vpop.f32.mrf.mxu0
        %1989 = vdwg.mxu0
        %v1991 = vunpack.c.l.b16 %v1902
        %v1992 = vpack.c.b16 %v1991, %v1991
        %1993 = vrot.lane.b32.xlu0 %v1992, 64
        %v1994 = vpop.permute.xlu0 %1993
        %v1996 = vsel %vm1922, %v1902, 0
        %v1999 = vsel %vm1922, %v1994, 0
        %2001 = vmatpush.bf16.xpose.msra.mxu0 0
        %2002 = vmatpush.bf16.xpose.msra.mxu0 0
        %2003 = vmatpush.bf16.xpose.msra.mxu0 0
        %2004 = vmatpush.bf16.xpose.msra.mxu0 0
        %2005 = vmatpush.bf16.xpose.msra.mxu0 0
        %2006 = vmatpush.bf16.xpose.msra.mxu0 0
        %2007 = vmatpush.bf16.xpose.msra.mxu0 0
        %2008 = vmatpush.bf16.xpose.msra.mxu0 %v1999
        %2009 = vmatmul.bf16.gmra.mxu0 %v1996
        %v2010 = vpop.f32.mrf.mxu0
        %v2011 = vadd.f32 0.0, %v2010
        %v2012 = vpop.f32.mrf.mxu0
        %2013 = vdwg.mxu0
        %vm2014 = vcmask 64512
        %v2015 = vsel %vm2014, %v1939, -inf
        %2016 = vmax.xlane.f32.xlu0 %v2015
        %v2017 = vpop.xlane.xlu0 %2016
        %v2018 = vsel %vm2014, %v1963, -inf
        %2019 = vmax.xlane.f32.xlu0 %v2018
        %v2020 = vpop.xlane.xlu0 %2019
        %v2021 = vsel %vm2014, %v1987, -inf
        %2022 = vmax.xlane.f32.xlu0 %v2021
        %v2023 = vpop.xlane.xlu0 %2022
        %v2024 = vsel %vm2014, %v2011, -inf
        %2025 = vmax.xlane.f32.xlu0 %v2024
        %v2026 = vpop.xlane.xlu0 %2025
        %v2027 = vsub.f32 %v1939, %v2017
        %v2028 = vsub.f32 %v1963, %v2020
        %v2029 = vsub.f32 %v1987, %v2023
        %v2030 = vsub.f32 %v2011, %v2026
        %v2031 = vmul.f32 %v2027, 1.442695
        %v2032 = vpow.pop %v2031
        %v2033 = vmul.f32 %v2028, 1.442695
        %v2034 = vpow.pop %v2033
        %v2035 = vmul.f32 %v2029, 1.442695
        %v2036 = vpow.pop %v2035
        %v2037 = vmul.f32 %v2030, 1.442695
        %v2038 = vpow.pop %v2037
        %v2039 = vsel %vm2014, %v2032, 0.0
        %2040 = vadd.xlane.f32.xlu0 %v2039
        %v2041 = vpop.xlane.xlu0 %2040
        %v2042 = vsel %vm2014, %v2034, 0.0
        %2043 = vadd.xlane.f32.xlu0 %v2042
        %v2044 = vpop.xlane.xlu0 %2043
        %v2045 = vsel %vm2014, %v2036, 0.0
        %2046 = vadd.xlane.f32.xlu0 %v2045
        %v2047 = vpop.xlane.xlu0 %2046
        %v2048 = vsel %vm2014, %v2038, 0.0
        %2049 = vadd.xlane.f32.xlu0 %v2048
        %v2050 = vpop.xlane.xlu0 %2049
        %v2051 = vrcp.pop %v2041
        %v2052 = vmul.f32 %v2041, %v2051
        %v2053 = vsub.f32 1.0, %v2052
        %v2054 = vmul.f32 %v2051, %v2053
        %v2055 = vadd.f32 %v2051, %v2054
        %vm2056 = vweird.f32 %v2041
        %vm2057 = vweird.f32 %v2051
        %vm2058 = vmor %vm2056, %vm2057
        %v2059 = vsel %vm2058, %v2051, %v2055
        %v2060 = vand.u32 2147483647, %v2041
        %vm2061 = vcmp.eq.f32.partialorder %v2060, 8.507059e+37
        %v2062 = vand.u32 %v2041, 2147483648
        %v2063 = vor.u32 1.1754944e-38, %v2062
        %v2064 = vsel %vm2061, %v2063, %v2059
        %v2065 = vrcp.pop %v2044
        %v2066 = vmul.f32 %v2044, %v2065
        %v2067 = vsub.f32 1.0, %v2066
        %v2068 = vmul.f32 %v2065, %v2067
        %v2069 = vadd.f32 %v2065, %v2068
        %vm2070 = vweird.f32 %v2044
        %vm2071 = vweird.f32 %v2065
        %vm2072 = vmor %vm2070, %vm2071
        %v2073 = vsel %vm2072, %v2065, %v2069
        %v2074 = vand.u32 2147483647, %v2044
        %vm2075 = vcmp.eq.f32.partialorder %v2074, 8.507059e+37
        %v2076 = vand.u32 %v2044, 2147483648
        %v2077 = vor.u32 1.1754944e-38, %v2076
        %v2078 = vsel %vm2075, %v2077, %v2073
        %v2079 = vrcp.pop %v2047
        %v2080 = vmul.f32 %v2047, %v2079
        %v2081 = vsub.f32 1.0, %v2080
        %v2082 = vmul.f32 %v2079, %v2081
        %v2083 = vadd.f32 %v2079, %v2082
        %vm2084 = vweird.f32 %v2047
        %vm2085 = vweird.f32 %v2079
        %vm2086 = vmor %vm2084, %vm2085
        %v2087 = vsel %vm2086, %v2079, %v2083
        %v2088 = vand.u32 2147483647, %v2047
        %vm2089 = vcmp.eq.f32.partialorder %v2088, 8.507059e+37
        %v2090 = vand.u32 %v2047, 2147483648
        %v2091 = vor.u32 1.1754944e-38, %v2090
        %v2092 = vsel %vm2089, %v2091, %v2087
        %v2093 = vrcp.pop %v2050
        %v2094 = vmul.f32 %v2050, %v2093
        %v2095 = vsub.f32 1.0, %v2094
        %v2096 = vmul.f32 %v2093, %v2095
        %v2097 = vadd.f32 %v2093, %v2096
        %vm2098 = vweird.f32 %v2050
        %vm2099 = vweird.f32 %v2093
        %vm2100 = vmor %vm2098, %vm2099
        %v2101 = vsel %vm2100, %v2093, %v2097
        %v2102 = vand.u32 2147483647, %v2050
        %vm2103 = vcmp.eq.f32.partialorder %v2102, 8.507059e+37
        %v2104 = vand.u32 %v2050, 2147483648
        %v2105 = vor.u32 1.1754944e-38, %v2104
        %v2106 = vsel %vm2103, %v2105, %v2101
        %v2107 = vmul.f32 %v2032, %v2064
        %v2108 = vmul.f32 %v2034, %v2078
        %v2109 = vmul.f32 %v2036, %v2092
        %v2110 = vmul.f32 %v2038, %v2106
        %v2111 = vpack.c.bf16 %v2107, %v2107
        %v2112 = vpack.c.bf16 %v2108, %v2108
        %v2113 = vpack.c.bf16 %v2109, %v2109
        %v2114 = vpack.c.bf16 %v2110, %v2110
        %v2116 = vsel %vm2014, %v2111, 0
        %v2119 = vsel %vm1796, %v1913, 0
        %2121 = vmatpush.bf16.msra.mxu0 0
        %2122 = vmatpush.bf16.msra.mxu0 0
        %2123 = vmatpush.bf16.msra.mxu0 0
        %2124 = vmatpush.bf16.msra.mxu0 0
        %2125 = vmatpush.bf16.msra.mxu0 0
        %2126 = vmatpush.bf16.msra.mxu0 0
        %2127 = vmatpush.bf16.msra.mxu0 0
        %2128 = vmatpush.bf16.msra.mxu0 %v2119
        %2129 = vmatmul.bf16.gmra.mxu0 %v2116
        %v2130 = vpop.f32.mrf.mxu0
        %v2131 = vadd.f32 0.0, %v2130
        %v2132 = vpop.f32.mrf.mxu0
        %2133 = vdwg.mxu0
        %v2135 = vsel %vm2014, %v2112, 0
        %v2138 = vsel %vm1796, %v1914, 0
        %2140 = vmatpush.bf16.msra.mxu0 0
        %2141 = vmatpush.bf16.msra.mxu0 0
        %2142 = vmatpush.bf16.msra.mxu0 0
        %2143 = vmatpush.bf16.msra.mxu0 0
        %2144 = vmatpush.bf16.msra.mxu0 0
        %2145 = vmatpush.bf16.msra.mxu0 0
        %2146 = vmatpush.bf16.msra.mxu0 0
        %2147 = vmatpush.bf16.msra.mxu0 %v2138
        %2148 = vmatmul.bf16.gmra.mxu0 %v2135
        %v2149 = vpop.f32.mrf.mxu0
        %v2150 = vadd.f32 0.0, %v2149
        %v2151 = vpop.f32.mrf.mxu0
        %2152 = vdwg.mxu0
        %v2154 = vsel %vm2014, %v2113, 0
        %v2157 = vsel %vm1796, %v1915, 0
        %2159 = vmatpush.bf16.msra.mxu0 0
        %2160 = vmatpush.bf16.msra.mxu0 0
        %2161 = vmatpush.bf16.msra.mxu0 0
        %2162 = vmatpush.bf16.msra.mxu0 0
        %2163 = vmatpush.bf16.msra.mxu0 0
        %2164 = vmatpush.bf16.msra.mxu0 0
        %2165 = vmatpush.bf16.msra.mxu0 0
        %2166 = vmatpush.bf16.msra.mxu0 %v2157
        %2167 = vmatmul.bf16.gmra.mxu0 %v2154
        %v2168 = vpop.f32.mrf.mxu0
        %v2169 = vadd.f32 0.0, %v2168
        %v2170 = vpop.f32.mrf.mxu0
        %2171 = vdwg.mxu0
        %v2173 = vsel %vm2014, %v2114, 0
        %v2176 = vsel %vm1796, %v1916, 0
        %2178 = vmatpush.bf16.msra.mxu0 0
        %2179 = vmatpush.bf16.msra.mxu0 0
        %2180 = vmatpush.bf16.msra.mxu0 0
        %2181 = vmatpush.bf16.msra.mxu0 0
        %2182 = vmatpush.bf16.msra.mxu0 0
        %2183 = vmatpush.bf16.msra.mxu0 0
        %2184 = vmatpush.bf16.msra.mxu0 0
        %2185 = vmatpush.bf16.msra.mxu0 %v2176
        %2186 = vmatmul.bf16.gmra.mxu0 %v2173
        %v2187 = vpop.f32.mrf.mxu0
        %v2188 = vadd.f32 0.0, %v2187
        %v2189 = vpop.f32.mrf.mxu0
        %2190 = vdwg.mxu0
        %2192 = vrot.lane.b32.xlu0 %v2150, 16
        %v2193 = vpop.permute.xlu0 %2192
        %2196 = vrot.lane.b32.xlu0 %v2169, 32
        %v2197 = vpop.permute.xlu0 %2196
        %2200 = vrot.lane.b32.xlu0 %v2188, 48
        %v2201 = vpop.permute.xlu0 %2200
        %v2203 = vsel %vm1922, %v2131, %v2193
        %v2204 = vsel %vm777, %v2203, %v2197
        %vm2205 = vcmask 392192
        %v2206 = vsel %vm2205, %v2204, %v2201
        %v2207 = vpack.c.bf16 %v2206, %v2206
        %v2208 = vld [vmem:[#allocation13] sm:$0xf]
        %v2209 = vld [vmem:[#allocation13 + $0x4] sm:$0xf]
        %v2210 = vld [vmem:[#allocation13 + $0x8] sm:$0xf]
        %v2211 = vld [vmem:[#allocation13 + $0xc] sm:$0xf]
        %v2212 = vld [vmem:[#allocation13 + $0x10] sm:$0xf]
        %v2213 = vld [vmem:[#allocation13 + $0x14] sm:$0xf]
        %v2214 = vld [vmem:[#allocation13 + $0x18] sm:$0xf]
        %v2215 = vld [vmem:[#allocation13 + $0x1c] sm:$0xf]
        %v2216 = vld [vmem:[%s8] sm:$0x1]
        %v2218 = vperm.slane %v2216, 0
        %v2228 = vunpack.c.l.b16 %v2208
        %v2229 = vunpack.c.l.b16 %v2209
        %v2230 = vunpack.c.l.b16 %v2210
        %v2231 = vunpack.c.l.b16 %v2211
        %v2232 = vunpack.c.l.b16 %v2212
        %v2233 = vunpack.c.l.b16 %v2213
        %v2234 = vunpack.c.l.b16 %v2214
        %v2235 = vunpack.c.l.b16 %v2215
        %v2236 = vpack.c.b16 %v2229, %v2228
        %v2237 = vpack.c.b16 %v2231, %v2230
        %v2238 = vpack.c.b16 %v2233, %v2232
        %v2239 = vpack.c.b16 %v2235, %v2234
        %v2245 = vsel %vm1859, %v2207, 0
        %2247 = vmatpush.bf16.msra.mxu0 0
        %2248 = vmatpush.bf16.msra.mxu0 0
        %2249 = vmatpush.bf16.msra.mxu0 0
        %2250 = vmatpush.bf16.msra.mxu0 0
        %2251 = vmatpush.bf16.msra.mxu0 %v2239
        %2252 = vmatpush.bf16.msra.mxu0 %v2238
        %2253 = vmatpush.bf16.msra.mxu0 %v2237
        %2254 = vmatpush.bf16.msra.mxu0 %v2236
        %2255 = vmatmul.bf16.gmra.mxu0 %v2245
        %v2256 = vpop.f32.mrf.mxu0
        %v2257 = vadd.f32 %v2218, %v2256
        %v2258 = vpop.f32.mrf.mxu0
        %2259 = vdwg.mxu0
        %v2260 = vadd.f32 %v1803, %v2257
        %v2261 = vld [vmem:[%s9] sm:$0x1]
        %v2262 = vld [vmem:[#allocation14] sm:$0x1]
        %v2263 = vsel %vm1859, %v2260, 0.0
        %2264 = vadd.xlane.f32.xlu0 %v2263
        %v2265 = vpop.xlane.xlu0 %2264
        %v2266 = vrcp.pop 64.0
        %v2267 = vmul.f32 64.0, %v2266
        %v2268 = vsub.f32 1.0, %v2267
        %v2269 = vmul.f32 %v2266, %v2268
        %v2270 = vadd.f32 %v2266, %v2269
        %vm2271 = vweird.f32 %v2266
        %v2272 = vsel %vm2271, %v2266, %v2270
        %v2273 = vmul.f32 %v2265, %v2272
        %v2274 = vsub.f32 %v2260, %v2273
        %v2275 = vmul.f32 %v2274, %v2274
        %v2276 = vsel %vm1859, %v2275, 0.0
        %2277 = vadd.xlane.f32.xlu0 %v2276
        %v2278 = vpop.xlane.xlu0 %2277
        %v2279 = vmul.f32 %v2278, %v2272
        %v2280 = vadd.f32 %v2279, 1e-05
        %v2281 = vrsqrt.pop %v2280
        %v2282 = vmul.f32 %v2281, %v2280
        %v2283 = vmul.f32 %v2282, %v2281
        %v2284 = vmul.f32 0.5, %v2283
        %v2285 = vsub.f32 1.5, %v2284
        %v2286 = vmul.f32 %v2281, %v2285
        %vm2287 = vweird.f32 %v2280
        %vm2288 = vweird.f32 %v2281
        %vm2289 = vmor %vm2287, %vm2288
        %v2290 = vsel %vm2289, %v2281, %v2286
        %v2291 = vmul.f32 %v2274, %v2290
        %v2293 = vperm.slane %v2261, 0
        %v2295 = vmul.f32 %v2291, %v2293
        %v2297 = vperm.slane %v2262, 0
        %v2299 = vadd.f32 %v2295, %v2297
        %v2300 = vpack.c.bf16 %v2299, %v2299
        %v2301 = vld [vmem:[#allocation16] sm:$0xf]
        %v2302 = vld [vmem:[#allocation16 + $0x4] sm:$0xf]
        %v2303 = vld [vmem:[#allocation16 + $0x8] sm:$0xf]
        %v2304 = vld [vmem:[#allocation16 + $0xc] sm:$0xf]
        %v2305 = vld [vmem:[#allocation16 + $0x10] sm:$0xf]
        %v2306 = vld [vmem:[#allocation16 + $0x14] sm:$0xf]
        %v2307 = vld [vmem:[#allocation16 + $0x18] sm:$0xf]
        %v2308 = vld [vmem:[#allocation16 + $0x1c] sm:$0xf]
        %v2309 = vld [vmem:[%s12] sm:$0x1]
        %v2311 = vperm.slane %v2309, 0
        %v2321 = vunpack.c.l.b16 %v2301
        %v2322 = vunpack.c.l.b16 %v2302
        %v2323 = vunpack.c.l.b16 %v2303
        %v2324 = vunpack.c.l.b16 %v2304
        %v2325 = vunpack.c.l.b16 %v2305
        %v2326 = vunpack.c.l.b16 %v2306
        %v2327 = vunpack.c.l.b16 %v2307
        %v2328 = vunpack.c.l.b16 %v2308
        %v2329 = vpack.c.b16 %v2322, %v2321
        %v2330 = vpack.c.b16 %v2324, %v2323
        %v2331 = vpack.c.b16 %v2326, %v2325
        %v2332 = vpack.c.b16 %v2328, %v2327
        %v2338 = vsel %vm1859, %v2300, 0
        %2340 = vmatpush.bf16.msra.mxu0 0
        %2341 = vmatpush.bf16.msra.mxu0 0
        %2342 = vmatpush.bf16.msra.mxu0 0
        %2343 = vmatpush.bf16.msra.mxu0 0
        %2344 = vmatpush.bf16.msra.mxu0 %v2332
        %2345 = vmatpush.bf16.msra.mxu0 %v2331
        %2346 = vmatpush.bf16.msra.mxu0 %v2330
        %2347 = vmatpush.bf16.msra.mxu0 %v2329
        %2348 = vmatmul.bf16.gmra.mxu0 %v2338
        %v2349 = vpop.f32.mrf.mxu0
        %v2350 = vadd.f32 %v2311, %v2349
        %v2351 = vpop.f32.mrf.mxu0
        %2352 = vdwg.mxu0
        %v2353 = vmax.f32 %v2350, 0.0
        %v2354 = vpack.c.bf16 %v2353, %v2353
        %v2355 = vld [vmem:[#allocation17] sm:$0xf]
        %v2356 = vld [vmem:[#allocation17 + $0x4] sm:$0xf]
        %v2357 = vld [vmem:[#allocation17 + $0x8] sm:$0xf]
        %v2358 = vld [vmem:[#allocation17 + $0xc] sm:$0xf]
        %v2359 = vld [vmem:[#allocation17 + $0x10] sm:$0xf]
        %v2360 = vld [vmem:[#allocation17 + $0x14] sm:$0xf]
        %v2361 = vld [vmem:[#allocation17 + $0x18] sm:$0xf]
        %v2362 = vld [vmem:[#allocation17 + $0x1c] sm:$0xf]
        %v2363 = vld [vmem:[%s14] sm:$0x1]
        %v2365 = vperm.slane %v2363, 0
        %v2375 = vunpack.c.l.b16 %v2355
        %v2376 = vunpack.c.l.b16 %v2356
        %v2377 = vunpack.c.l.b16 %v2357
        %v2378 = vunpack.c.l.b16 %v2358
        %v2379 = vunpack.c.l.b16 %v2359
        %v2380 = vunpack.c.l.b16 %v2360
        %v2381 = vunpack.c.l.b16 %v2361
        %v2382 = vunpack.c.l.b16 %v2362
        %v2383 = vpack.c.b16 %v2376, %v2375
        %v2384 = vpack.c.b16 %v2378, %v2377
        %v2385 = vpack.c.b16 %v2380, %v2379
        %v2386 = vpack.c.b16 %v2382, %v2381
        %v2392 = vsel %vm1859, %v2354, 0
        %2394 = vmatpush.bf16.msra.mxu0 0
        %2395 = vmatpush.bf16.msra.mxu0 0
        %2396 = vmatpush.bf16.msra.mxu0 0
        %2397 = vmatpush.bf16.msra.mxu0 0
        %2398 = vmatpush.bf16.msra.mxu0 %v2386
        %2399 = vmatpush.bf16.msra.mxu0 %v2385
        %2400 = vmatpush.bf16.msra.mxu0 %v2384
        %2401 = vmatpush.bf16.msra.mxu0 %v2383
        %2402 = vmatmul.bf16.gmra.mxu0 %v2392
        %v2403 = vpop.f32.mrf.mxu0
        %v2404 = vadd.f32 %v2365, %v2403
        %v2405 = vpop.f32.mrf.mxu0
        %2406 = vdwg.mxu0
        %v2407 = vadd.f32 %v2299, %v2404
        %v2408 = vld [vmem:[%s15] sm:$0x1]
        %v2409 = vld [vmem:[#allocation19] sm:$0x1]
        %v2410 = vsel %vm1859, %v2407, 0.0
        %2411 = vadd.xlane.f32.xlu0 %v2410
        %v2412 = vpop.xlane.xlu0 %2411
        %v2413 = vmul.f32 %v2412, %v2272
        %v2414 = vsub.f32 %v2407, %v2413
        %v2415 = vmul.f32 %v2414, %v2414
        %v2416 = vsel %vm1859, %v2415, 0.0
        %2417 = vadd.xlane.f32.xlu0 %v2416
        %v2418 = vpop.xlane.xlu0 %2417
        %v2419 = vmul.f32 %v2418, %v2272
        %v2420 = vadd.f32 %v2419, 1e-05
        %v2421 = vrsqrt.pop %v2420
        %v2422 = vmul.f32 %v2421, %v2420
        %v2423 = vmul.f32 %v2422, %v2421
        %v2424 = vmul.f32 0.5, %v2423
        %v2425 = vsub.f32 1.5, %v2424
        %v2426 = vmul.f32 %v2421, %v2425
        %vm2427 = vweird.f32 %v2420
        %vm2428 = vweird.f32 %v2421
        %vm2429 = vmor %vm2427, %vm2428
        %v2430 = vsel %vm2429, %v2421, %v2426
        %v2431 = vmul.f32 %v2414, %v2430
        %v2433 = vperm.slane %v2408, 0
        %v2435 = vmul.f32 %v2431, %v2433
        %v2437 = vperm.slane %v2409, 0
        %v2439 = vadd.f32 %v2435, %v2437
        %v2440 = vpack.c.bf16 %v2439, %v2439
        %s2441 = scalar_lea.vmem [#allocation11], 64
        %v2442 = vld [vmem:[%s2441] sm:$0xff]
        %v2443 = vld [vmem:[%s2441 + $0x8] sm:$0xff]
        %v2444 = vld [vmem:[%s2441 + $0x10] sm:$0xff]
        %v2445 = vld [vmem:[%s2441 + $0x18] sm:$0xff]
        %v2446 = vld [vmem:[%s2441 + $0x20] sm:$0xff]
        %v2447 = vld [vmem:[%s2441 + $0x28] sm:$0xff]
        %v2448 = vld [vmem:[%s2441 + $0x30] sm:$0xff]
        %v2449 = vld [vmem:[%s2441 + $0x38] sm:$0xff]
        %s2450 = scalar_lea.vmem %s6, 2
        %v2451 = vld [vmem:[%s2450] sm:$0x3]
        %v2453 = vperm.slane %v2451, 0
        %v2454 = vperm.slane %v2451, 1
        %v2465 = vunpack.c.l.b16 %v2442
        %v2466 = vunpack.c.h.b16 %v2442
        %v2467 = vunpack.c.l.b16 %v2443
        %v2468 = vunpack.c.h.b16 %v2443
        %v2469 = vunpack.c.l.b16 %v2444
        %v2470 = vunpack.c.h.b16 %v2444
        %v2471 = vunpack.c.l.b16 %v2445
        %v2472 = vunpack.c.h.b16 %v2445
        %v2473 = vunpack.c.l.b16 %v2446
        %v2474 = vunpack.c.h.b16 %v2446
        %v2475 = vunpack.c.l.b16 %v2447
        %v2476 = vunpack.c.h.b16 %v2447
        %v2477 = vunpack.c.l.b16 %v2448
        %v2478 = vunpack.c.h.b16 %v2448
        %v2479 = vunpack.c.l.b16 %v2449
        %v2480 = vunpack.c.h.b16 %v2449
        %v2481 = vpack.c.b16 %v2467, %v2465
        %v2482 = vpack.c.b16 %v2468, %v2466
        %v2483 = vpack.c.b16 %v2471, %v2469
        %v2484 = vpack.c.b16 %v2472, %v2470
        %v2485 = vpack.c.b16 %v2475, %v2473
        %v2486 = vpack.c.b16 %v2476, %v2474
        %v2487 = vpack.c.b16 %v2479, %v2477
        %v2488 = vpack.c.b16 %v2480, %v2478
        %v2498 = vsel %vm1859, %v2440, 0
        %2500 = vmatpush.bf16.msra.mxu0 0
        %2501 = vmatpush.bf16.msra.mxu0 0
        %2502 = vmatpush.bf16.msra.mxu0 0
        %2503 = vmatpush.bf16.msra.mxu0 0
        %2504 = vmatpush.bf16.msra.mxu0 %v2487
        %2505 = vmatpush.bf16.msra.mxu0 %v2485
        %2506 = vmatpush.bf16.msra.mxu0 %v2483
        %2507 = vmatpush.bf16.msra.mxu0 %v2481
        %2508 = vmatmul.bf16.gmra.mxu0 %v2498
        %v2509 = vpop.f32.mrf.mxu0
        %v2510 = vadd.f32 %v2453, %v2509
        %v2511 = vpop.f32.mrf.mxu0
        %2512 = vdwg.mxu0
        %2513 = vmatpush.bf16.msra.mxu0 0
        %2514 = vmatpush.bf16.msra.mxu0 0
        %2515 = vmatpush.bf16.msra.mxu0 0
        %2516 = vmatpush.bf16.msra.mxu0 0
        %2517 = vmatpush.bf16.msra.mxu0 %v2488
        %2518 = vmatpush.bf16.msra.mxu0 %v2486
        %2519 = vmatpush.bf16.msra.mxu0 %v2484
        %2520 = vmatpush.bf16.msra.mxu0 %v2482
        %2521 = vmatmul.bf16.gmra.mxu0 %v2498
        %v2522 = vpop.f32.mrf.mxu0
        %v2523 = vadd.f32 %v2454, %v2522
        %v2524 = vpop.f32.mrf.mxu0
        %2525 = vdwg.mxu0
        %2527 = vrot.lane.b32.xlu0 %v2510, 112
        %v2528 = vpop.permute.xlu0 %2527
        %2530 = vrot.lane.b32.xlu0 %v2510, 96
        %v2531 = vpop.permute.xlu0 %2530
        %2533 = vrot.lane.b32.xlu0 %v2510, 80
        %v2534 = vpop.permute.xlu0 %2533
        %v2536 = vpack.c.bf16 %v2510, %v2510
        %v2537 = vpack.c.bf16 %v2528, %v2528
        %v2538 = vpack.c.bf16 %v2531, %v2531
        %v2539 = vpack.c.bf16 %v2534, %v2534
        %2541 = vrot.lane.b32.xlu0 %v2523, 112
        %v2542 = vpop.permute.xlu0 %2541
        %2544 = vrot.lane.b32.xlu0 %v2523, 96
        %v2545 = vpop.permute.xlu0 %2544
        %2547 = vrot.lane.b32.xlu0 %v2523, 80
        %v2548 = vpop.permute.xlu0 %2547
        %v2550 = vpack.c.bf16 %v2523, %v2523
        %v2551 = vpack.c.bf16 %v2542, %v2542
        %v2552 = vpack.c.bf16 %v2545, %v2545
        %v2553 = vpack.c.bf16 %v2548, %v2548
        %v2555 = vunpack.c.l.b16 %v2536
        %v2556 = vpack.c.b16 %v2555, %v2555
        %2557 = vrot.lane.b32.xlu0 %v2556, 64
        %v2558 = vpop.permute.xlu0 %2557
        %v2560 = vsel %vm1922, %v2536, 0
        %v2563 = vsel %vm1922, %v2558, 0
        %2565 = vmatpush.bf16.xpose.msra.mxu0 0
        %2566 = vmatpush.bf16.xpose.msra.mxu0 0
        %2567 = vmatpush.bf16.xpose.msra.mxu0 0
        %2568 = vmatpush.bf16.xpose.msra.mxu0 0
        %2569 = vmatpush.bf16.xpose.msra.mxu0 0
        %2570 = vmatpush.bf16.xpose.msra.mxu0 0
        %2571 = vmatpush.bf16.xpose.msra.mxu0 0
        %2572 = vmatpush.bf16.xpose.msra.mxu0 %v2563
        %2573 = vmatmul.bf16.gmra.mxu0 %v2560
        %v2574 = vpop.f32.mrf.mxu0
        %v2575 = vadd.f32 0.0, %v2574
        %v2576 = vpop.f32.mrf.mxu0
        %2577 = vdwg.mxu0
        %v2579 = vunpack.c.l.b16 %v2537
        %v2580 = vpack.c.b16 %v2579, %v2579
        %2581 = vrot.lane.b32.xlu0 %v2580, 64
        %v2582 = vpop.permute.xlu0 %2581
        %v2584 = vsel %vm1922, %v2537, 0
        %v2587 = vsel %vm1922, %v2582, 0
        %2589 = vmatpush.bf16.xpose.msra.mxu0 0
        %2590 = vmatpush.bf16.xpose.msra.mxu0 0
        %2591 = vmatpush.bf16.xpose.msra.mxu0 0
        %2592 = vmatpush.bf16.xpose.msra.mxu0 0
        %2593 = vmatpush.bf16.xpose.msra.mxu0 0
        %2594 = vmatpush.bf16.xpose.msra.mxu0 0
        %2595 = vmatpush.bf16.xpose.msra.mxu0 0
        %2596 = vmatpush.bf16.xpose.msra.mxu0 %v2587
        %2597 = vmatmul.bf16.gmra.mxu0 %v2584
        %v2598 = vpop.f32.mrf.mxu0
        %v2599 = vadd.f32 0.0, %v2598
        %v2600 = vpop.f32.mrf.mxu0
        %2601 = vdwg.mxu0
        %v2603 = vunpack.c.l.b16 %v2538
        %v2604 = vpack.c.b16 %v2603, %v2603
        %2605 = vrot.lane.b32.xlu0 %v2604, 64
        %v2606 = vpop.permute.xlu0 %2605
        %v2608 = vsel %vm1922, %v2538, 0
        %v2611 = vsel %vm1922, %v2606, 0
        %2613 = vmatpush.bf16.xpose.msra.mxu0 0
        %2614 = vmatpush.bf16.xpose.msra.mxu0 0
        %2615 = vmatpush.bf16.xpose.msra.mxu0 0
        %2616 = vmatpush.bf16.xpose.msra.mxu0 0
        %2617 = vmatpush.bf16.xpose.msra.mxu0 0
        %2618 = vmatpush.bf16.xpose.msra.mxu0 0
        %2619 = vmatpush.bf16.xpose.msra.mxu0 0
        %2620 = vmatpush.bf16.xpose.msra.mxu0 %v2611
        %2621 = vmatmul.bf16.gmra.mxu0 %v2608
        %v2622 = vpop.f32.mrf.mxu0
        %v2623 = vadd.f32 0.0, %v2622
        %v2624 = vpop.f32.mrf.mxu0
        %2625 = vdwg.mxu0
        %v2627 = vunpack.c.l.b16 %v2539
        %v2628 = vpack.c.b16 %v2627, %v2627
        %2629 = vrot.lane.b32.xlu0 %v2628, 64
        %v2630 = vpop.permute.xlu0 %2629
        %v2632 = vsel %vm1922, %v2539, 0
        %v2635 = vsel %vm1922, %v2630, 0
        %2637 = vmatpush.bf16.xpose.msra.mxu0 0
        %2638 = vmatpush.bf16.xpose.msra.mxu0 0
        %2639 = vmatpush.bf16.xpose.msra.mxu0 0
        %2640 = vmatpush.bf16.xpose.msra.mxu0 0
        %2641 = vmatpush.bf16.xpose.msra.mxu0 0
        %2642 = vmatpush.bf16.xpose.msra.mxu0 0
        %2643 = vmatpush.bf16.xpose.msra.mxu0 0
        %2644 = vmatpush.bf16.xpose.msra.mxu0 %v2635
        %2645 = vmatmul.bf16.gmra.mxu0 %v2632
        %v2646 = vpop.f32.mrf.mxu0
        %v2647 = vadd.f32 0.0, %v2646
        %v2648 = vpop.f32.mrf.mxu0
        %2649 = vdwg.mxu0
        %v2650 = vsel %vm2014, %v2575, -inf
        %2651 = vmax.xlane.f32.xlu0 %v2650
        %v2652 = vpop.xlane.xlu0 %2651
        %v2653 = vsel %vm2014, %v2599, -inf
        %2654 = vmax.xlane.f32.xlu0 %v2653
        %v2655 = vpop.xlane.xlu0 %2654
        %v2656 = vsel %vm2014, %v2623, -inf
        %2657 = vmax.xlane.f32.xlu0 %v2656
        %v2658 = vpop.xlane.xlu0 %2657
        %v2659 = vsel %vm2014, %v2647, -inf
        %2660 = vmax.xlane.f32.xlu0 %v2659
        %v2661 = vpop.xlane.xlu0 %2660
        %v2662 = vsub.f32 %v2575, %v2652
        %v2663 = vsub.f32 %v2599, %v2655
        %v2664 = vsub.f32 %v2623, %v2658
        %v2665 = vsub.f32 %v2647, %v2661
        %v2666 = vmul.f32 %v2662, 1.442695
        %v2667 = vpow.pop %v2666
        %v2668 = vmul.f32 %v2663, 1.442695
        %v2669 = vpow.pop %v2668
        %v2670 = vmul.f32 %v2664, 1.442695
        %v2671 = vpow.pop %v2670
        %v2672 = vmul.f32 %v2665, 1.442695
        %v2673 = vpow.pop %v2672
        %v2674 = vsel %vm2014, %v2667, 0.0
        %2675 = vadd.xlane.f32.xlu0 %v2674
        %v2676 = vpop.xlane.xlu0 %2675
        %v2677 = vsel %vm2014, %v2669, 0.0
        %2678 = vadd.xlane.f32.xlu0 %v2677
        %v2679 = vpop.xlane.xlu0 %2678
        %v2680 = vsel %vm2014, %v2671, 0.0
        %2681 = vadd.xlane.f32.xlu0 %v2680
        %v2682 = vpop.xlane.xlu0 %2681
        %v2683 = vsel %vm2014, %v2673, 0.0
        %2684 = vadd.xlane.f32.xlu0 %v2683
        %v2685 = vpop.xlane.xlu0 %2684
        %v2686 = vrcp.pop %v2676
        %v2687 = vmul.f32 %v2676, %v2686
        %v2688 = vsub.f32 1.0, %v2687
        %v2689 = vmul.f32 %v2686, %v2688
        %v2690 = vadd.f32 %v2686, %v2689
        %vm2691 = vweird.f32 %v2676
        %vm2692 = vweird.f32 %v2686
        %vm2693 = vmor %vm2691, %vm2692
        %v2694 = vsel %vm2693, %v2686, %v2690
        %v2695 = vand.u32 2147483647, %v2676
        %vm2696 = vcmp.eq.f32.partialorder %v2695, 8.507059e+37
        %v2697 = vand.u32 %v2676, 2147483648
        %v2698 = vor.u32 1.1754944e-38, %v2697
        %v2699 = vsel %vm2696, %v2698, %v2694
        %v2700 = vrcp.pop %v2679
        %v2701 = vmul.f32 %v2679, %v2700
        %v2702 = vsub.f32 1.0, %v2701
        %v2703 = vmul.f32 %v2700, %v2702
        %v2704 = vadd.f32 %v2700, %v2703
        %vm2705 = vweird.f32 %v2679
        %vm2706 = vweird.f32 %v2700
        %vm2707 = vmor %vm2705, %vm2706
        %v2708 = vsel %vm2707, %v2700, %v2704
        %v2709 = vand.u32 2147483647, %v2679
        %vm2710 = vcmp.eq.f32.partialorder %v2709, 8.507059e+37
        %v2711 = vand.u32 %v2679, 2147483648
        %v2712 = vor.u32 1.1754944e-38, %v2711
        %v2713 = vsel %vm2710, %v2712, %v2708
        %v2714 = vrcp.pop %v2682
        %v2715 = vmul.f32 %v2682, %v2714
        %v2716 = vsub.f32 1.0, %v2715
        %v2717 = vmul.f32 %v2714, %v2716
        %v2718 = vadd.f32 %v2714, %v2717
        %vm2719 = vweird.f32 %v2682
        %vm2720 = vweird.f32 %v2714
        %vm2721 = vmor %vm2719, %vm2720
        %v2722 = vsel %vm2721, %v2714, %v2718
        %v2723 = vand.u32 2147483647, %v2682
        %vm2724 = vcmp.eq.f32.partialorder %v2723, 8.507059e+37
        %v2725 = vand.u32 %v2682, 2147483648
        %v2726 = vor.u32 1.1754944e-38, %v2725
        %v2727 = vsel %vm2724, %v2726, %v2722
        %v2728 = vrcp.pop %v2685
        %v2729 = vmul.f32 %v2685, %v2728
        %v2730 = vsub.f32 1.0, %v2729
        %v2731 = vmul.f32 %v2728, %v2730
        %v2732 = vadd.f32 %v2728, %v2731
        %vm2733 = vweird.f32 %v2685
        %vm2734 = vweird.f32 %v2728
        %vm2735 = vmor %vm2733, %vm2734
        %v2736 = vsel %vm2735, %v2728, %v2732
        %v2737 = vand.u32 2147483647, %v2685
        %vm2738 = vcmp.eq.f32.partialorder %v2737, 8.507059e+37
        %v2739 = vand.u32 %v2685, 2147483648
        %v2740 = vor.u32 1.1754944e-38, %v2739
        %v2741 = vsel %vm2738, %v2740, %v2736
        %v2742 = vmul.f32 %v2667, %v2699
        %v2743 = vmul.f32 %v2669, %v2713
        %v2744 = vmul.f32 %v2671, %v2727
        %v2745 = vmul.f32 %v2673, %v2741
        %v2746 = vpack.c.bf16 %v2742, %v2742
        %v2747 = vpack.c.bf16 %v2743, %v2743
        %v2748 = vpack.c.bf16 %v2744, %v2744
        %v2749 = vpack.c.bf16 %v2745, %v2745
        %v2751 = vsel %vm2014, %v2746, 0
        %v2754 = vsel %vm1796, %v2550, 0
        %2756 = vmatpush.bf16.msra.mxu0 0
        %2757 = vmatpush.bf16.msra.mxu0 0
        %2758 = vmatpush.bf16.msra.mxu0 0
        %2759 = vmatpush.bf16.msra.mxu0 0
        %2760 = vmatpush.bf16.msra.mxu0 0
        %2761 = vmatpush.bf16.msra.mxu0 0
        %2762 = vmatpush.bf16.msra.mxu0 0
        %2763 = vmatpush.bf16.msra.mxu0 %v2754
        %2764 = vmatmul.bf16.gmra.mxu0 %v2751
        %v2765 = vpop.f32.mrf.mxu0
        %v2766 = vadd.f32 0.0, %v2765
        %v2767 = vpop.f32.mrf.mxu0
        %2768 = vdwg.mxu0
        %v2770 = vsel %vm2014, %v2747, 0
        %v2773 = vsel %vm1796, %v2551, 0
        %2775 = vmatpush.bf16.msra.mxu0 0
        %2776 = vmatpush.bf16.msra.mxu0 0
        %2777 = vmatpush.bf16.msra.mxu0 0
        %2778 = vmatpush.bf16.msra.mxu0 0
        %2779 = vmatpush.bf16.msra.mxu0 0
        %2780 = vmatpush.bf16.msra.mxu0 0
        %2781 = vmatpush.bf16.msra.mxu0 0
        %2782 = vmatpush.bf16.msra.mxu0 %v2773
        %2783 = vmatmul.bf16.gmra.mxu0 %v2770
        %v2784 = vpop.f32.mrf.mxu0
        %v2785 = vadd.f32 0.0, %v2784
        %v2786 = vpop.f32.mrf.mxu0
        %2787 = vdwg.mxu0
        %v2789 = vsel %vm2014, %v2748, 0
        %v2792 = vsel %vm1796, %v2552, 0
        %2794 = vmatpush.bf16.msra.mxu0 0
        %2795 = vmatpush.bf16.msra.mxu0 0
        %2796 = vmatpush.bf16.msra.mxu0 0
        %2797 = vmatpush.bf16.msra.mxu0 0
        %2798 = vmatpush.bf16.msra.mxu0 0
        %2799 = vmatpush.bf16.msra.mxu0 0
        %2800 = vmatpush.bf16.msra.mxu0 0
        %2801 = vmatpush.bf16.msra.mxu0 %v2792
        %2802 = vmatmul.bf16.gmra.mxu0 %v2789
        %v2803 = vpop.f32.mrf.mxu0
        %v2804 = vadd.f32 0.0, %v2803
        %v2805 = vpop.f32.mrf.mxu0
        %2806 = vdwg.mxu0
        %v2808 = vsel %vm2014, %v2749, 0
        %v2811 = vsel %vm1796, %v2553, 0
        %2813 = vmatpush.bf16.msra.mxu0 0
        %2814 = vmatpush.bf16.msra.mxu0 0
        %2815 = vmatpush.bf16.msra.mxu0 0
        %2816 = vmatpush.bf16.msra.mxu0 0
        %2817 = vmatpush.bf16.msra.mxu0 0
        %2818 = vmatpush.bf16.msra.mxu0 0
        %2819 = vmatpush.bf16.msra.mxu0 0
        %2820 = vmatpush.bf16.msra.mxu0 %v2811
        %2821 = vmatmul.bf16.gmra.mxu0 %v2808
        %v2822 = vpop.f32.mrf.mxu0
        %v2823 = vadd.f32 0.0, %v2822
        %v2824 = vpop.f32.mrf.mxu0
        %2825 = vdwg.mxu0
        %2827 = vrot.lane.b32.xlu0 %v2785, 16
        %v2828 = vpop.permute.xlu0 %2827
        %2831 = vrot.lane.b32.xlu0 %v2804, 32
        %v2832 = vpop.permute.xlu0 %2831
        %2835 = vrot.lane.b32.xlu0 %v2823, 48
        %v2836 = vpop.permute.xlu0 %2835
        %v2838 = vsel %vm1922, %v2766, %v2828
        %v2839 = vsel %vm777, %v2838, %v2832
        %v2840 = vsel %vm2205, %v2839, %v2836
        %v2841 = vpack.c.bf16 %v2840, %v2840
        %s2842 = scalar_lea.vmem [#allocation13], 32
        %v2843 = vld [vmem:[%s2842] sm:$0xf]
        %v2844 = vld [vmem:[%s2842 + $0x4] sm:$0xf]
        %v2845 = vld [vmem:[%s2842 + $0x8] sm:$0xf]
        %v2846 = vld [vmem:[%s2842 + $0xc] sm:$0xf]
        %v2847 = vld [vmem:[%s2842 + $0x10] sm:$0xf]
        %v2848 = vld [vmem:[%s2842 + $0x14] sm:$0xf]
        %v2849 = vld [vmem:[%s2842 + $0x18] sm:$0xf]
        %v2850 = vld [vmem:[%s2842 + $0x1c] sm:$0xf]
        %s2851 = scalar_lea.vmem %s8, 1
        %v2852 = vld [vmem:[%s2851] sm:$0x1]
        %v2854 = vperm.slane %v2852, 0
        %v2864 = vunpack.c.l.b16 %v2843
        %v2865 = vunpack.c.l.b16 %v2844
        %v2866 = vunpack.c.l.b16 %v2845
        %v2867 = vunpack.c.l.b16 %v2846
        %v2868 = vunpack.c.l.b16 %v2847
        %v2869 = vunpack.c.l.b16 %v2848
        %v2870 = vunpack.c.l.b16 %v2849
        %v2871 = vunpack.c.l.b16 %v2850
        %v2872 = vpack.c.b16 %v2865, %v2864
        %v2873 = vpack.c.b16 %v2867, %v2866
        %v2874 = vpack.c.b16 %v2869, %v2868
        %v2875 = vpack.c.b16 %v2871, %v2870
        %v2881 = vsel %vm1859, %v2841, 0
        %2883 = vmatpush.bf16.msra.mxu0 0
        %2884 = vmatpush.bf16.msra.mxu0 0
        %2885 = vmatpush.bf16.msra.mxu0 0
        %2886 = vmatpush.bf16.msra.mxu0 0
        %2887 = vmatpush.bf16.msra.mxu0 %v2875
        %2888 = vmatpush.bf16.msra.mxu0 %v2874
        %2889 = vmatpush.bf16.msra.mxu0 %v2873
        %2890 = vmatpush.bf16.msra.mxu0 %v2872
        %2891 = vmatmul.bf16.gmra.mxu0 %v2881
        %v2892 = vpop.f32.mrf.mxu0
        %v2893 = vadd.f32 %v2854, %v2892
        %v2894 = vpop.f32.mrf.mxu0
        %2895 = vdwg.mxu0
        %v2896 = vadd.f32 %v2439, %v2893
        %s2897 = scalar_lea.vmem %s9, 1
        %v2898 = vld [vmem:[%s2897] sm:$0x1]
        %s2899 = scalar_lea.vmem [#allocation14], 1
        %v2900 = vld [vmem:[%s2899] sm:$0x1]
        %v2901 = vsel %vm1859, %v2896, 0.0
        %2902 = vadd.xlane.f32.xlu0 %v2901
        %v2903 = vpop.xlane.xlu0 %2902
        %v2904 = vmul.f32 %v2903, %v2272
        %v2905 = vsub.f32 %v2896, %v2904
        %v2906 = vmul.f32 %v2905, %v2905
        %v2907 = vsel %vm1859, %v2906, 0.0
        %2908 = vadd.xlane.f32.xlu0 %v2907
        %v2909 = vpop.xlane.xlu0 %2908
        %v2910 = vmul.f32 %v2909, %v2272
        %v2911 = vadd.f32 %v2910, 1e-05
        %v2912 = vrsqrt.pop %v2911
        %v2913 = vmul.f32 %v2912, %v2911
        %v2914 = vmul.f32 %v2913, %v2912
        %v2915 = vmul.f32 0.5, %v2914
        %v2916 = vsub.f32 1.5, %v2915
        %v2917 = vmul.f32 %v2912, %v2916
        %vm2918 = vweird.f32 %v2911
        %vm2919 = vweird.f32 %v2912
        %vm2920 = vmor %vm2918, %vm2919
        %v2921 = vsel %vm2920, %v2912, %v2917
        %v2922 = vmul.f32 %v2905, %v2921
        %v2924 = vperm.slane %v2898, 0
        %v2926 = vmul.f32 %v2922, %v2924
        %v2928 = vperm.slane %v2900, 0
        %v2930 = vadd.f32 %v2926, %v2928
        %v2931 = vpack.c.bf16 %v2930, %v2930
        %s2932 = scalar_lea.vmem [#allocation16], 32
        %v2933 = vld [vmem:[%s2932] sm:$0xf]
        %v2934 = vld [vmem:[%s2932 + $0x4] sm:$0xf]
        %v2935 = vld [vmem:[%s2932 + $0x8] sm:$0xf]
        %v2936 = vld [vmem:[%s2932 + $0xc] sm:$0xf]
        %v2937 = vld [vmem:[%s2932 + $0x10] sm:$0xf]
        %v2938 = vld [vmem:[%s2932 + $0x14] sm:$0xf]
        %v2939 = vld [vmem:[%s2932 + $0x18] sm:$0xf]
        %v2940 = vld [vmem:[%s2932 + $0x1c] sm:$0xf]
        %s2941 = scalar_lea.vmem %s12, 1
        %v2942 = vld [vmem:[%s2941] sm:$0x1]
        %v2944 = vperm.slane %v2942, 0
        %v2954 = vunpack.c.l.b16 %v2933
        %v2955 = vunpack.c.l.b16 %v2934
        %v2956 = vunpack.c.l.b16 %v2935
        %v2957 = vunpack.c.l.b16 %v2936
        %v2958 = vunpack.c.l.b16 %v2937
        %v2959 = vunpack.c.l.b16 %v2938
        %v2960 = vunpack.c.l.b16 %v2939
        %v2961 = vunpack.c.l.b16 %v2940
        %v2962 = vpack.c.b16 %v2955, %v2954
        %v2963 = vpack.c.b16 %v2957, %v2956
        %v2964 = vpack.c.b16 %v2959, %v2958
        %v2965 = vpack.c.b16 %v2961, %v2960
        %v2971 = vsel %vm1859, %v2931, 0
        %2973 = vmatpush.bf16.msra.mxu0 0
        %2974 = vmatpush.bf16.msra.mxu0 0
        %2975 = vmatpush.bf16.msra.mxu0 0
        %2976 = vmatpush.bf16.msra.mxu0 0
        %2977 = vmatpush.bf16.msra.mxu0 %v2965
        %2978 = vmatpush.bf16.msra.mxu0 %v2964
        %2979 = vmatpush.bf16.msra.mxu0 %v2963
        %2980 = vmatpush.bf16.msra.mxu0 %v2962
        %2981 = vmatmul.bf16.gmra.mxu0 %v2971
        %v2982 = vpop.f32.mrf.mxu0
        %v2983 = vadd.f32 %v2944, %v2982
        %v2984 = vpop.f32.mrf.mxu0
        %2985 = vdwg.mxu0
        %v2986 = vmax.f32 %v2983, 0.0
        %v2987 = vpack.c.bf16 %v2986, %v2986
        %s2988 = scalar_lea.vmem [#allocation17], 32
        %v2989 = vld [vmem:[%s2988] sm:$0xf]
        %v2990 = vld [vmem:[%s2988 + $0x4] sm:$0xf]
        %v2991 = vld [vmem:[%s2988 + $0x8] sm:$0xf]
        %v2992 = vld [vmem:[%s2988 + $0xc] sm:$0xf]
        %v2993 = vld [vmem:[%s2988 + $0x10] sm:$0xf]
        %v2994 = vld [vmem:[%s2988 + $0x14] sm:$0xf]
        %v2995 = vld [vmem:[%s2988 + $0x18] sm:$0xf]
        %v2996 = vld [vmem:[%s2988 + $0x1c] sm:$0xf]
        %s2997 = scalar_lea.vmem %s14, 1
        %v2998 = vld [vmem:[%s2997] sm:$0x1]
        %v3000 = vperm.slane %v2998, 0
        %v3010 = vunpack.c.l.b16 %v2989
        %v3011 = vunpack.c.l.b16 %v2990
        %v3012 = vunpack.c.l.b16 %v2991
        %v3013 = vunpack.c.l.b16 %v2992
        %v3014 = vunpack.c.l.b16 %v2993
        %v3015 = vunpack.c.l.b16 %v2994
        %v3016 = vunpack.c.l.b16 %v2995
        %v3017 = vunpack.c.l.b16 %v2996
        %v3018 = vpack.c.b16 %v3011, %v3010
        %v3019 = vpack.c.b16 %v3013, %v3012
        %v3020 = vpack.c.b16 %v3015, %v3014
        %v3021 = vpack.c.b16 %v3017, %v3016
        %v3027 = vsel %vm1859, %v2987, 0
        %3029 = vmatpush.bf16.msra.mxu0 0
        %3030 = vmatpush.bf16.msra.mxu0 0
        %3031 = vmatpush.bf16.msra.mxu0 0
        %3032 = vmatpush.bf16.msra.mxu0 0
        %3033 = vmatpush.bf16.msra.mxu0 %v3021
        %3034 = vmatpush.bf16.msra.mxu0 %v3020
        %3035 = vmatpush.bf16.msra.mxu0 %v3019
        %3036 = vmatpush.bf16.msra.mxu0 %v3018
        %3037 = vmatmul.bf16.gmra.mxu0 %v3027
        %v3038 = vpop.f32.mrf.mxu0
        %v3039 = vadd.f32 %v3000, %v3038
        %v3040 = vpop.f32.mrf.mxu0
        %3041 = vdwg.mxu0
        %v3042 = vadd.f32 %v2930, %v3039
        %s3043 = scalar_lea.vmem %s15, 1
        %v3044 = vld [vmem:[%s3043] sm:$0x1]
        %s3045 = scalar_lea.vmem [#allocation19], 1
        %v3046 = vld [vmem:[%s3045] sm:$0x1]
        %v3047 = vsel %vm1859, %v3042, 0.0
        %3048 = vadd.xlane.f32.xlu0 %v3047
        %v3049 = vpop.xlane.xlu0 %3048
        %v3050 = vmul.f32 %v3049, %v2272
        %v3051 = vsub.f32 %v3042, %v3050
        %v3052 = vmul.f32 %v3051, %v3051
        %v3053 = vsel %vm1859, %v3052, 0.0
        %3054 = vadd.xlane.f32.xlu0 %v3053
        %v3055 = vpop.xlane.xlu0 %3054
        %v3056 = vmul.f32 %v3055, %v2272
        %v3057 = vadd.f32 %v3056, 1e-05
        %v3058 = vrsqrt.pop %v3057
        %v3059 = vmul.f32 %v3058, %v3057
        %v3060 = vmul.f32 %v3059, %v3058
        %v3061 = vmul.f32 0.5, %v3060
        %v3062 = vsub.f32 1.5, %v3061
        %v3063 = vmul.f32 %v3058, %v3062
        %vm3064 = vweird.f32 %v3057
        %vm3065 = vweird.f32 %v3058
        %vm3066 = vmor %vm3064, %vm3065
        %v3067 = vsel %vm3066, %v3058, %v3063
        %v3068 = vmul.f32 %v3051, %v3067
        %v3070 = vperm.slane %v3044, 0
        %v3072 = vmul.f32 %v3068, %v3070
        %v3074 = vperm.slane %v3046, 0
        %v3076 = vadd.f32 %v3072, %v3074
        %3077 = vst.msk [vmem:[%s726] sm:$0xff] %vm1859, %v3076
        %s3078 = sand.u32 %s409, 1
        %s3079 = scalar_lea.sflag [#allocation4], %s3078
        %s3080 = sand.u32 %s409, 1
        %s3081 = smul.addr %s3080, 8
        %s3082 = scalar_lea.vmem [#allocation20], %s3081
        // Predicated region
        $region133: #{tpu_custom_call.1} parent=87 // pred_check
          %p3083 = pneg %p419
        $region134: #{tpu_custom_call.1} parent=87 // pred_check_branch
          %3085 = sbr.rel (%p3083) target = $region136
        $region135: #{tpu_custom_call.1} parent=87 // pred_region
          %3087 = vsyncadd %s3079, 0
          %s3088 = smul.addr %s39, 8
          %s3089 = scalar_lea.hbm %s17, %s3088
          %s3091 = sshll.u32 %s3082, 4
          %s3092 = int_to_ptr.vmem [resolvable:$true] %s3091
          %s3093 = sshll.u32 %s3089, 4
          %s3094 = int_to_ptr.hbm [resolvable:$true] %s3093
          %3096 = dma.vmem_to_hbm [thread:$0]  %s3092, 128, %s3094, %s3079
        $region136: #{tpu_custom_call.1} parent=87 // pred_fallthru
          _
      $region88: #{tpu_custom_call.1} parent=5 // pred_fallthru
        _
      %p3097 = scmp.le.s32.totalorder 2, %s34
      // Predicated region
      $region137: #{tpu_custom_call.1} parent=5 // pred_check
        %p3098 = pneg %p3097
      $region138: #{tpu_custom_call.1} parent=5 // pred_check_branch
        %3100 = sbr.rel (%p3098) target = $region140
      $region139: #{tpu_custom_call.1} parent=5 // pred_region
        %s3101 = ssub.s32 %s34, 2
        // Predicated region
        $region141: #{tpu_custom_call.1} parent=139 // pred_check
          %p3102 = pneg %p425
        $region142: #{tpu_custom_call.1} parent=139 // pred_check_branch
          %3104 = sbr.rel (%p3102) target = $region144
        $region143: #{tpu_custom_call.1} parent=139 // pred_region
          %s3105 = sand.u32 %s410, 1
          %s3106 = scalar_lea.sflag [#allocation4], %s3105
          %s3107 = sand.u32 %s410, 1
          %s3108 = smul.addr %s3107, 8
          %s3109 = scalar_lea.vmem [#allocation20], %s3108
          %3111 = dma.done %s3106, 128
        $region144: #{tpu_custom_call.1} parent=139 // pred_fallthru
          _
      $region140: #{tpu_custom_call.1} parent=5 // pred_fallthru
        _
    $region6: #{tpu_custom_call.1} parent=1 // loop_footer
      %s38 = sadd.s32 1, %s34
    $region7: #{tpu_custom_call.1} parent=1 // loop_footer_branch
      %33 = sbr.rel target = $region3
    $region8: #{tpu_custom_call.1} parent=1 // loop_exit
      _
    %3112 = vsyncpa [#allocation3], 1
    %s3113 = scalar_lea.sflag [#allocation3], 1
    %3114 = vsyncpa %s3113, 1
    %3115 = vsyncpa [#allocation6], 1
    %3116 = vsyncpa [#allocation9], 1
    %3117 = vsyncpa [#allocation12], 1
    %3118 = vsyncpa [#allocation15], 1
    %3119 = vsyncpa [#allocation18], 1
    %3120 = vsyncpa [#allocation4], 1
    %s3121 = scalar_lea.sflag [#allocation4], 1
    %3122 = vsyncpa %s3121, 1

</llo_original>
